<compile_context>
chip_gen: v6e
topology: v6e:2x2x1
jax: 0.10.0
libtpu: 0.0.40
codegen_flags: <defaults>
</compile_context>

<pallas_src>
import functools

import jax
import jax.numpy as jnp
from jax.experimental import pallas as pl
from jax.experimental.pallas import tpu as pltpu


# ----------------------------------------------------------------------------
# Pallas kernels
# ----------------------------------------------------------------------------

def _conv1_kernel(x_ref, w_ref, b_ref, o_ref):
    # x: (TM, 256) bf16, w: (256, 16) bf16, b: (1, 16) f32, o: (TM, 16) bf16.
    # Note: a lane-dense (16, TM) transposed output would need TM % 128 == 0,
    # which conflicts with sample-aligned (multiple-of-400) tiles; conv1 is
    # patch-DMA-bound, so the (TM, 16) store stays.
    acc = jnp.dot(x_ref[...], w_ref[...], preferred_element_type=jnp.float32)
    o_ref[...] = jnp.maximum(acc + b_ref[...], 0.0).astype(o_ref.dtype)


def _tail_kernel(p2_ref, w2_ref, b2_ref, w1_ref, b1_ref, w3_ref, b3_ref,
                 o_ref, flat_ref, *, n_spatial, n_chan):
    """conv2-matmul + flatten + fc1(+ReLU) + fc2 for ONE sample per grid step.

    p2: (81, 256) bf16 patches, w2: (256, 32), w1: (2592, 256), w3: (256, 128).
    Everything after the patch load stays resident in VMEM.
    """
    # conv2: (81, 256) @ (256, 32) -> (81, 32), bias + ReLU in f32.
    y = jnp.dot(p2_ref[...], w2_ref[...], preferred_element_type=jnp.float32)
    y = jnp.maximum(y + b2_ref[...], 0.0)

    # Flatten (81, 32) -> (1, 2592) in (H, W, C) order entirely inside VMEM
    # via static slice-stores (no HBM round trip, no in-kernel reshape).
    # fc1's weight rows were permuted at prep time to the same order, so this
    # matches PyTorch's x.view(-1, 32*9*9) over NCHW activations.
    for s in range(n_spatial):
        flat_ref[:, s * n_chan:(s + 1) * n_chan] = y[s:s + 1, :]

    # fc1 + ReLU.
    h = jnp.dot(flat_ref[...].astype(jnp.bfloat16), w1_ref[...],
                preferred_element_type=jnp.float32)
    h = jnp.maximum(h + b1_ref[...], 0.0)

    # fc2: output channels zero-padded to 128 lanes -> unmasked store.
    q = jnp.dot(h.astype(jnp.bfloat16), w3_ref[...],
                preferred_element_type=jnp.float32)
    o_ref[...] = q + b3_ref[...]


# ----------------------------------------------------------------------------
# Pallas wrappers
# ----------------------------------------------------------------------------

_VMEM_LIMIT = 32 * 1024 * 1024   # safe on v5e (128 MiB phys) and v7x (64 MiB)


def _conv1_tiles(batch, rows_per_sample, cap_rows=2048):
    """Sample-aligned M tiles: as large as the cap allows, >= 2 grid steps when
    batch >= 2 (v7x megacore), preferring exact divisors of batch so there is
    no masked remainder tile."""
    per = max(1, cap_rows // rows_per_sample)
    if batch >= 2:
        per = min(per, batch // 2)
    per = max(1, min(per, batch))
    for cand in range(per, 0, -1):
        if batch % cand == 0:
            per = cand
            break
    tm = per * rows_per_sample
    return tm, pl.cdiv(batch * rows_per_sample, tm)


def conv1_matmul(patches, w, b, *, rows_per_sample):
    """y = relu(patches @ w + b) for conv1, M-tiled and software-pipelined."""
    M, K = patches.shape
    K2, N = w.shape
    assert K == K2 and b.shape == (1, N)
    batch = M // rows_per_sample
    tm, grid_m = _conv1_tiles(batch, rows_per_sample)

    flops = 2 * M * K * N
    bytes_accessed = int(M * K * 2 + K * N * 2 + N * 4 + M * N * 2)

    return pl.pallas_call(
        _conv1_kernel,
        out_shape=jax.ShapeDtypeStruct((M, N), jnp.bfloat16),
        grid=(grid_m,),
        in_specs=[
            pl.BlockSpec((tm, K), lambda i: (i, 0)),
            pl.BlockSpec((K, N), lambda i: (0, 0)),
            pl.BlockSpec((1, N), lambda i: (0, 0)),
        ],
        out_specs=pl.BlockSpec((tm, N), lambda i: (i, 0)),
        compiler_params=pltpu.CompilerParams(
            dimension_semantics=("parallel",),
            vmem_limit_bytes=_VMEM_LIMIT,
            allow_input_fusion=[True, False, False],
        ),
        cost_estimate=pl.CostEstimate(
            flops=flops, transcendentals=0, bytes_accessed=bytes_accessed),
    )(patches, w, b)


def conv2_fc_fused(p2, w2, b2, w1, b1, w3, b3):
    """Fused conv2-matmul + flatten + fc1 + fc2, one sample per grid step."""
    B, S, K = p2.shape            # (B, 81, 256)
    K2, C2 = w2.shape             # (256, 32)
    F, H = w1.shape               # (2592, 256)
    H2, NP = w3.shape             # (256, 128)  (padded actions)
    assert K == K2 and F == S * C2 and H == H2
    assert b2.shape == (1, C2) and b1.shape == (1, H) and b3.shape == (1, NP)

    flops = B * (2 * S * K * C2 + 2 * F * H + 2 * H * NP)
    bytes_accessed = int(B * S * K * 2 + K * C2 * 2 + F * H * 2 + H * NP * 2
                         + (C2 + H + NP) * 4 + B * NP * 4)

    out = pl.pallas_call(
        functools.partial(_tail_kernel, n_spatial=S, n_chan=C2),
        out_shape=jax.ShapeDtypeStruct((B, 1, NP), jnp.float32),
        grid=(B,),
        in_specs=[
            pl.BlockSpec((None, S, K), lambda i: (i, 0, 0)),
            pl.BlockSpec((K, C2), lambda i: (0, 0)),
            pl.BlockSpec((1, C2), lambda i: (0, 0)),
            pl.BlockSpec((F, H), lambda i: (0, 0)),
            pl.BlockSpec((1, H), lambda i: (0, 0)),
            pl.BlockSpec((H, NP), lambda i: (0, 0)),
            pl.BlockSpec((1, NP), lambda i: (0, 0)),
        ],
        out_specs=pl.BlockSpec((None, 1, NP), lambda i: (i, 0, 0)),
        scratch_shapes=[pltpu.VMEM((1, F), jnp.float32)],
        compiler_params=pltpu.CompilerParams(
            dimension_semantics=("parallel",),
            vmem_limit_bytes=_VMEM_LIMIT,
            allow_input_fusion=[True] + [False] * 6,
        ),
        cost_estimate=pl.CostEstimate(
            flops=flops, transcendentals=0, bytes_accessed=bytes_accessed),
    )(p2, w2, b2, w1, b1, w3, b3)
    return out.reshape(B, NP)


# ----------------------------------------------------------------------------
# Parameters
# ----------------------------------------------------------------------------

def init_dqn_params(key, n_actions):
    """Deterministic synthetic parameters matching DQN.__init__ shapes."""
    ks = jax.random.split(key, 8)

    def _w(k, shape, fan_in):
        return jax.random.normal(k, shape, jnp.float32) / jnp.sqrt(fan_in)

    return {
        # PyTorch conv weight layout: (out_ch, in_ch, kh, kw)
        "conv1_w": _w(ks[0], (16, 4, 8, 8), 4 * 8 * 8),
        "conv1_b": _w(ks[1], (16,), 4 * 8 * 8),
        "conv2_w": _w(ks[2], (32, 16, 4, 4), 16 * 4 * 4),
        "conv2_b": _w(ks[3], (32,), 16 * 4 * 4),
        # PyTorch linear weight layout: (out_features, in_features)
        "fc1_w": _w(ks[4], (256, 32 * 9 * 9), 32 * 9 * 9),
        "fc1_b": _w(ks[5], (256,), 32 * 9 * 9),
        "fc2_w": _w(ks[6], (n_actions, 256), 256),
        "fc2_b": _w(ks[7], (n_actions,), 256),
    }


def prepare_params(params):
    """One-time reshape/transpose/cast/pad of PyTorch-layout params."""
    n_actions = params["fc2_w"].shape[0]
    n_pad = 128 * pl.cdiv(n_actions, 128)   # lane-dense fc2 output (>=128)

    # Conv weights: (O, C, kh, kw) -> (C*kh*kw, O), bf16 for the MXU.  This
    # matches conv_general_dilated_patches' (C, kh, kw) feature ordering.
    w1 = params["conv1_w"].reshape(16, 4 * 8 * 8).T.astype(jnp.bfloat16)
    w2 = params["conv2_w"].reshape(32, 16 * 4 * 4).T.astype(jnp.bfloat16)

    # fc1 consumes the in-kernel (H, W, C) flatten; PyTorch columns are (C,H,W).
    fc1_w = (params["fc1_w"].reshape(256, 32, 9, 9)
             .transpose(0, 2, 3, 1)
             .reshape(256, 32 * 9 * 9).T
             .astype(jnp.bfloat16))

    fc2_w = (jnp.zeros((256, n_pad), jnp.float32)
             .at[:, :n_actions].set(params["fc2_w"].T)
             .astype(jnp.bfloat16))
    fc2_b = jnp.zeros((1, n_pad), jnp.float32).at[0, :n_actions].set(
        params["fc2_b"])

    return {
        "w1": w1, "b1": params["conv1_b"].reshape(1, 16).astype(jnp.float32),
        "w2": w2, "b2": params["conv2_b"].reshape(1, 32).astype(jnp.float32),
        "fc1_w": fc1_w,
        "fc1_b": params["fc1_b"].reshape(1, 256).astype(jnp.float32),
        "fc2_w": fc2_w,
        "fc2_b": fc2_b,
    }


# ----------------------------------------------------------------------------
# Forward pass (matches PyTorch DQN.forward semantics)
# ----------------------------------------------------------------------------

def dqn_forward(prep, x, *, n_actions):
    """x: (B, 4, 84, 84) float32 NCHW -> (B, n_actions) float32."""
    B = x.shape[0]
    xb = x.astype(jnp.bfloat16)

    # conv1 + ReLU (8x8 stride 4): im2col in XLA (feature order (C, kh, kw)),
    # matmul in Pallas, activations stay NHWC bf16.
    p1 = jax.lax.conv_general_dilated_patches(
        xb, filter_shape=(8, 8), window_strides=(4, 4), padding="VALID",
        dimension_numbers=("NCHW", "OIHW", "NHWC"))            # (B, 20, 20, 256)
    _, oh1, ow1, f1 = p1.shape
    y1 = conv1_matmul(p1.reshape(B * oh1 * ow1, f1).astype(jnp.bfloat16),
                      prep["w1"], prep["b1"],
                      rows_per_sample=oh1 * ow1)               # (B*400, 16) bf16
    y1 = y1.reshape(B, oh1, ow1, 16)                           # NHWC

    # conv2 patches (4x4 stride 2), same (C, kh, kw) feature ordering.
    p2 = jax.lax.conv_general_dilated_patches(
        y1, filter_shape=(4, 4), window_strides=(2, 2), padding="VALID",
        dimension_numbers=("NHWC", "HWIO", "NHWC"))            # (B, 9, 9, 256)
    _, oh2, ow2, f2 = p2.shape
    p2 = p2.reshape(B, oh2 * ow2, f2).astype(jnp.bfloat16)     # (B, 81, 256)

    # conv2-matmul + flatten + fc1 + fc2 fused; output padded to 128 actions.
    q_pad = conv2_fc_fused(p2, prep["w2"], prep["b2"],
                           prep["fc1_w"], prep["fc1_b"],
                           prep["fc2_w"], prep["fc2_b"])       # (B, 128) f32
    return q_pad[:, :n_actions]


def dqn_reference(params, x):
    """Pure-JAX f32 reference of the PyTorch module (for validation)."""
    y = jax.lax.conv_general_dilated(
        x, params["conv1_w"], (4, 4), "VALID",
        dimension_numbers=("NCHW", "OIHW", "NCHW"))
    y = jax.nn.relu(y + params["conv1_b"][None, :, None, None])
    y = jax.lax.conv_general_dilated(
        y, params["conv2_w"], (2, 2), "VALID",
        dimension_numbers=("NCHW", "OIHW", "NCHW"))
    y = jax.nn.relu(y + params["conv2_b"][None, :, None, None])
    y = y.reshape(y.shape[0], -1)                              # (C, H, W) order
    h = jax.nn.relu(y @ params["fc1_w"].T + params["fc1_b"])
    return h @ params["fc2_w"].T + params["fc2_b"]


if __name__ == "__main__":
    n_actions = 6
    batch = 2

    key = jax.random.PRNGKey(0)
    k_params, k_x = jax.random.split(key)

    params = init_dqn_params(k_params, n_actions)
    prep = prepare_params(params)   # one-time weight layout prep (outside jit)

    # Input shape forced by fc1 = Linear(32*9*9, 256): (B, 4, 84, 84).
    x = jax.random.uniform(k_x, (batch, 4, 84, 84), jnp.float32)

    fwd = jax.jit(functools.partial(dqn_forward, n_actions=n_actions))
    q_values = fwd(prep, x)
    jax.block_until_ready(q_values)

    assert q_values.shape == (batch, n_actions)
    assert q_values.dtype == jnp.float32

    # Numerical validation vs f32 reference (bf16 matmuls -> loose tolerance).
    q_ref = dqn_reference(params, x)
    max_err = float(jnp.max(jnp.abs(q_values - q_ref)))
    tol = 5e-2 * max(1.0, float(jnp.max(jnp.abs(q_ref))))
    assert max_err <= tol, f"max_err={max_err} tol={tol}"

    print("KERNEL_OK")
</pallas_src>

<mosaic_0001>
module attributes {stable_mosaic.version = 11 : i64} {
  func.func @_conv1_kernel(%arg0: i32, %arg1: memref<400x256xbf16, #tpu.memory_space<vmem>>, %arg2: memref<256x16xbf16, #tpu.memory_space<vmem>>, %arg3: memref<1x16xf32, #tpu.memory_space<vmem>>, %arg4: memref<400x16xbf16, #tpu.memory_space<vmem>>) attributes {dimension_semantics = [#tpu.dimension_semantics<parallel>], iteration_bounds = array<i64: 2>, scalar_prefetch = 0 : i64, scratch_operands = 0 : i64, tpu.core_type = #tpu.core_type<tc>, window_params = [{transform_indices = @transform_0, window_bounds = array<i64: 400, 256>}, {pipeline_mode = #tpu.pipeline_mode<synchronous>, transform_indices = @transform_1, window_bounds = array<i64: 256, 16>}, {pipeline_mode = #tpu.pipeline_mode<synchronous>, transform_indices = @transform_2, window_bounds = array<i64: 1, 16>}, {transform_indices = @transform_3, window_bounds = array<i64: 400, 16>}]} {
    %c0 = arith.constant 0 : index
    %c0_0 = arith.constant 0 : index
    %0 = vector.load %arg1[%c0, %c0_0] : memref<400x256xbf16, #tpu.memory_space<vmem>>, vector<400x256xbf16>
    %c0_1 = arith.constant 0 : index
    %c0_2 = arith.constant 0 : index
    %1 = vector.load %arg2[%c0_1, %c0_2] : memref<256x16xbf16, #tpu.memory_space<vmem>>, vector<256x16xbf16>
    %cst = arith.constant dense<0.000000e+00> : vector<400x16xf32>
    %2 = tpu.matmul %0, %1, %cst {dimension_numbers = #tpu.dot_dimension_numbers<[1], [0], [0], [1], [0, 0, 1, 1], [], []>} : vector<400x256xbf16>, vector<256x16xbf16>, vector<400x16xf32> -> vector<400x16xf32>
    %c0_3 = arith.constant 0 : index
    %c0_4 = arith.constant 0 : index
    %3 = vector.load %arg3[%c0_3, %c0_4] : memref<1x16xf32, #tpu.memory_space<vmem>>, vector<1x16xf32>
    %4 = vector.broadcast %3 : vector<1x16xf32> to vector<400x16xf32>
    %5 = arith.addf %2, %4 : vector<400x16xf32>
    %cst_5 = arith.constant 0.000000e+00 : f32
    %6 = vector.broadcast %cst_5 : f32 to vector<400x16xf32>
    %7 = arith.maximumf %5, %6 : vector<400x16xf32>
    %8 = arith.truncf %7 : vector<400x16xf32> to vector<400x16xbf16>
    %c0_6 = arith.constant 0 : index
    %c0_7 = arith.constant 0 : index
    %9 = vector.load %arg4[%c0_6, %c0_7] : memref<400x16xbf16, #tpu.memory_space<vmem>>, vector<400x16xbf16>
    tpu.vector_store %arg4[%c0_6, %c0_7], %8 {strides = array<i32>} : memref<400x16xbf16, #tpu.memory_space<vmem>>, vector<400x16xbf16>,
    return
  }
  func.func @transform_0(%arg0: i32) -> (i32, i32) {
    %c0_i32 = arith.constant 0 : i32
    %c0_i32_0 = arith.constant 0 : i32
    return %arg0, %c0_i32 : i32, i32
  }
  func.func @transform_1(%arg0: i32) -> (i32, i32) {
    %c0_i32 = arith.constant 0 : i32
    %c0_i32_0 = arith.constant 0 : i32
    %c0_i32_1 = arith.constant 0 : i32
    return %c0_i32, %c0_i32_0 : i32, i32
  }
  func.func @transform_2(%arg0: i32) -> (i32, i32) {
    %c0_i32 = arith.constant 0 : i32
    %c0_i32_0 = arith.constant 0 : i32
    %c0_i32_1 = arith.constant 0 : i32
    return %c0_i32, %c0_i32_0 : i32, i32
  }
  func.func @transform_3(%arg0: i32) -> (i32, i32) {
    %c0_i32 = arith.constant 0 : i32
    %c0_i32_0 = arith.constant 0 : i32
    return %arg0, %c0_i32 : i32, i32
  }
}

module attributes {stable_mosaic.version = 11 : i64} {
  func.func @_tail_kernel(%arg0: i32, %arg1: memref<1x81x256xbf16, #tpu.memory_space<vmem>>, %arg2: memref<256x32xbf16, #tpu.memory_space<vmem>>, %arg3: memref<1x32xf32, #tpu.memory_space<vmem>>, %arg4: memref<2592x256xbf16, #tpu.memory_space<vmem>>, %arg5: memref<1x256xf32, #tpu.memory_space<vmem>>, %arg6: memref<256x128xbf16, #tpu.memory_space<vmem>>, %arg7: memref<1x128xf32, #tpu.memory_space<vmem>>, %arg8: memref<1x1x128xf32, #tpu.memory_space<vmem>>, %arg9: memref<1x2592xf32, #tpu.memory_space<vmem>>) attributes {dimension_semantics = [#tpu.dimension_semantics<parallel>], iteration_bounds = array<i64: 2>, scalar_prefetch = 0 : i64, scratch_operands = 1 : i64, tpu.core_type = #tpu.core_type<tc>, window_params = [{transform_indices = @transform_0, window_bounds = array<i64: 1, 81, 256>}, {pipeline_mode = #tpu.pipeline_mode<synchronous>, transform_indices = @transform_1, window_bounds = array<i64: 256, 32>}, {pipeline_mode = #tpu.pipeline_mode<synchronous>, transform_indices = @transform_2, window_bounds = array<i64: 1, 32>}, {pipeline_mode = #tpu.pipeline_mode<synchronous>, transform_indices = @transform_3, window_bounds = array<i64: 2592, 256>}, {pipeline_mode = #tpu.pipeline_mode<synchronous>, transform_indices = @transform_4, window_bounds = array<i64: 1, 256>}, {pipeline_mode = #tpu.pipeline_mode<synchronous>, transform_indices = @transform_5, window_bounds = array<i64: 256, 128>}, {pipeline_mode = #tpu.pipeline_mode<synchronous>, transform_indices = @transform_6, window_bounds = array<i64: 1, 128>}, {transform_indices = @transform_7, window_bounds = array<i64: 1, 1, 128>}]} {
    %c0 = arith.constant 0 : index
    %c0_0 = arith.constant 0 : index
    %c0_1 = arith.constant 0 : index
    %0 = vector.load %arg1[%c0, %c0_0, %c0_1] : memref<1x81x256xbf16, #tpu.memory_space<vmem>>, vector<1x81x256xbf16>
    %1 = vector.shape_cast %0 : vector<1x81x256xbf16> to vector<81x256xbf16>
    %c0_2 = arith.constant 0 : index
    %c0_3 = arith.constant 0 : index
    %2 = vector.load %arg2[%c0_2, %c0_3] : memref<256x32xbf16, #tpu.memory_space<vmem>>, vector<256x32xbf16>
    %cst = arith.constant dense<0.000000e+00> : vector<81x32xf32>
    %3 = tpu.matmul %1, %2, %cst {dimension_numbers = #tpu.dot_dimension_numbers<[1], [0], [0], [1], [0, 0, 1, 1], [], []>} : vector<81x256xbf16>, vector<256x32xbf16>, vector<81x32xf32> -> vector<81x32xf32>
    %c0_4 = arith.constant 0 : index
    %c0_5 = arith.constant 0 : index
    %4 = vector.load %arg3[%c0_4, %c0_5] : memref<1x32xf32, #tpu.memory_space<vmem>>, vector<1x32xf32>
    %5 = vector.broadcast %4 : vector<1x32xf32> to vector<81x32xf32>
    %6 = arith.addf %3, %5 : vector<81x32xf32>
    %cst_6 = arith.constant 0.000000e+00 : f32
    %7 = vector.broadcast %cst_6 : f32 to vector<81x32xf32>
    %8 = arith.maximumf %6, %7 : vector<81x32xf32>
    %9 = vector.extract_strided_slice %8 {offsets = [0, 0], sizes = [1, 32], strides = [1, 1]} : vector<81x32xf32> to vector<1x32xf32>
    %c0_7 = arith.constant 0 : index
    %c0_8 = arith.constant 0 : index
    %10 = vector.load %arg9[%c0_7, %c0_8] : memref<1x2592xf32, #tpu.memory_space<vmem>>, vector<1x32xf32>
    tpu.vector_store %arg9[%c0_7, %c0_8], %9 {strides = array<i32>} : memref<1x2592xf32, #tpu.memory_space<vmem>>, vector<1x32xf32>,
    %11 = vector.extract_strided_slice %8 {offsets = [1, 0], sizes = [1, 32], strides = [1, 1]} : vector<81x32xf32> to vector<1x32xf32>
    %c0_9 = arith.constant 0 : index
    %c32 = arith.constant 32 : index
    %12 = vector.load %arg9[%c0_9, %c32] : memref<1x2592xf32, #tpu.memory_space<vmem>>, vector<1x32xf32>
    tpu.vector_store %arg9[%c0_9, %c32], %11 {strides = array<i32>} : memref<1x2592xf32, #tpu.memory_space<vmem>>, vector<1x32xf32>,
    %13 = vector.extract_strided_slice %8 {offsets = [2, 0], sizes = [1, 32], strides = [1, 1]} : vector<81x32xf32> to vector<1x32xf32>
    %c0_10 = arith.constant 0 : index
    %c64 = arith.constant 64 : index
    %14 = vector.load %arg9[%c0_10, %c64] : memref<1x2592xf32, #tpu.memory_space<vmem>>, vector<1x32xf32>
    tpu.vector_store %arg9[%c0_10, %c64], %13 {strides = array<i32>} : memref<1x2592xf32, #tpu.memory_space<vmem>>, vector<1x32xf32>,
    %15 = vector.extract_strided_slice %8 {offsets = [3, 0], sizes = [1, 32], strides = [1, 1]} : vector<81x32xf32> to vector<1x32xf32>
    %c0_11 = arith.constant 0 : index
    %c96 = arith.constant 96 : index
    %16 = vector.load %arg9[%c0_11, %c96] : memref<1x2592xf32, #tpu.memory_space<vmem>>, vector<1x32xf32>
    tpu.vector_store %arg9[%c0_11, %c96], %15 {strides = array<i32>} : memref<1x2592xf32, #tpu.memory_space<vmem>>, vector<1x32xf32>,
    %17 = vector.extract_strided_slice %8 {offsets = [4, 0], sizes = [1, 32], strides = [1, 1]} : vector<81x32xf32> to vector<1x32xf32>
    %c0_12 = arith.constant 0 : index
    %c128 = arith.constant 128 : index
    %18 = vector.load %arg9[%c0_12, %c128] : memref<1x2592xf32, #tpu.memory_space<vmem>>, vector<1x32xf32>
    tpu.vector_store %arg9[%c0_12, %c128], %17 {strides = array<i32>} : memref<1x2592xf32, #tpu.memory_space<vmem>>, vector<1x32xf32>,
    %19 = vector.extract_strided_slice %8 {offsets = [5, 0], sizes = [1, 32], strides = [1, 1]} : vector<81x32xf32> to vector<1x32xf32>
    %c0_13 = arith.constant 0 : index
    %c160 = arith.constant 160 : index
    %20 = vector.load %arg9[%c0_13, %c160] : memref<1x2592xf32, #tpu.memory_space<vmem>>, vector<1x32xf32>
    tpu.vector_store %arg9[%c0_13, %c160], %19 {strides = array<i32>} : memref<1x2592xf32, #tpu.memory_space<vmem>>, vector<1x32xf32>,
    %21 = vector.extract_strided_slice %8 {offsets = [6, 0], sizes = [1, 32], strides = [1, 1]} : vector<81x32xf32> to vector<1x32xf32>
    %c0_14 = arith.constant 0 : index
    %c192 = arith.constant 192 : index
    %22 = vector.load %arg9[%c0_14, %c192] : memref<1x2592xf32, #tpu.memory_space<vmem>>, vector<1x32xf32>
    tpu.vector_store %arg9[%c0_14, %c192], %21 {strides = array<i32>} : memref<1x2592xf32, #tpu.memory_space<vmem>>, vector<1x32xf32>,
    %23 = vector.extract_strided_slice %8 {offsets = [7, 0], sizes = [1, 32], strides = [1, 1]} : vector<81x32xf32> to vector<1x32xf32>
    %c0_15 = arith.constant 0 : index
    %c224 = arith.constant 224 : index
    %24 = vector.load %arg9[%c0_15, %c224] : memref<1x2592xf32, #tpu.memory_space<vmem>>, vector<1x32xf32>
    tpu.vector_store %arg9[%c0_15, %c224], %23 {strides = array<i32>} : memref<1x2592xf32, #tpu.memory_space<vmem>>, vector<1x32xf32>,
    %25 = vector.extract_strided_slice %8 {offsets = [8, 0], sizes = [1, 32], strides = [1, 1]} : vector<81x32xf32> to vector<1x32xf32>
    %c0_16 = arith.constant 0 : index
    %c256 = arith.constant 256 : index
    %26 = vector.load %arg9[%c0_16, %c256] : memref<1x2592xf32, #tpu.memory_space<vmem>>, vector<1x32xf32>
    tpu.vector_store %arg9[%c0_16, %c256], %25 {strides = array<i32>} : memref<1x2592xf32, #tpu.memory_space<vmem>>, vector<1x32xf32>,
    %27 = vector.extract_strided_slice %8 {offsets = [9, 0], sizes = [1, 32], strides = [1, 1]} : vector<81x32xf32> to vector<1x32xf32>
    %c0_17 = arith.constant 0 : index
    %c288 = arith.constant 288 : index
    %28 = vector.load %arg9[%c0_17, %c288] : memref<1x2592xf32, #tpu.memory_space<vmem>>, vector<1x32xf32>
    tpu.vector_store %arg9[%c0_17, %c288], %27 {strides = array<i32>} : memref<1x2592xf32, #tpu.memory_space<vmem>>, vector<1x32xf32>,
    %29 = vector.extract_strided_slice %8 {offsets = [10, 0], sizes = [1, 32], strides = [1, 1]} : vector<81x32xf32> to vector<1x32xf32>
    %c0_18 = arith.constant 0 : index
    %c320 = arith.constant 320 : index
    %30 = vector.load %arg9[%c0_18, %c320] : memref<1x2592xf32, #tpu.memory_space<vmem>>, vector<1x32xf32>
    tpu.vector_store %arg9[%c0_18, %c320], %29 {strides = array<i32>} : memref<1x2592xf32, #tpu.memory_space<vmem>>, vector<1x32xf32>,
    %31 = vector.extract_strided_slice %8 {offsets = [11, 0], sizes = [1, 32], strides = [1, 1]} : vector<81x32xf32> to vector<1x32xf32>
    %c0_19 = arith.constant 0 : index
    %c352 = arith.constant 352 : index
    %32 = vector.load %arg9[%c0_19, %c352] : memref<1x2592xf32, #tpu.memory_space<vmem>>, vector<1x32xf32>
    tpu.vector_store %arg9[%c0_19, %c352], %31 {strides = array<i32>} : memref<1x2592xf32, #tpu.memory_space<vmem>>, vector<1x32xf32>,
    %33 = vector.extract_strided_slice %8 {offsets = [12, 0], sizes = [1, 32], strides = [1, 1]} : vector<81x32xf32> to vector<1x32xf32>
    %c0_20 = arith.constant 0 : index
    %c384 = arith.constant 384 : index
    %34 = vector.load %arg9[%c0_20, %c384] : memref<1x2592xf32, #tpu.memory_space<vmem>>, vector<1x32xf32>
    tpu.vector_store %arg9[%c0_20, %c384], %33 {strides = array<i32>} : memref<1x2592xf32, #tpu.memory_space<vmem>>, vector<1x32xf32>,
    %35 = vector.extract_strided_slice %8 {offsets = [13, 0], sizes = [1, 32], strides = [1, 1]} : vector<81x32xf32> to vector<1x32xf32>
    %c0_21 = arith.constant 0 : index
    %c416 = arith.constant 416 : index
    %36 = vector.load %arg9[%c0_21, %c416] : memref<1x2592xf32, #tpu.memory_space<vmem>>, vector<1x32xf32>
    tpu.vector_store %arg9[%c0_21, %c416], %35 {strides = array<i32>} : memref<1x2592xf32, #tpu.memory_space<vmem>>, vector<1x32xf32>,
    %37 = vector.extract_strided_slice %8 {offsets = [14, 0], sizes = [1, 32], strides = [1, 1]} : vector<81x32xf32> to vector<1x32xf32>
    %c0_22 = arith.constant 0 : index
    %c448 = arith.constant 448 : index
    %38 = vector.load %arg9[%c0_22, %c448] : memref<1x2592xf32, #tpu.memory_space<vmem>>, vector<1x32xf32>
    tpu.vector_store %arg9[%c0_22, %c448], %37 {strides = array<i32>} : memref<1x2592xf32, #tpu.memory_space<vmem>>, vector<1x32xf32>,
    %39 = vector.extract_strided_slice %8 {offsets = [15, 0], sizes = [1, 32], strides = [1, 1]} : vector<81x32xf32> to vector<1x32xf32>
    %c0_23 = arith.constant 0 : index
    %c480 = arith.constant 480 : index
    %40 = vector.load %arg9[%c0_23, %c480] : memref<1x2592xf32, #tpu.memory_space<vmem>>, vector<1x32xf32>
    tpu.vector_store %arg9[%c0_23, %c480], %39 {strides = array<i32>} : memref<1x2592xf32, #tpu.memory_space<vmem>>, vector<1x32xf32>,
    %41 = vector.extract_strided_slice %8 {offsets = [16, 0], sizes = [1, 32], strides = [1, 1]} : vector<81x32xf32> to vector<1x32xf32>
    %c0_24 = arith.constant 0 : index
    %c512 = arith.constant 512 : index
    %42 = vector.load %arg9[%c0_24, %c512] : memref<1x2592xf32, #tpu.memory_space<vmem>>, vector<1x32xf32>
    tpu.vector_store %arg9[%c0_24, %c512], %41 {strides = array<i32>} : memref<1x2592xf32, #tpu.memory_space<vmem>>, vector<1x32xf32>,
    %43 = vector.extract_strided_slice %8 {offsets = [17, 0], sizes = [1, 32], strides = [1, 1]} : vector<81x32xf32> to vector<1x32xf32>
    %c0_25 = arith.constant 0 : index
    %c544 = arith.constant 544 : index
    %44 = vector.load %arg9[%c0_25, %c544] : memref<1x2592xf32, #tpu.memory_space<vmem>>, vector<1x32xf32>
    tpu.vector_store %arg9[%c0_25, %c544], %43 {strides = array<i32>} : memref<1x2592xf32, #tpu.memory_space<vmem>>, vector<1x32xf32>,
    %45 = vector.extract_strided_slice %8 {offsets = [18, 0], sizes = [1, 32], strides = [1, 1]} : vector<81x32xf32> to vector<1x32xf32>
    %c0_26 = arith.constant 0 : index
    %c576 = arith.constant 576 : index
    %46 = vector.load %arg9[%c0_26, %c576] : memref<1x2592xf32, #tpu.memory_space<vmem>>, vector<1x32xf32>
    tpu.vector_store %arg9[%c0_26, %c576], %45 {strides = array<i32>} : memref<1x2592xf32, #tpu.memory_space<vmem>>, vector<1x32xf32>,
    %47 = vector.extract_strided_slice %8 {offsets = [19, 0], sizes = [1, 32], strides = [1, 1]} : vector<81x32xf32> to vector<1x32xf32>
    %c0_27 = arith.constant 0 : index
    %c608 = arith.constant 608 : index
    %48 = vector.load %arg9[%c0_27, %c608] : memref<1x2592xf32, #tpu.memory_space<vmem>>, vector<1x32xf32>
    tpu.vector_store %arg9[%c0_27, %c608], %47 {strides = array<i32>} : memref<1x2592xf32, #tpu.memory_space<vmem>>, vector<1x32xf32>,
    %49 = vector.extract_strided_slice %8 {offsets = [20, 0], sizes = [1, 32], strides = [1, 1]} : vector<81x32xf32> to vector<1x32xf32>
    %c0_28 = arith.constant 0 : index
    %c640 = arith.constant 640 : index
    %50 = vector.load %arg9[%c0_28, %c640] : memref<1x2592xf32, #tpu.memory_space<vmem>>, vector<1x32xf32>
    tpu.vector_store %arg9[%c0_28, %c640], %49 {strides = array<i32>} : memref<1x2592xf32, #tpu.memory_space<vmem>>, vector<1x32xf32>,
    %51 = vector.extract_strided_slice %8 {offsets = [21, 0], sizes = [1, 32], strides = [1, 1]} : vector<81x32xf32> to vector<1x32xf32>
    %c0_29 = arith.constant 0 : index
    %c672 = arith.constant 672 : index
    %52 = vector.load %arg9[%c0_29, %c672] : memref<1x2592xf32, #tpu.memory_space<vmem>>, vector<1x32xf32>
    tpu.vector_store %arg9[%c0_29, %c672], %51 {strides = array<i32>} : memref<1x2592xf32, #tpu.memory_space<vmem>>, vector<1x32xf32>,
    %53 = vector.extract_strided_slice %8 {offsets = [22, 0], sizes = [1, 32], strides = [1, 1]} : vector<81x32xf32> to vector<1x32xf32>
    %c0_30 = arith.constant 0 : index
    %c704 = arith.constant 704 : index
    %54 = vector.load %arg9[%c0_30, %c704] : memref<1x2592xf32, #tpu.memory_space<vmem>>, vector<1x32xf32>
    tpu.vector_store %arg9[%c0_30, %c704], %53 {strides = array<i32>} : memref<1x2592xf32, #tpu.memory_space<vmem>>, vector<1x32xf32>,
    %55 = vector.extract_strided_slice %8 {offsets = [23, 0], sizes = [1, 32], strides = [1, 1]} : vector<81x32xf32> to vector<1x32xf32>
    %c0_31 = arith.constant 0 : index
    %c736 = arith.constant 736 : index
    %56 = vector.load %arg9[%c0_31, %c736] : memref<1x2592xf32, #tpu.memory_space<vmem>>, vector<1x32xf32>
    tpu.vector_store %arg9[%c0_31, %c736], %55 {strides = array<i32>} : memref<1x2592xf32, #tpu.memory_space<vmem>>, vector<1x32xf32>,
    %57 = vector.extract_strided_slice %8 {offsets = [24, 0], sizes = [1, 32], strides = [1, 1]} : vector<81x32xf32> to vector<1x32xf32>
    %c0_32 = arith.constant 0 : index
    %c768 = arith.constant 768 : index
    %58 = vector.load %arg9[%c0_32, %c768] : memref<1x2592xf32, #tpu.memory_space<vmem>>, vector<1x32xf32>
    tpu.vector_store %arg9[%c0_32, %c768], %57 {strides = array<i32>} : memref<1x2592xf32, #tpu.memory_space<vmem>>, vector<1x32xf32>,
    %59 = vector.extract_strided_slice %8 {offsets = [25, 0], sizes = [1, 32], strides = [1, 1]} : vector<81x32xf32> to vector<1x32xf32>
    %c0_33 = arith.constant 0 : index
    %c800 = arith.constant 800 : index
    %60 = vector.load %arg9[%c0_33, %c800] : memref<1x2592xf32, #tpu.memory_space<vmem>>, vector<1x32xf32>
    tpu.vector_store %arg9[%c0_33, %c800], %59 {strides = array<i32>} : memref<1x2592xf32, #tpu.memory_space<vmem>>, vector<1x32xf32>,
    %61 = vector.extract_strided_slice %8 {offsets = [26, 0], sizes = [1, 32], strides = [1, 1]} : vector<81x32xf32> to vector<1x32xf32>
    %c0_34 = arith.constant 0 : index
    %c832 = arith.constant 832 : index
    %62 = vector.load %arg9[%c0_34, %c832] : memref<1x2592xf32, #tpu.memory_space<vmem>>, vector<1x32xf32>
    tpu.vector_store %arg9[%c0_34, %c832], %61 {strides = array<i32>} : memref<1x2592xf32, #tpu.memory_space<vmem>>, vector<1x32xf32>,
    %63 = vector.extract_strided_slice %8 {offsets = [27, 0], sizes = [1, 32], strides = [1, 1]} : vector<81x32xf32> to vector<1x32xf32>
    %c0_35 = arith.constant 0 : index
    %c864 = arith.constant 864 : index
    %64 = vector.load %arg9[%c0_35, %c864] : memref<1x2592xf32, #tpu.memory_space<vmem>>, vector<1x32xf32>
    tpu.vector_store %arg9[%c0_35, %c864], %63 {strides = array<i32>} : memref<1x2592xf32, #tpu.memory_space<vmem>>, vector<1x32xf32>,
    %65 = vector.extract_strided_slice %8 {offsets = [28, 0], sizes = [1, 32], strides = [1, 1]} : vector<81x32xf32> to vector<1x32xf32>
    %c0_36 = arith.constant 0 : index
    %c896 = arith.constant 896 : index
    %66 = vector.load %arg9[%c0_36, %c896] : memref<1x2592xf32, #tpu.memory_space<vmem>>, vector<1x32xf32>
    tpu.vector_store %arg9[%c0_36, %c896], %65 {strides = array<i32>} : memref<1x2592xf32, #tpu.memory_space<vmem>>, vector<1x32xf32>,
    %67 = vector.extract_strided_slice %8 {offsets = [29, 0], sizes = [1, 32], strides = [1, 1]} : vector<81x32xf32> to vector<1x32xf32>
    %c0_37 = arith.constant 0 : index
    %c928 = arith.constant 928 : index
    %68 = vector.load %arg9[%c0_37, %c928] : memref<1x2592xf32, #tpu.memory_space<vmem>>, vector<1x32xf32>
    tpu.vector_store %arg9[%c0_37, %c928], %67 {strides = array<i32>} : memref<1x2592xf32, #tpu.memory_space<vmem>>, vector<1x32xf32>,
    %69 = vector.extract_strided_slice %8 {offsets = [30, 0], sizes = [1, 32], strides = [1, 1]} : vector<81x32xf32> to vector<1x32xf32>
    %c0_38 = arith.constant 0 : index
    %c960 = arith.constant 960 : index
    %70 = vector.load %arg9[%c0_38, %c960] : memref<1x2592xf32, #tpu.memory_space<vmem>>, vector<1x32xf32>
    tpu.vector_store %arg9[%c0_38, %c960], %69 {strides = array<i32>} : memref<1x2592xf32, #tpu.memory_space<vmem>>, vector<1x32xf32>,
    %71 = vector.extract_strided_slice %8 {offsets = [31, 0], sizes = [1, 32], strides = [1, 1]} : vector<81x32xf32> to vector<1x32xf32>
    %c0_39 = arith.constant 0 : index
    %c992 = arith.constant 992 : index
    %72 = vector.load %arg9[%c0_39, %c992] : memref<1x2592xf32, #tpu.memory_space<vmem>>, vector<1x32xf32>
    tpu.vector_store %arg9[%c0_39, %c992], %71 {strides = array<i32>} : memref<1x2592xf32, #tpu.memory_space<vmem>>, vector<1x32xf32>,
    %73 = vector.extract_strided_slice %8 {offsets = [32, 0], sizes = [1, 32], strides = [1, 1]} : vector<81x32xf32> to vector<1x32xf32>
    %c0_40 = arith.constant 0 : index
    %c1024 = arith.constant 1024 : index
    %74 = vector.load %arg9[%c0_40, %c1024] : memref<1x2592xf32, #tpu.memory_space<vmem>>, vector<1x32xf32>
    tpu.vector_store %arg9[%c0_40, %c1024], %73 {strides = array<i32>} : memref<1x2592xf32, #tpu.memory_space<vmem>>, vector<1x32xf32>,
    %75 = vector.extract_strided_slice %8 {offsets = [33, 0], sizes = [1, 32], strides = [1, 1]} : vector<81x32xf32> to vector<1x32xf32>
    %c0_41 = arith.constant 0 : index
    %c1056 = arith.constant 1056 : index
    %76 = vector.load %arg9[%c0_41, %c1056] : memref<1x2592xf32, #tpu.memory_space<vmem>>, vector<1x32xf32>
    tpu.vector_store %arg9[%c0_41, %c1056], %75 {strides = array<i32>} : memref<1x2592xf32, #tpu.memory_space<vmem>>, vector<1x32xf32>,
    %77 = vector.extract_strided_slice %8 {offsets = [34, 0], sizes = [1, 32], strides = [1, 1]} : vector<81x32xf32> to vector<1x32xf32>
    %c0_42 = arith.constant 0 : index
    %c1088 = arith.constant 1088 : index
    %78 = vector.load %arg9[%c0_42, %c1088] : memref<1x2592xf32, #tpu.memory_space<vmem>>, vector<1x32xf32>
    tpu.vector_store %arg9[%c0_42, %c1088], %77 {strides = array<i32>} : memref<1x2592xf32, #tpu.memory_space<vmem>>, vector<1x32xf32>,
    %79 = vector.extract_strided_slice %8 {offsets = [35, 0], sizes = [1, 32], strides = [1, 1]} : vector<81x32xf32> to vector<1x32xf32>
    %c0_43 = arith.constant 0 : index
    %c1120 = arith.constant 1120 : index
    %80 = vector.load %arg9[%c0_43, %c1120] : memref<1x2592xf32, #tpu.memory_space<vmem>>, vector<1x32xf32>
    tpu.vector_store %arg9[%c0_43, %c1120], %79 {strides = array<i32>} : memref<1x2592xf32, #tpu.memory_space<vmem>>, vector<1x32xf32>,
    %81 = vector.extract_strided_slice %8 {offsets = [36, 0], sizes = [1, 32], strides = [1, 1]} : vector<81x32xf32> to vector<1x32xf32>
    %c0_44 = arith.constant 0 : index
    %c1152 = arith.constant 1152 : index
    %82 = vector.load %arg9[%c0_44, %c1152] : memref<1x2592xf32, #tpu.memory_space<vmem>>, vector<1x32xf32>
    tpu.vector_store %arg9[%c0_44, %c1152], %81 {strides = array<i32>} : memref<1x2592xf32, #tpu.memory_space<vmem>>, vector<1x32xf32>,
    %83 = vector.extract_strided_slice %8 {offsets = [37, 0], sizes = [1, 32], strides = [1, 1]} : vector<81x32xf32> to vector<1x32xf32>
    %c0_45 = arith.constant 0 : index
    %c1184 = arith.constant 1184 : index
    %84 = vector.load %arg9[%c0_45, %c1184] : memref<1x2592xf32, #tpu.memory_space<vmem>>, vector<1x32xf32>
    tpu.vector_store %arg9[%c0_45, %c1184], %83 {strides = array<i32>} : memref<1x2592xf32, #tpu.memory_space<vmem>>, vector<1x32xf32>,
    %85 = vector.extract_strided_slice %8 {offsets = [38, 0], sizes = [1, 32], strides = [1, 1]} : vector<81x32xf32> to vector<1x32xf32>
    %c0_46 = arith.constant 0 : index
    %c1216 = arith.constant 1216 : index
    %86 = vector.load %arg9[%c0_46, %c1216] : memref<1x2592xf32, #tpu.memory_space<vmem>>, vector<1x32xf32>
    tpu.vector_store %arg9[%c0_46, %c1216], %85 {strides = array<i32>} : memref<1x2592xf32, #tpu.memory_space<vmem>>, vector<1x32xf32>,
    %87 = vector.extract_strided_slice %8 {offsets = [39, 0], sizes = [1, 32], strides = [1, 1]} : vector<81x32xf32> to vector<1x32xf32>
    %c0_47 = arith.constant 0 : index
    %c1248 = arith.constant 1248 : index
    %88 = vector.load %arg9[%c0_47, %c1248] : memref<1x2592xf32, #tpu.memory_space<vmem>>, vector<1x32xf32>
    tpu.vector_store %arg9[%c0_47, %c1248], %87 {strides = array<i32>} : memref<1x2592xf32, #tpu.memory_space<vmem>>, vector<1x32xf32>,
    %89 = vector.extract_strided_slice %8 {offsets = [40, 0], sizes = [1, 32], strides = [1, 1]} : vector<81x32xf32> to vector<1x32xf32>
    %c0_48 = arith.constant 0 : index
    %c1280 = arith.constant 1280 : index
    %90 = vector.load %arg9[%c0_48, %c1280] : memref<1x2592xf32, #tpu.memory_space<vmem>>, vector<1x32xf32>
    tpu.vector_store %arg9[%c0_48, %c1280], %89 {strides = array<i32>} : memref<1x2592xf32, #tpu.memory_space<vmem>>, vector<1x32xf32>,
    %91 = vector.extract_strided_slice %8 {offsets = [41, 0], sizes = [1, 32], strides = [1, 1]} : vector<81x32xf32> to vector<1x32xf32>
    %c0_49 = arith.constant 0 : index
    %c1312 = arith.constant 1312 : index
    %92 = vector.load %arg9[%c0_49, %c1312] : memref<1x2592xf32, #tpu.memory_space<vmem>>, vector<1x32xf32>
    tpu.vector_store %arg9[%c0_49, %c1312], %91 {strides = array<i32>} : memref<1x2592xf32, #tpu.memory_space<vmem>>, vector<1x32xf32>,
    %93 = vector.extract_strided_slice %8 {offsets = [42, 0], sizes = [1, 32], strides = [1, 1]} : vector<81x32xf32> to vector<1x32xf32>
    %c0_50 = arith.constant 0 : index
    %c1344 = arith.constant 1344 : index
    %94 = vector.load %arg9[%c0_50, %c1344] : memref<1x2592xf32, #tpu.memory_space<vmem>>, vector<1x32xf32>
    tpu.vector_store %arg9[%c0_50, %c1344], %93 {strides = array<i32>} : memref<1x2592xf32, #tpu.memory_space<vmem>>, vector<1x32xf32>,
    %95 = vector.extract_strided_slice %8 {offsets = [43, 0], sizes = [1, 32], strides = [1, 1]} : vector<81x32xf32> to vector<1x32xf32>
    %c0_51 = arith.constant 0 : index
    %c1376 = arith.constant 1376 : index
    %96 = vector.load %arg9[%c0_51, %c1376] : memref<1x2592xf32, #tpu.memory_space<vmem>>, vector<1x32xf32>
    tpu.vector_store %arg9[%c0_51, %c1376], %95 {strides = array<i32>} : memref<1x2592xf32, #tpu.memory_space<vmem>>, vector<1x32xf32>,
    %97 = vector.extract_strided_slice %8 {offsets = [44, 0], sizes = [1, 32], strides = [1, 1]} : vector<81x32xf32> to vector<1x32xf32>
    %c0_52 = arith.constant 0 : index
    %c1408 = arith.constant 1408 : index
    %98 = vector.load %arg9[%c0_52, %c1408] : memref<1x2592xf32, #tpu.memory_space<vmem>>, vector<1x32xf32>
    tpu.vector_store %arg9[%c0_52, %c1408], %97 {strides = array<i32>} : memref<1x2592xf32, #tpu.memory_space<vmem>>, vector<1x32xf32>,
    %99 = vector.extract_strided_slice %8 {offsets = [45, 0], sizes = [1, 32], strides = [1, 1]} : vector<81x32xf32> to vector<1x32xf32>
    %c0_53 = arith.constant 0 : index
    %c1440 = arith.constant 1440 : index
    %100 = vector.load %arg9[%c0_53, %c1440] : memref<1x2592xf32, #tpu.memory_space<vmem>>, vector<1x32xf32>
    tpu.vector_store %arg9[%c0_53, %c1440], %99 {strides = array<i32>} : memref<1x2592xf32, #tpu.memory_space<vmem>>, vector<1x32xf32>,
    %101 = vector.extract_strided_slice %8 {offsets = [46, 0], sizes = [1, 32], strides = [1, 1]} : vector<81x32xf32> to vector<1x32xf32>
    %c0_54 = arith.constant 0 : index
    %c1472 = arith.constant 1472 : index
    %102 = vector.load %arg9[%c0_54, %c1472] : memref<1x2592xf32, #tpu.memory_space<vmem>>, vector<1x32xf32>
    tpu.vector_store %arg9[%c0_54, %c1472], %101 {strides = array<i32>} : memref<1x2592xf32, #tpu.memory_space<vmem>>, vector<1x32xf32>,
    %103 = vector.extract_strided_slice %8 {offsets = [47, 0], sizes = [1, 32], strides = [1, 1]} : vector<81x32xf32> to vector<1x32xf32>
    %c0_55 = arith.constant 0 : index
    %c1504 = arith.constant 1504 : index
    %104 = vector.load %arg9[%c0_55, %c1504] : memref<1x2592xf32, #tpu.memory_space<vmem>>, vector<1x32xf32>
    tpu.vector_store %arg9[%c0_55, %c1504], %103 {strides = array<i32>} : memref<1x2592xf32, #tpu.memory_space<vmem>>, vector<1x32xf32>,
    %105 = vector.extract_strided_slice %8 {offsets = [48, 0], sizes = [1, 32], strides = [1, 1]} : vector<81x32xf32> to vector<1x32xf32>
    %c0_56 = arith.constant 0 : index
    %c1536 = arith.constant 1536 : index
    %106 = vector.load %arg9[%c0_56, %c1536] : memref<1x2592xf32, #tpu.memory_space<vmem>>, vector<1x32xf32>
    tpu.vector_store %arg9[%c0_56, %c1536], %105 {strides = array<i32>} : memref<1x2592xf32, #tpu.memory_space<vmem>>, vector<1x32xf32>,
    %107 = vector.extract_strided_slice %8 {offsets = [49, 0], sizes = [1, 32], strides = [1, 1]} : vector<81x32xf32> to vector<1x32xf32>
    %c0_57 = arith.constant 0 : index
    %c1568 = arith.constant 1568 : index
    %108 = vector.load %arg9[%c0_57, %c1568] : memref<1x2592xf32, #tpu.memory_space<vmem>>, vector<1x32xf32>
    tpu.vector_store %arg9[%c0_57, %c1568], %107 {strides = array<i32>} : memref<1x2592xf32, #tpu.memory_space<vmem>>, vector<1x32xf32>,
    %109 = vector.extract_strided_slice %8 {offsets = [50, 0], sizes = [1, 32], strides = [1, 1]} : vector<81x32xf32> to vector<1x32xf32>
    %c0_58 = arith.constant 0 : index
    %c1600 = arith.constant 1600 : index
    %110 = vector.load %arg9[%c0_58, %c1600] : memref<1x2592xf32, #tpu.memory_space<vmem>>, vector<1x32xf32>
    tpu.vector_store %arg9[%c0_58, %c1600], %109 {strides = array<i32>} : memref<1x2592xf32, #tpu.memory_space<vmem>>, vector<1x32xf32>,
    %111 = vector.extract_strided_slice %8 {offsets = [51, 0], sizes = [1, 32], strides = [1, 1]} : vector<81x32xf32> to vector<1x32xf32>
    %c0_59 = arith.constant 0 : index
    %c1632 = arith.constant 1632 : index
    %112 = vector.load %arg9[%c0_59, %c1632] : memref<1x2592xf32, #tpu.memory_space<vmem>>, vector<1x32xf32>
    tpu.vector_store %arg9[%c0_59, %c1632], %111 {strides = array<i32>} : memref<1x2592xf32, #tpu.memory_space<vmem>>, vector<1x32xf32>,
    %113 = vector.extract_strided_slice %8 {offsets = [52, 0], sizes = [1, 32], strides = [1, 1]} : vector<81x32xf32> to vector<1x32xf32>
    %c0_60 = arith.constant 0 : index
    %c1664 = arith.constant 1664 : index
    %114 = vector.load %arg9[%c0_60, %c1664] : memref<1x2592xf32, #tpu.memory_space<vmem>>, vector<1x32xf32>
    tpu.vector_store %arg9[%c0_60, %c1664], %113 {strides = array<i32>} : memref<1x2592xf32, #tpu.memory_space<vmem>>, vector<1x32xf32>,
    %115 = vector.extract_strided_slice %8 {offsets = [53, 0], sizes = [1, 32], strides = [1, 1]} : vector<81x32xf32> to vector<1x32xf32>
    %c0_61 = arith.constant 0 : index
    %c1696 = arith.constant 1696 : index
    %116 = vector.load %arg9[%c0_61, %c1696] : memref<1x2592xf32, #tpu.memory_space<vmem>>, vector<1x32xf32>
    tpu.vector_store %arg9[%c0_61, %c1696], %115 {strides = array<i32>} : memref<1x2592xf32, #tpu.memory_space<vmem>>, vector<1x32xf32>,
    %117 = vector.extract_strided_slice %8 {offsets = [54, 0], sizes = [1, 32], strides = [1, 1]} : vector<81x32xf32> to vector<1x32xf32>
    %c0_62 = arith.constant 0 : index
    %c1728 = arith.constant 1728 : index
    %118 = vector.load %arg9[%c0_62, %c1728] : memref<1x2592xf32, #tpu.memory_space<vmem>>, vector<1x32xf32>
    tpu.vector_store %arg9[%c0_62, %c1728], %117 {strides = array<i32>} : memref<1x2592xf32, #tpu.memory_space<vmem>>, vector<1x32xf32>,
    %119 = vector.extract_strided_slice %8 {offsets = [55, 0], sizes = [1, 32], strides = [1, 1]} : vector<81x32xf32> to vector<1x32xf32>
    %c0_63 = arith.constant 0 : index
    %c1760 = arith.constant 1760 : index
    %120 = vector.load %arg9[%c0_63, %c1760] : memref<1x2592xf32, #tpu.memory_space<vmem>>, vector<1x32xf32>
    tpu.vector_store %arg9[%c0_63, %c1760], %119 {strides = array<i32>} : memref<1x2592xf32, #tpu.memory_space<vmem>>, vector<1x32xf32>,
    %121 = vector.extract_strided_slice %8 {offsets = [56, 0], sizes = [1, 32], strides = [1, 1]} : vector<81x32xf32> to vector<1x32xf32>
    %c0_64 = arith.constant 0 : index
    %c1792 = arith.constant 1792 : index
    %122 = vector.load %arg9[%c0_64, %c1792] : memref<1x2592xf32, #tpu.memory_space<vmem>>, vector<1x32xf32>
    tpu.vector_store %arg9[%c0_64, %c1792], %121 {strides = array<i32>} : memref<1x2592xf32, #tpu.memory_space<vmem>>, vector<1x32xf32>,
    %123 = vector.extract_strided_slice %8 {offsets = [57, 0], sizes = [1, 32], strides = [1, 1]} : vector<81x32xf32> to vector<1x32xf32>
    %c0_65 = arith.constant 0 : index
    %c1824 = arith.constant 1824 : index
    %124 = vector.load %arg9[%c0_65, %c1824] : memref<1x2592xf32, #tpu.memory_space<vmem>>, vector<1x32xf32>
    tpu.vector_store %arg9[%c0_65, %c1824], %123 {strides = array<i32>} : memref<1x2592xf32, #tpu.memory_space<vmem>>, vector<1x32xf32>,
    %125 = vector.extract_strided_slice %8 {offsets = [58, 0], sizes = [1, 32], strides = [1, 1]} : vector<81x32xf32> to vector<1x32xf32>
    %c0_66 = arith.constant 0 : index
    %c1856 = arith.constant 1856 : index
    %126 = vector.load %arg9[%c0_66, %c1856] : memref<1x2592xf32, #tpu.memory_space<vmem>>, vector<1x32xf32>
    tpu.vector_store %arg9[%c0_66, %c1856], %125 {strides = array<i32>} : memref<1x2592xf32, #tpu.memory_space<vmem>>, vector<1x32xf32>,
    %127 = vector.extract_strided_slice %8 {offsets = [59, 0], sizes = [1, 32], strides = [1, 1]} : vector<81x32xf32> to vector<1x32xf32>
    %c0_67 = arith.constant 0 : index
    %c1888 = arith.constant 1888 : index
    %128 = vector.load %arg9[%c0_67, %c1888] : memref<1x2592xf32, #tpu.memory_space<vmem>>, vector<1x32xf32>
    tpu.vector_store %arg9[%c0_67, %c1888], %127 {strides = array<i32>} : memref<1x2592xf32, #tpu.memory_space<vmem>>, vector<1x32xf32>,
    %129 = vector.extract_strided_slice %8 {offsets = [60, 0], sizes = [1, 32], strides = [1, 1]} : vector<81x32xf32> to vector<1x32xf32>
    %c0_68 = arith.constant 0 : index
    %c1920 = arith.constant 1920 : index
    %130 = vector.load %arg9[%c0_68, %c1920] : memref<1x2592xf32, #tpu.memory_space<vmem>>, vector<1x32xf32>
    tpu.vector_store %arg9[%c0_68, %c1920], %129 {strides = array<i32>} : memref<1x2592xf32, #tpu.memory_space<vmem>>, vector<1x32xf32>,
    %131 = vector.extract_strided_slice %8 {offsets = [61, 0], sizes = [1, 32], strides = [1, 1]} : vector<81x32xf32> to vector<1x32xf32>
    %c0_69 = arith.constant 0 : index
    %c1952 = arith.constant 1952 : index
    %132 = vector.load %arg9[%c0_69, %c1952] : memref<1x2592xf32, #tpu.memory_space<vmem>>, vector<1x32xf32>
    tpu.vector_store %arg9[%c0_69, %c1952], %131 {strides = array<i32>} : memref<1x2592xf32, #tpu.memory_space<vmem>>, vector<1x32xf32>,
    %133 = vector.extract_strided_slice %8 {offsets = [62, 0], sizes = [1, 32], strides = [1, 1]} : vector<81x32xf32> to vector<1x32xf32>
    %c0_70 = arith.constant 0 : index
    %c1984 = arith.constant 1984 : index
    %134 = vector.load %arg9[%c0_70, %c1984] : memref<1x2592xf32, #tpu.memory_space<vmem>>, vector<1x32xf32>
    tpu.vector_store %arg9[%c0_70, %c1984], %133 {strides = array<i32>} : memref<1x2592xf32, #tpu.memory_space<vmem>>, vector<1x32xf32>,
    %135 = vector.extract_strided_slice %8 {offsets = [63, 0], sizes = [1, 32], strides = [1, 1]} : vector<81x32xf32> to vector<1x32xf32>
    %c0_71 = arith.constant 0 : index
    %c2016 = arith.constant 2016 : index
    %136 = vector.load %arg9[%c0_71, %c2016] : memref<1x2592xf32, #tpu.memory_space<vmem>>, vector<1x32xf32>
    tpu.vector_store %arg9[%c0_71, %c2016], %135 {strides = array<i32>} : memref<1x2592xf32, #tpu.memory_space<vmem>>, vector<1x32xf32>,
    %137 = vector.extract_strided_slice %8 {offsets = [64, 0], sizes = [1, 32], strides = [1, 1]} : vector<81x32xf32> to vector<1x32xf32>
    %c0_72 = arith.constant 0 : index
    %c2048 = arith.constant 2048 : index
    %138 = vector.load %arg9[%c0_72, %c2048] : memref<1x2592xf32, #tpu.memory_space<vmem>>, vector<1x32xf32>
    tpu.vector_store %arg9[%c0_72, %c2048], %137 {strides = array<i32>} : memref<1x2592xf32, #tpu.memory_space<vmem>>, vector<1x32xf32>,
    %139 = vector.extract_strided_slice %8 {offsets = [65, 0], sizes = [1, 32], strides = [1, 1]} : vector<81x32xf32> to vector<1x32xf32>
    %c0_73 = arith.constant 0 : index
    %c2080 = arith.constant 2080 : index
    %140 = vector.load %arg9[%c0_73, %c2080] : memref<1x2592xf32, #tpu.memory_space<vmem>>, vector<1x32xf32>
    tpu.vector_store %arg9[%c0_73, %c2080], %139 {strides = array<i32>} : memref<1x2592xf32, #tpu.memory_space<vmem>>, vector<1x32xf32>,
    %141 = vector.extract_strided_slice %8 {offsets = [66, 0], sizes = [1, 32], strides = [1, 1]} : vector<81x32xf32> to vector<1x32xf32>
    %c0_74 = arith.constant 0 : index
    %c2112 = arith.constant 2112 : index
    %142 = vector.load %arg9[%c0_74, %c2112] : memref<1x2592xf32, #tpu.memory_space<vmem>>, vector<1x32xf32>
    tpu.vector_store %arg9[%c0_74, %c2112], %141 {strides = array<i32>} : memref<1x2592xf32, #tpu.memory_space<vmem>>, vector<1x32xf32>,
    %143 = vector.extract_strided_slice %8 {offsets = [67, 0], sizes = [1, 32], strides = [1, 1]} : vector<81x32xf32> to vector<1x32xf32>
    %c0_75 = arith.constant 0 : index
    %c2144 = arith.constant 2144 : index
    %144 = vector.load %arg9[%c0_75, %c2144] : memref<1x2592xf32, #tpu.memory_space<vmem>>, vector<1x32xf32>
    tpu.vector_store %arg9[%c0_75, %c2144], %143 {strides = array<i32>} : memref<1x2592xf32, #tpu.memory_space<vmem>>, vector<1x32xf32>,
    %145 = vector.extract_strided_slice %8 {offsets = [68, 0], sizes = [1, 32], strides = [1, 1]} : vector<81x32xf32> to vector<1x32xf32>
    %c0_76 = arith.constant 0 : index
    %c2176 = arith.constant 2176 : index
    %146 = vector.load %arg9[%c0_76, %c2176] : memref<1x2592xf32, #tpu.memory_space<vmem>>, vector<1x32xf32>
    tpu.vector_store %arg9[%c0_76, %c2176], %145 {strides = array<i32>} : memref<1x2592xf32, #tpu.memory_space<vmem>>, vector<1x32xf32>,
    %147 = vector.extract_strided_slice %8 {offsets = [69, 0], sizes = [1, 32], strides = [1, 1]} : vector<81x32xf32> to vector<1x32xf32>
    %c0_77 = arith.constant 0 : index
    %c2208 = arith.constant 2208 : index
    %148 = vector.load %arg9[%c0_77, %c2208] : memref<1x2592xf32, #tpu.memory_space<vmem>>, vector<1x32xf32>
    tpu.vector_store %arg9[%c0_77, %c2208], %147 {strides = array<i32>} : memref<1x2592xf32, #tpu.memory_space<vmem>>, vector<1x32xf32>,
    %149 = vector.extract_strided_slice %8 {offsets = [70, 0], sizes = [1, 32], strides = [1, 1]} : vector<81x32xf32> to vector<1x32xf32>
    %c0_78 = arith.constant 0 : index
    %c2240 = arith.constant 2240 : index
    %150 = vector.load %arg9[%c0_78, %c2240] : memref<1x2592xf32, #tpu.memory_space<vmem>>, vector<1x32xf32>
    tpu.vector_store %arg9[%c0_78, %c2240], %149 {strides = array<i32>} : memref<1x2592xf32, #tpu.memory_space<vmem>>, vector<1x32xf32>,
    %151 = vector.extract_strided_slice %8 {offsets = [71, 0], sizes = [1, 32], strides = [1, 1]} : vector<81x32xf32> to vector<1x32xf32>
    %c0_79 = arith.constant 0 : index
    %c2272 = arith.constant 2272 : index
    %152 = vector.load %arg9[%c0_79, %c2272] : memref<1x2592xf32, #tpu.memory_space<vmem>>, vector<1x32xf32>
    tpu.vector_store %arg9[%c0_79, %c2272], %151 {strides = array<i32>} : memref<1x2592xf32, #tpu.memory_space<vmem>>, vector<1x32xf32>,
    %153 = vector.extract_strided_slice %8 {offsets = [72, 0], sizes = [1, 32], strides = [1, 1]} : vector<81x32xf32> to vector<1x32xf32>
    %c0_80 = arith.constant 0 : index
    %c2304 = arith.constant 2304 : index
    %154 = vector.load %arg9[%c0_80, %c2304] : memref<1x2592xf32, #tpu.memory_space<vmem>>, vector<1x32xf32>
    tpu.vector_store %arg9[%c0_80, %c2304], %153 {strides = array<i32>} : memref<1x2592xf32, #tpu.memory_space<vmem>>, vector<1x32xf32>,
    %155 = vector.extract_strided_slice %8 {offsets = [73, 0], sizes = [1, 32], strides = [1, 1]} : vector<81x32xf32> to vector<1x32xf32>
    %c0_81 = arith.constant 0 : index
    %c2336 = arith.constant 2336 : index
    %156 = vector.load %arg9[%c0_81, %c2336] : memref<1x2592xf32, #tpu.memory_space<vmem>>, vector<1x32xf32>
    tpu.vector_store %arg9[%c0_81, %c2336], %155 {strides = array<i32>} : memref<1x2592xf32, #tpu.memory_space<vmem>>, vector<1x32xf32>,
    %157 = vector.extract_strided_slice %8 {offsets = [74, 0], sizes = [1, 32], strides = [1, 1]} : vector<81x32xf32> to vector<1x32xf32>
    %c0_82 = arith.constant 0 : index
    %c2368 = arith.constant 2368 : index
    %158 = vector.load %arg9[%c0_82, %c2368] : memref<1x2592xf32, #tpu.memory_space<vmem>>, vector<1x32xf32>
    tpu.vector_store %arg9[%c0_82, %c2368], %157 {strides = array<i32>} : memref<1x2592xf32, #tpu.memory_space<vmem>>, vector<1x32xf32>,
    %159 = vector.extract_strided_slice %8 {offsets = [75, 0], sizes = [1, 32], strides = [1, 1]} : vector<81x32xf32> to vector<1x32xf32>
    %c0_83 = arith.constant 0 : index
    %c2400 = arith.constant 2400 : index
    %160 = vector.load %arg9[%c0_83, %c2400] : memref<1x2592xf32, #tpu.memory_space<vmem>>, vector<1x32xf32>
    tpu.vector_store %arg9[%c0_83, %c2400], %159 {strides = array<i32>} : memref<1x2592xf32, #tpu.memory_space<vmem>>, vector<1x32xf32>,
    %161 = vector.extract_strided_slice %8 {offsets = [76, 0], sizes = [1, 32], strides = [1, 1]} : vector<81x32xf32> to vector<1x32xf32>
    %c0_84 = arith.constant 0 : index
    %c2432 = arith.constant 2432 : index
    %162 = vector.load %arg9[%c0_84, %c2432] : memref<1x2592xf32, #tpu.memory_space<vmem>>, vector<1x32xf32>
    tpu.vector_store %arg9[%c0_84, %c2432], %161 {strides = array<i32>} : memref<1x2592xf32, #tpu.memory_space<vmem>>, vector<1x32xf32>,
    %163 = vector.extract_strided_slice %8 {offsets = [77, 0], sizes = [1, 32], strides = [1, 1]} : vector<81x32xf32> to vector<1x32xf32>
    %c0_85 = arith.constant 0 : index
    %c2464 = arith.constant 2464 : index
    %164 = vector.load %arg9[%c0_85, %c2464] : memref<1x2592xf32, #tpu.memory_space<vmem>>, vector<1x32xf32>
    tpu.vector_store %arg9[%c0_85, %c2464], %163 {strides = array<i32>} : memref<1x2592xf32, #tpu.memory_space<vmem>>, vector<1x32xf32>,
    %165 = vector.extract_strided_slice %8 {offsets = [78, 0], sizes = [1, 32], strides = [1, 1]} : vector<81x32xf32> to vector<1x32xf32>
    %c0_86 = arith.constant 0 : index
    %c2496 = arith.constant 2496 : index
    %166 = vector.load %arg9[%c0_86, %c2496] : memref<1x2592xf32, #tpu.memory_space<vmem>>, vector<1x32xf32>
    tpu.vector_store %arg9[%c0_86, %c2496], %165 {strides = array<i32>} : memref<1x2592xf32, #tpu.memory_space<vmem>>, vector<1x32xf32>,
    %167 = vector.extract_strided_slice %8 {offsets = [79, 0], sizes = [1, 32], strides = [1, 1]} : vector<81x32xf32> to vector<1x32xf32>
    %c0_87 = arith.constant 0 : index
    %c2528 = arith.constant 2528 : index
    %168 = vector.load %arg9[%c0_87, %c2528] : memref<1x2592xf32, #tpu.memory_space<vmem>>, vector<1x32xf32>
    tpu.vector_store %arg9[%c0_87, %c2528], %167 {strides = array<i32>} : memref<1x2592xf32, #tpu.memory_space<vmem>>, vector<1x32xf32>,
    %169 = vector.extract_strided_slice %8 {offsets = [80, 0], sizes = [1, 32], strides = [1, 1]} : vector<81x32xf32> to vector<1x32xf32>
    %c0_88 = arith.constant 0 : index
    %c2560 = arith.constant 2560 : index
    %170 = vector.load %arg9[%c0_88, %c2560] : memref<1x2592xf32, #tpu.memory_space<vmem>>, vector<1x32xf32>
    tpu.vector_store %arg9[%c0_88, %c2560], %169 {strides = array<i32>} : memref<1x2592xf32, #tpu.memory_space<vmem>>, vector<1x32xf32>,
    %c0_89 = arith.constant 0 : index
    %c0_90 = arith.constant 0 : index
    %171 = vector.load %arg9[%c0_89, %c0_90] : memref<1x2592xf32, #tpu.memory_space<vmem>>, vector<1x2592xf32>
    %172 = arith.truncf %171 : vector<1x2592xf32> to vector<1x2592xbf16>
    %c0_91 = arith.constant 0 : index
    %c0_92 = arith.constant 0 : index
    %173 = vector.load %arg4[%c0_91, %c0_92] : memref<2592x256xbf16, #tpu.memory_space<vmem>>, vector<2592x256xbf16>
    %cst_93 = arith.constant dense<0.000000e+00> : vector<1x256xf32>
    %174 = tpu.matmul %172, %173, %cst_93 {dimension_numbers = #tpu.dot_dimension_numbers<[1], [0], [0], [1], [0, 0, 1, 1], [], []>} : vector<1x2592xbf16>, vector<2592x256xbf16>, vector<1x256xf32> -> vector<1x256xf32>
    %c0_94 = arith.constant 0 : index
    %c0_95 = arith.constant 0 : index
    %175 = vector.load %arg5[%c0_94, %c0_95] : memref<1x256xf32, #tpu.memory_space<vmem>>, vector<1x256xf32>
    %176 = arith.addf %174, %175 : vector<1x256xf32>
    %cst_96 = arith.constant 0.000000e+00 : f32
    %177 = vector.broadcast %cst_96 : f32 to vector<1x256xf32>
    %178 = arith.maximumf %176, %177 : vector<1x256xf32>
    %179 = arith.truncf %178 : vector<1x256xf32> to vector<1x256xbf16>
    %c0_97 = arith.constant 0 : index
    %c0_98 = arith.constant 0 : index
    %180 = vector.load %arg6[%c0_97, %c0_98] : memref<256x128xbf16, #tpu.memory_space<vmem>>, vector<256x128xbf16>
    %cst_99 = arith.constant dense<0.000000e+00> : vector<1x128xf32>
    %181 = tpu.matmul %179, %180, %cst_99 {dimension_numbers = #tpu.dot_dimension_numbers<[1], [0], [0], [1], [0, 0, 1, 1], [], []>} : vector<1x256xbf16>, vector<256x128xbf16>, vector<1x128xf32> -> vector<1x128xf32>
    %c0_100 = arith.constant 0 : index
    %c0_101 = arith.constant 0 : index
    %182 = vector.load %arg7[%c0_100, %c0_101] : memref<1x128xf32, #tpu.memory_space<vmem>>, vector<1x128xf32>
    %183 = arith.addf %181, %182 : vector<1x128xf32>
    %c0_102 = arith.constant 0 : index
    %c0_103 = arith.constant 0 : index
    %c0_104 = arith.constant 0 : index
    %184 = vector.load %arg8[%c0_102, %c0_103, %c0_104] : memref<1x1x128xf32, #tpu.memory_space<vmem>>, vector<1x1x128xf32>
    %185 = vector.shape_cast %184 : vector<1x1x128xf32> to vector<1x128xf32>
    %186 = vector.shape_cast %183 : vector<1x128xf32> to vector<1x1x128xf32>
    tpu.vector_store %arg8[%c0_102, %c0_103, %c0_104], %186 {strides = array<i32>} : memref<1x1x128xf32, #tpu.memory_space<vmem>>, vector<1x1x128xf32>,
    return
  }
  func.func @transform_0(%arg0: i32) -> (i32, i32, i32) {
    %c0_i32 = arith.constant 0 : i32
    %c0_i32_0 = arith.constant 0 : i32
    %c0_i32_1 = arith.constant 0 : i32
    return %arg0, %c0_i32, %c0_i32_0 : i32, i32, i32
  }
  func.func @transform_1(%arg0: i32) -> (i32, i32) {
    %c0_i32 = arith.constant 0 : i32
    %c0_i32_0 = arith.constant 0 : i32
    %c0_i32_1 = arith.constant 0 : i32
    return %c0_i32, %c0_i32_0 : i32, i32
  }
  func.func @transform_2(%arg0: i32) -> (i32, i32) {
    %c0_i32 = arith.constant 0 : i32
    %c0_i32_0 = arith.constant 0 : i32
    %c0_i32_1 = arith.constant 0 : i32
    return %c0_i32, %c0_i32_0 : i32, i32
  }
  func.func @transform_3(%arg0: i32) -> (i32, i32) {
    %c0_i32 = arith.constant 0 : i32
    %c0_i32_0 = arith.constant 0 : i32
    %c0_i32_1 = arith.constant 0 : i32
    return %c0_i32, %c0_i32_0 : i32, i32
  }
  func.func @transform_4(%arg0: i32) -> (i32, i32) {
    %c0_i32 = arith.constant 0 : i32
    %c0_i32_0 = arith.constant 0 : i32
    %c0_i32_1 = arith.constant 0 : i32
    return %c0_i32, %c0_i32_0 : i32, i32
  }
  func.func @transform_5(%arg0: i32) -> (i32, i32) {
    %c0_i32 = arith.constant 0 : i32
    %c0_i32_0 = arith.constant 0 : i32
    %c0_i32_1 = arith.constant 0 : i32
    return %c0_i32, %c0_i32_0 : i32, i32
  }
  func.func @transform_6(%arg0: i32) -> (i32, i32) {
    %c0_i32 = arith.constant 0 : i32
    %c0_i32_0 = arith.constant 0 : i32
    %c0_i32_1 = arith.constant 0 : i32
    return %c0_i32, %c0_i32_0 : i32, i32
  }
  func.func @transform_7(%arg0: i32) -> (i32, i32, i32) {
    %c0_i32 = arith.constant 0 : i32
    %c0_i32_0 = arith.constant 0 : i32
    %c0_i32_1 = arith.constant 0 : i32
    return %arg0, %c0_i32, %c0_i32_0 : i32, i32, i32
  }
}

</mosaic_0001>

<llo_original>
// kernel: dqn_forward.2
$region0: #{dqn_forward.2}
  #allocation0 [shape = 'u32[]', space=smem, size = 0x4, offset = 0x4, fixed_abs, tag = 'smem constant byte address 0x4 - core index']
  #allocation1 [shape = 'u32[144,128]{1,0:T(1,128)}', space=vmem, size = 0x12000, scoped, tag = 'internal scratch']
  %s0 = inlined_call_operand.vmem [shape: bf16[800,256], index: 0, kind: input, shape index: {}]
  %s1 = inlined_call_operand.vmem [shape: bf16[256,16], index: 1, kind: input, shape index: {}]
  %s2 = inlined_call_operand.vmem [shape: f32[1,16], index: 2, kind: input, shape index: {}]
  %s3 = inlined_call_operand.vmem [shape: bf16[800,16], index: 3, kind: output, shape index: {}]
  %s4 = sld [smem:[#allocation0]]
  $region45: #{dqn_forward.2} parent=0
    _
  %s6 = ssub.s32 1, %s4
  %s7 = scalar_select 0, %s6, %s4
  loop: start=0, step=1, limit=4
  $region2: #{dqn_forward.2} parent=0 // loop_pre_header
    _
  $region3: #{dqn_forward.2} parent=0 // loop_header
    %s9 = sphi 0, %s13
    %p10 = scmp.ge.s32.totalorder %s9, 4
    %s19 = sphi 0, %s21
    %s22 = sphi 0, %s19
    %s23 = sphi 0, %s22
    %s39 = sphi 0, %s23
    %s43 = sphi 0, %s43
    %s45 = sphi 0, %s43
    %s46 = sphi 0, %s45
    %s60 = sphi 0, %s46
    %s64 = sphi 0, %s64
    %s66 = sphi 0, %s64
    %s67 = sphi 0, %s66
    %s81 = sphi 0, %s67
    %s87 = sphi 0, %s89
    %s90 = sphi 0, %s87
    %s91 = sphi 0, %s90
    %s107 = sphi 0, %s91
  $region4: #{dqn_forward.2} parent=0 // loop_header_branch
    %12 = sbr.rel (%p10) target = $region8
  $region5: #{dqn_forward.2} parent=0 // loop_body
    %s14 = ssub.s32 %s9, 1
    %s15 = ssub.s32 %s9, 2
    %s16 = sadd.s32 %s9, 1
    %s17 = ssub.s32 %s9, %s16
    %p18 = scmp.eq.s32.totalorder %s17, 0
    %s20 = sadd.s32 %s19, 1
    %s21 = scalar_select %p18, %s19, %s20
    %p24 = pneg %p18
    %p25 = scmp.eq.s32.totalorder %s9, 1
    %p26 = por %p24, %p25
    %p27 = scmp.ne.s32.totalorder %s19, %s22
    %p28 = scmp.eq.s32.totalorder %s9, 0
    %p29 = por %p27, %p28
    %p30 = scmp.ne.s32.totalorder %s19, %s22
    %p31 = scmp.eq.s32.totalorder %s14, 1
    %p32 = por %p30, %p31
    %p33 = scmp.ne.s32.totalorder %s22, %s23
    %p34 = scmp.eq.s32.totalorder %s14, 0
    %p35 = por %p33, %p34
    %p36 = scmp.ne.s32.totalorder %s22, %s23
    %p37 = scmp.eq.s32.totalorder %s15, 1
    %p38 = por %p36, %p37
    %p40 = scmp.ne.s32.totalorder %s23, %s39
    %p41 = scmp.eq.s32.totalorder %s15, 0
    %p42 = por %p40, %p41
    %s44 = sadd.s32 %s43, 1
    %p47 = scmp.eq.s32.totalorder %s9, 1
    %p48 = scmp.ne.s32.totalorder %s43, %s45
    %p49 = scmp.eq.s32.totalorder %s9, 0
    %p50 = por %p48, %p49
    %p51 = scmp.ne.s32.totalorder %s43, %s45
    %p52 = scmp.eq.s32.totalorder %s14, 1
    %p53 = por %p51, %p52
    %p54 = scmp.ne.s32.totalorder %s45, %s46
    %p55 = scmp.eq.s32.totalorder %s14, 0
    %p56 = por %p54, %p55
    %p57 = scmp.ne.s32.totalorder %s45, %s46
    %p58 = scmp.eq.s32.totalorder %s15, 1
    %p59 = por %p57, %p58
    %p61 = scmp.ne.s32.totalorder %s46, %s60
    %p62 = scmp.eq.s32.totalorder %s15, 0
    %p63 = por %p61, %p62
    %s65 = sadd.s32 %s64, 1
    %p68 = scmp.eq.s32.totalorder %s9, 1
    %p69 = scmp.ne.s32.totalorder %s64, %s66
    %p70 = scmp.eq.s32.totalorder %s9, 0
    %p71 = por %p69, %p70
    %p72 = scmp.ne.s32.totalorder %s64, %s66
    %p73 = scmp.eq.s32.totalorder %s14, 1
    %p74 = por %p72, %p73
    %p75 = scmp.ne.s32.totalorder %s66, %s67
    %p76 = scmp.eq.s32.totalorder %s14, 0
    %p77 = por %p75, %p76
    %p78 = scmp.ne.s32.totalorder %s66, %s67
    %p79 = scmp.eq.s32.totalorder %s15, 1
    %p80 = por %p78, %p79
    %p82 = scmp.ne.s32.totalorder %s67, %s81
    %p83 = scmp.eq.s32.totalorder %s15, 0
    %p84 = por %p82, %p83
    %s85 = ssub.s32 %s9, %s16
    %p86 = scmp.eq.s32.totalorder %s85, 0
    %s88 = sadd.s32 %s87, 1
    %s89 = scalar_select %p86, %s87, %s88
    %p92 = pneg %p86
    %p93 = scmp.eq.s32.totalorder %s9, 1
    %p94 = por %p92, %p93
    %p95 = scmp.ne.s32.totalorder %s87, %s90
    %p96 = scmp.eq.s32.totalorder %s9, 0
    %p97 = por %p95, %p96
    %p98 = scmp.ne.s32.totalorder %s87, %s90
    %p99 = scmp.eq.s32.totalorder %s14, 1
    %p100 = por %p98, %p99
    %p101 = scmp.ne.s32.totalorder %s90, %s91
    %p102 = scmp.eq.s32.totalorder %s14, 0
    %p103 = por %p101, %p102
    %p104 = scmp.ne.s32.totalorder %s90, %s91
    %p105 = scmp.eq.s32.totalorder %s15, 1
    %p106 = por %p104, %p105
    %p108 = scmp.ne.s32.totalorder %s91, %s107
    %p109 = scmp.eq.s32.totalorder %s15, 0
    %p110 = por %p108, %p109
    %p111 = scmp.le.s32.totalorder 1, %s9
    %p112 = scmp.lt.s32.totalorder %s9, 3
    %p113 = pnand %p111, %p112
    %p114 = pneg %p113
    // Predicated region
    $region9: #{dqn_forward.2} parent=5 // pred_check
      _
    $region10: #{dqn_forward.2} parent=5 // pred_check_branch
      %116 = sbr.rel (%p113) target = $region12
    $region11: #{dqn_forward.2} parent=5 // pred_region
      %s117 = ssub.s32 %s9, 1
      // Predicated region
      $region13: #{dqn_forward.2} parent=11 // pred_check
        %p118 = pneg %p56
      $region14: #{dqn_forward.2} parent=11 // pred_check_branch
        %120 = sbr.rel (%p118) target = $region16
      $region15: #{dqn_forward.2} parent=11 // pred_region
        _
      $region16: #{dqn_forward.2} parent=11 // pred_fallthru
        _
      // Predicated region
      $region17: #{dqn_forward.2} parent=11 // pred_check
        %p121 = pneg %p77
      $region18: #{dqn_forward.2} parent=11 // pred_check_branch
        %123 = sbr.rel (%p121) target = $region20
      $region19: #{dqn_forward.2} parent=11 // pred_region
        _
      $region20: #{dqn_forward.2} parent=11 // pred_fallthru
        _
    $region12: #{dqn_forward.2} parent=5 // pred_fallthru
      _
    %p124 = scmp.lt.s32.totalorder %s9, 2
    // Predicated region
    $region21: #{dqn_forward.2} parent=5 // pred_check
      %p125 = pneg %p124
    $region22: #{dqn_forward.2} parent=5 // pred_check_branch
      %127 = sbr.rel (%p125) target = $region24
    $region23: #{dqn_forward.2} parent=5 // pred_region
      // Predicated region
      $region25: #{dqn_forward.2} parent=23 // pred_check
        %p128 = pneg %p29
      $region26: #{dqn_forward.2} parent=23 // pred_check_branch
        %130 = sbr.rel (%p128) target = $region28
      $region27: #{dqn_forward.2} parent=23 // pred_region
        %s131 = smul.u32 50, %s9
        %p132 = scmp.lt.s32.totalorder %s131, 99
        %s133 = scalar_select %p132, %s131, 99
        %s134 = smul.addr %s133, 2
        %s135 = smul.addr %s134, 4
        %s136 = scalar_lea.vmem %s0, %s135
        %s137 = smul.u32 50, %s9
      $region28: #{dqn_forward.2} parent=23 // pred_fallthru
        _
    $region24: #{dqn_forward.2} parent=5 // pred_fallthru
      _
    %p138 = scmp.le.s32.totalorder 1, %s9
    %p139 = scmp.lt.s32.totalorder %s9, 3
    %p140 = pnand %p138, %p139
    %p141 = pneg %p140
    // Predicated region
    $region29: #{dqn_forward.2} parent=5 // pred_check
      _
    $region30: #{dqn_forward.2} parent=5 // pred_check_branch
      %143 = sbr.rel (%p140) target = $region32
    $region31: #{dqn_forward.2} parent=5 // pred_region
      %s144 = ssub.s32 %s9, 1
      %s145 = smul.u32 50, %s14
      %p146 = scmp.lt.s32.totalorder %s145, 99
      %s147 = scalar_select %p146, %s145, 99
      %s148 = smul.addr %s147, 2
      %s149 = smul.addr %s148, 4
      %s150 = scalar_lea.vmem %s0, %s149
      %p151 = pneg %p35
      %p152 = pneg %p32
      %p153 = pneg %p56
      %p154 = pneg %p53
      %p155 = pneg %p77
      %p156 = pneg %p74
      %p157 = pneg %p103
      %p158 = pneg %p100
      %s159 = smul.u32 50, %s14
      %p160 = scmp.lt.s32.totalorder %s159, 99
      %s161 = scalar_select %p160, %s159, 99
      %s162 = smul.addr %s161, 4
      %s163 = scalar_lea.vmem %s3, %s162
      %s164 = smul.u32 50, %s14
      %p165 = scmp.lt.s32.totalorder %s164, 99
      %s166 = scalar_select %p165, %s164, 99
      %s167 = smul.addr %s166, 2
      %s168 = smul.addr %s167, 4
      %s169 = scalar_lea.vmem %s0, %s168
      %s170 = smul.u32 50, %s14
      %s171 = smul.u32 50, %s14
      %p172 = scmp.lt.s32.totalorder %s171, 99
      %s173 = scalar_select %p172, %s171, 99
      %s174 = smul.addr %s173, 4
      %s175 = scalar_lea.vmem %s3, %s174
      %s176 = smul.u32 50, %s14
      %v178 = vld [vmem:[%s169] sm:$0xff]
      %v179 = vld [vmem:[%s169 + $0x8] sm:$0xff]
      %v180 = vld [vmem:[%s169 + $0x10] sm:$0xff]
      %v181 = vld [vmem:[%s169 + $0x18] sm:$0xff]
      %v182 = vld [vmem:[%s169 + $0x20] sm:$0xff]
      %v183 = vld [vmem:[%s169 + $0x28] sm:$0xff]
      %v184 = vld [vmem:[%s169 + $0x30] sm:$0xff]
      %v185 = vld [vmem:[%s169 + $0x38] sm:$0xff]
      %v186 = vld [vmem:[%s169 + $0x40] sm:$0xff]
      %v187 = vld [vmem:[%s169 + $0x48] sm:$0xff]
      %v188 = vld [vmem:[%s169 + $0x50] sm:$0xff]
      %v189 = vld [vmem:[%s169 + $0x58] sm:$0xff]
      %v190 = vld [vmem:[%s169 + $0x60] sm:$0xff]
      %v191 = vld [vmem:[%s169 + $0x68] sm:$0xff]
      %v192 = vld [vmem:[%s169 + $0x70] sm:$0xff]
      %v193 = vld [vmem:[%s169 + $0x78] sm:$0xff]
      %v194 = vld [vmem:[%s169 + $0x80] sm:$0xff]
      %v195 = vld [vmem:[%s169 + $0x88] sm:$0xff]
      %v196 = vld [vmem:[%s169 + $0x90] sm:$0xff]
      %v197 = vld [vmem:[%s169 + $0x98] sm:$0xff]
      %v198 = vld [vmem:[%s169 + $0xa0] sm:$0xff]
      %v199 = vld [vmem:[%s169 + $0xa8] sm:$0xff]
      %v200 = vld [vmem:[%s169 + $0xb0] sm:$0xff]
      %v201 = vld [vmem:[%s169 + $0xb8] sm:$0xff]
      %v202 = vld [vmem:[%s169 + $0xc0] sm:$0xff]
      %v203 = vld [vmem:[%s169 + $0xc8] sm:$0xff]
      %v204 = vld [vmem:[%s169 + $0xd0] sm:$0xff]
      %v205 = vld [vmem:[%s169 + $0xd8] sm:$0xff]
      %v206 = vld [vmem:[%s169 + $0xe0] sm:$0xff]
      %v207 = vld [vmem:[%s169 + $0xe8] sm:$0xff]
      %v208 = vld [vmem:[%s169 + $0xf0] sm:$0xff]
      %v209 = vld [vmem:[%s169 + $0xf8] sm:$0xff]
      %v210 = vld [vmem:[%s169 + $0x100] sm:$0xff]
      %v211 = vld [vmem:[%s169 + $0x108] sm:$0xff]
      %v212 = vld [vmem:[%s169 + $0x110] sm:$0xff]
      %v213 = vld [vmem:[%s169 + $0x118] sm:$0xff]
      %v214 = vld [vmem:[%s169 + $0x120] sm:$0xff]
      %v215 = vld [vmem:[%s169 + $0x128] sm:$0xff]
      %v216 = vld [vmem:[%s169 + $0x130] sm:$0xff]
      %v217 = vld [vmem:[%s169 + $0x138] sm:$0xff]
      %v218 = vld [vmem:[%s169 + $0x140] sm:$0xff]
      %v219 = vld [vmem:[%s169 + $0x148] sm:$0xff]
      %v220 = vld [vmem:[%s169 + $0x150] sm:$0xff]
      %v221 = vld [vmem:[%s169 + $0x158] sm:$0xff]
      %v222 = vld [vmem:[%s169 + $0x160] sm:$0xff]
      %v223 = vld [vmem:[%s169 + $0x168] sm:$0xff]
      %v224 = vld [vmem:[%s169 + $0x170] sm:$0xff]
      %v225 = vld [vmem:[%s169 + $0x178] sm:$0xff]
      %v226 = vld [vmem:[%s169 + $0x180] sm:$0xff]
      %v227 = vld [vmem:[%s169 + $0x188] sm:$0xff]
      %v228 = vld [vmem:[%s1] sm:$0xf]
      %v229 = vld [vmem:[%s1 + $0x4] sm:$0xf]
      %v230 = vld [vmem:[%s1 + $0x8] sm:$0xf]
      %v231 = vld [vmem:[%s1 + $0xc] sm:$0xf]
      %v232 = vld [vmem:[%s1 + $0x10] sm:$0xf]
      %v233 = vld [vmem:[%s1 + $0x14] sm:$0xf]
      %v234 = vld [vmem:[%s1 + $0x18] sm:$0xf]
      %v235 = vld [vmem:[%s1 + $0x1c] sm:$0xf]
      %v236 = vld [vmem:[%s1 + $0x20] sm:$0xf]
      %v237 = vld [vmem:[%s1 + $0x24] sm:$0xf]
      %v238 = vld [vmem:[%s1 + $0x28] sm:$0xf]
      %v239 = vld [vmem:[%s1 + $0x2c] sm:$0xf]
      %v240 = vld [vmem:[%s1 + $0x30] sm:$0xf]
      %v241 = vld [vmem:[%s1 + $0x34] sm:$0xf]
      %v242 = vld [vmem:[%s1 + $0x38] sm:$0xf]
      %v243 = vld [vmem:[%s1 + $0x3c] sm:$0xf]
      %v244 = vld [vmem:[%s1 + $0x40] sm:$0xf]
      %v245 = vld [vmem:[%s1 + $0x44] sm:$0xf]
      %v246 = vld [vmem:[%s1 + $0x48] sm:$0xf]
      %v247 = vld [vmem:[%s1 + $0x4c] sm:$0xf]
      %v248 = vld [vmem:[%s1 + $0x50] sm:$0xf]
      %v249 = vld [vmem:[%s1 + $0x54] sm:$0xf]
      %v250 = vld [vmem:[%s1 + $0x58] sm:$0xf]
      %v251 = vld [vmem:[%s1 + $0x5c] sm:$0xf]
      %v252 = vld [vmem:[%s1 + $0x60] sm:$0xf]
      %v253 = vld [vmem:[%s1 + $0x64] sm:$0xf]
      %v254 = vld [vmem:[%s1 + $0x68] sm:$0xf]
      %v255 = vld [vmem:[%s1 + $0x6c] sm:$0xf]
      %v256 = vld [vmem:[%s1 + $0x70] sm:$0xf]
      %v257 = vld [vmem:[%s1 + $0x74] sm:$0xf]
      %v258 = vld [vmem:[%s1 + $0x78] sm:$0xf]
      %v259 = vld [vmem:[%s1 + $0x7c] sm:$0xf]
      %v260 = vld [vmem:[%s2] sm:$0x1]
      %v262 = vlaneseq
      %v263 = vshrl.u32 %v262, 7
      %v264 = vsub.s32 0, %v263
      %v265 = vrot.slane %v260, %v264
      %v317 = vunpack.c.l.b16 %v178
      %v318 = vunpack.c.h.b16 %v178
      %v319 = vunpack.c.l.b16 %v179
      %v320 = vunpack.c.h.b16 %v179
      %v321 = vunpack.c.l.b16 %v180
      %v322 = vunpack.c.h.b16 %v180
      %v323 = vunpack.c.l.b16 %v181
      %v324 = vunpack.c.h.b16 %v181
      %v325 = vunpack.c.l.b16 %v182
      %v326 = vunpack.c.h.b16 %v182
      %v327 = vunpack.c.l.b16 %v183
      %v328 = vunpack.c.h.b16 %v183
      %v329 = vunpack.c.l.b16 %v184
      %v330 = vunpack.c.h.b16 %v184
      %v331 = vunpack.c.l.b16 %v185
      %v332 = vunpack.c.h.b16 %v185
      %v333 = vunpack.c.l.b16 %v186
      %v334 = vunpack.c.h.b16 %v186
      %v335 = vunpack.c.l.b16 %v187
      %v336 = vunpack.c.h.b16 %v187
      %v337 = vunpack.c.l.b16 %v188
      %v338 = vunpack.c.h.b16 %v188
      %v339 = vunpack.c.l.b16 %v189
      %v340 = vunpack.c.h.b16 %v189
      %v341 = vunpack.c.l.b16 %v190
      %v342 = vunpack.c.h.b16 %v190
      %v343 = vunpack.c.l.b16 %v191
      %v344 = vunpack.c.h.b16 %v191
      %v345 = vunpack.c.l.b16 %v192
      %v346 = vunpack.c.h.b16 %v192
      %v347 = vunpack.c.l.b16 %v193
      %v348 = vunpack.c.h.b16 %v193
      %v349 = vunpack.c.l.b16 %v194
      %v350 = vunpack.c.h.b16 %v194
      %v351 = vunpack.c.l.b16 %v195
      %v352 = vunpack.c.h.b16 %v195
      %v353 = vunpack.c.l.b16 %v196
      %v354 = vunpack.c.h.b16 %v196
      %v355 = vunpack.c.l.b16 %v197
      %v356 = vunpack.c.h.b16 %v197
      %v357 = vunpack.c.l.b16 %v198
      %v358 = vunpack.c.h.b16 %v198
      %v359 = vunpack.c.l.b16 %v199
      %v360 = vunpack.c.h.b16 %v199
      %v361 = vunpack.c.l.b16 %v200
      %v362 = vunpack.c.h.b16 %v200
      %v363 = vunpack.c.l.b16 %v201
      %v364 = vunpack.c.h.b16 %v201
      %v365 = vunpack.c.l.b16 %v202
      %v366 = vunpack.c.h.b16 %v202
      %v367 = vunpack.c.l.b16 %v203
      %v368 = vunpack.c.h.b16 %v203
      %v369 = vunpack.c.l.b16 %v204
      %v370 = vunpack.c.h.b16 %v204
      %v371 = vunpack.c.l.b16 %v205
      %v372 = vunpack.c.h.b16 %v205
      %v373 = vunpack.c.l.b16 %v206
      %v374 = vunpack.c.h.b16 %v206
      %v375 = vunpack.c.l.b16 %v207
      %v376 = vunpack.c.h.b16 %v207
      %v377 = vunpack.c.l.b16 %v208
      %v378 = vunpack.c.h.b16 %v208
      %v379 = vunpack.c.l.b16 %v209
      %v380 = vunpack.c.h.b16 %v209
      %v381 = vunpack.c.l.b16 %v210
      %v382 = vunpack.c.h.b16 %v210
      %v383 = vunpack.c.l.b16 %v211
      %v384 = vunpack.c.h.b16 %v211
      %v385 = vunpack.c.l.b16 %v212
      %v386 = vunpack.c.h.b16 %v212
      %v387 = vunpack.c.l.b16 %v213
      %v388 = vunpack.c.h.b16 %v213
      %v389 = vunpack.c.l.b16 %v214
      %v390 = vunpack.c.h.b16 %v214
      %v391 = vunpack.c.l.b16 %v215
      %v392 = vunpack.c.h.b16 %v215
      %v393 = vunpack.c.l.b16 %v216
      %v394 = vunpack.c.h.b16 %v216
      %v395 = vunpack.c.l.b16 %v217
      %v396 = vunpack.c.h.b16 %v217
      %v397 = vunpack.c.l.b16 %v218
      %v398 = vunpack.c.h.b16 %v218
      %v399 = vunpack.c.l.b16 %v219
      %v400 = vunpack.c.h.b16 %v219
      %v401 = vunpack.c.l.b16 %v220
      %v402 = vunpack.c.h.b16 %v220
      %v403 = vunpack.c.l.b16 %v221
      %v404 = vunpack.c.h.b16 %v221
      %v405 = vunpack.c.l.b16 %v222
      %v406 = vunpack.c.h.b16 %v222
      %v407 = vunpack.c.l.b16 %v223
      %v408 = vunpack.c.h.b16 %v223
      %v409 = vunpack.c.l.b16 %v224
      %v410 = vunpack.c.h.b16 %v224
      %v411 = vunpack.c.l.b16 %v225
      %v412 = vunpack.c.h.b16 %v225
      %v413 = vunpack.c.l.b16 %v226
      %v414 = vunpack.c.h.b16 %v226
      %v415 = vunpack.c.l.b16 %v227
      %v416 = vunpack.c.h.b16 %v227
      %v417 = vpack.c.b16 %v319, %v317
      %v418 = vpack.c.b16 %v320, %v318
      %v419 = vpack.c.b16 %v323, %v321
      %v420 = vpack.c.b16 %v324, %v322
      %v421 = vpack.c.b16 %v327, %v325
      %v422 = vpack.c.b16 %v328, %v326
      %v423 = vpack.c.b16 %v331, %v329
      %v424 = vpack.c.b16 %v332, %v330
      %v425 = vpack.c.b16 %v335, %v333
      %v426 = vpack.c.b16 %v336, %v334
      %v427 = vpack.c.b16 %v339, %v337
      %v428 = vpack.c.b16 %v340, %v338
      %v429 = vpack.c.b16 %v343, %v341
      %v430 = vpack.c.b16 %v344, %v342
      %v431 = vpack.c.b16 %v347, %v345
      %v432 = vpack.c.b16 %v348, %v346
      %v433 = vpack.c.b16 %v351, %v349
      %v434 = vpack.c.b16 %v352, %v350
      %v435 = vpack.c.b16 %v355, %v353
      %v436 = vpack.c.b16 %v356, %v354
      %v437 = vpack.c.b16 %v359, %v357
      %v438 = vpack.c.b16 %v360, %v358
      %v439 = vpack.c.b16 %v363, %v361
      %v440 = vpack.c.b16 %v364, %v362
      %v441 = vpack.c.b16 %v367, %v365
      %v442 = vpack.c.b16 %v368, %v366
      %v443 = vpack.c.b16 %v371, %v369
      %v444 = vpack.c.b16 %v372, %v370
      %v445 = vpack.c.b16 %v375, %v373
      %v446 = vpack.c.b16 %v376, %v374
      %v447 = vpack.c.b16 %v379, %v377
      %v448 = vpack.c.b16 %v380, %v378
      %v449 = vpack.c.b16 %v383, %v381
      %v450 = vpack.c.b16 %v384, %v382
      %v451 = vpack.c.b16 %v387, %v385
      %v452 = vpack.c.b16 %v388, %v386
      %v453 = vpack.c.b16 %v391, %v389
      %v454 = vpack.c.b16 %v392, %v390
      %v455 = vpack.c.b16 %v395, %v393
      %v456 = vpack.c.b16 %v396, %v394
      %v457 = vpack.c.b16 %v399, %v397
      %v458 = vpack.c.b16 %v400, %v398
      %v459 = vpack.c.b16 %v403, %v401
      %v460 = vpack.c.b16 %v404, %v402
      %v461 = vpack.c.b16 %v407, %v405
      %v462 = vpack.c.b16 %v408, %v406
      %v463 = vpack.c.b16 %v411, %v409
      %v464 = vpack.c.b16 %v412, %v410
      %v465 = vpack.c.b16 %v415, %v413
      %v466 = vpack.c.b16 %v416, %v414
      %v549 = vunpack.c.l.b16 %v228
      %v550 = vunpack.c.l.b16 %v229
      %v551 = vunpack.c.l.b16 %v230
      %v552 = vunpack.c.l.b16 %v231
      %v553 = vunpack.c.l.b16 %v232
      %v554 = vunpack.c.l.b16 %v233
      %v555 = vunpack.c.l.b16 %v234
      %v556 = vunpack.c.l.b16 %v235
      %v557 = vunpack.c.l.b16 %v236
      %v558 = vunpack.c.l.b16 %v237
      %v559 = vunpack.c.l.b16 %v238
      %v560 = vunpack.c.l.b16 %v239
      %v561 = vunpack.c.l.b16 %v240
      %v562 = vunpack.c.l.b16 %v241
      %v563 = vunpack.c.l.b16 %v242
      %v564 = vunpack.c.l.b16 %v243
      %v565 = vunpack.c.l.b16 %v244
      %v566 = vunpack.c.l.b16 %v245
      %v567 = vunpack.c.l.b16 %v246
      %v568 = vunpack.c.l.b16 %v247
      %v569 = vunpack.c.l.b16 %v248
      %v570 = vunpack.c.l.b16 %v249
      %v571 = vunpack.c.l.b16 %v250
      %v572 = vunpack.c.l.b16 %v251
      %v573 = vunpack.c.l.b16 %v252
      %v574 = vunpack.c.l.b16 %v253
      %v575 = vunpack.c.l.b16 %v254
      %v576 = vunpack.c.l.b16 %v255
      %v577 = vunpack.c.l.b16 %v256
      %v578 = vunpack.c.l.b16 %v257
      %v579 = vunpack.c.l.b16 %v258
      %v580 = vunpack.c.l.b16 %v259
      %v581 = vpack.c.b16 %v550, %v549
      %v582 = vpack.c.b16 %v552, %v551
      %v583 = vpack.c.b16 %v554, %v553
      %v584 = vpack.c.b16 %v556, %v555
      %v585 = vpack.c.b16 %v558, %v557
      %v586 = vpack.c.b16 %v560, %v559
      %v587 = vpack.c.b16 %v562, %v561
      %v588 = vpack.c.b16 %v564, %v563
      %v589 = vpack.c.b16 %v566, %v565
      %v590 = vpack.c.b16 %v568, %v567
      %v591 = vpack.c.b16 %v570, %v569
      %v592 = vpack.c.b16 %v572, %v571
      %v593 = vpack.c.b16 %v574, %v573
      %v594 = vpack.c.b16 %v576, %v575
      %v595 = vpack.c.b16 %v578, %v577
      %v596 = vpack.c.b16 %v580, %v579
      %613 = vmatprep.subr.bf16.mxu0 0
      %614 = vmatpush1.bf16.msra.mxu0 %v588
      %615 = vmatprep.subr.bf16.mxu0 0
      %616 = vmatpush1.bf16.msra.mxu0 %v587
      %617 = vmatprep.subr.bf16.mxu0 0
      %618 = vmatpush1.bf16.msra.mxu0 %v586
      %619 = vmatprep.subr.bf16.mxu0 0
      %620 = vmatpush1.bf16.msra.mxu0 %v585
      %621 = vmatprep.subr.bf16.mxu0 0
      %622 = vmatpush1.bf16.msra.mxu0 %v584
      %623 = vmatprep.subr.bf16.mxu0 0
      %624 = vmatpush1.bf16.msra.mxu0 %v583
      %625 = vmatprep.subr.bf16.mxu0 0
      %626 = vmatpush1.bf16.msra.mxu0 %v582
      %627 = vmatprep.subr.bf16.mxu0 0
      %628 = vmatpush1.bf16.msra.mxu0 %v581
      %629 = vmatprep.subr.bf16.mxu0 0
      %630 = vmatpush2.bf16.msra.mxu0 %v596
      %631 = vmatprep.subr.bf16.mxu0 0
      %632 = vmatpush2.bf16.msra.mxu0 %v595
      %633 = vmatprep.subr.bf16.mxu0 0
      %634 = vmatpush2.bf16.msra.mxu0 %v594
      %635 = vmatprep.subr.bf16.mxu0 0
      %636 = vmatpush2.bf16.msra.mxu0 %v593
      %637 = vmatprep.subr.bf16.mxu0 0
      %638 = vmatpush2.bf16.msra.mxu0 %v592
      %639 = vmatprep.subr.bf16.mxu0 0
      %640 = vmatpush2.bf16.msra.mxu0 %v591
      %641 = vmatprep.subr.bf16.mxu0 0
      %642 = vmatpush2.bf16.msra.mxu0 %v590
      %643 = vmatprep.subr.bf16.mxu0 0
      %644 = vmatpush2.bf16.msra.mxu0 %v589
      %645 = vmatprep.mubr.bf16.mxu0 %v418
      %646 = vmatmul.mubr.bf16.gmra.mxu0 %v417
      %v647 = vpop.f32.mrf.mxu0
      %v648 = vadd.f32 %v265, %v647
      %v649 = vpop.f32.mrf.mxu0
      %v650 = vpop.f32.mrf.mxu0
      %v651 = vadd.f32 %v265, %v650
      %v652 = vpop.f32.mrf.mxu0
      %653 = vmatprep.mubr.bf16.mxu0 %v420
      %654 = vmatmul.mubr.bf16.gmra.mxu0 %v419
      %v655 = vpop.f32.mrf.mxu0
      %v656 = vadd.f32 %v265, %v655
      %v657 = vpop.f32.mrf.mxu0
      %v658 = vpop.f32.mrf.mxu0
      %v659 = vadd.f32 %v265, %v658
      %v660 = vpop.f32.mrf.mxu0
      %661 = vmatprep.mubr.bf16.mxu0 %v422
      %662 = vmatmul.mubr.bf16.gmra.mxu0 %v421
      %v663 = vpop.f32.mrf.mxu0
      %v664 = vadd.f32 %v265, %v663
      %v665 = vpop.f32.mrf.mxu0
      %v666 = vpop.f32.mrf.mxu0
      %v667 = vadd.f32 %v265, %v666
      %v668 = vpop.f32.mrf.mxu0
      %669 = vmatprep.mubr.bf16.mxu0 %v424
      %670 = vmatmul.mubr.bf16.gmra.mxu0 %v423
      %v671 = vpop.f32.mrf.mxu0
      %v672 = vadd.f32 %v265, %v671
      %v673 = vpop.f32.mrf.mxu0
      %v674 = vpop.f32.mrf.mxu0
      %v675 = vadd.f32 %v265, %v674
      %v676 = vpop.f32.mrf.mxu0
      %677 = vmatprep.mubr.bf16.mxu0 %v426
      %678 = vmatmul.mubr.bf16.gmra.mxu0 %v425
      %v679 = vpop.f32.mrf.mxu0
      %v680 = vadd.f32 %v265, %v679
      %v681 = vpop.f32.mrf.mxu0
      %v682 = vpop.f32.mrf.mxu0
      %v683 = vadd.f32 %v265, %v682
      %v684 = vpop.f32.mrf.mxu0
      %685 = vmatprep.mubr.bf16.mxu0 %v428
      %686 = vmatmul.mubr.bf16.gmra.mxu0 %v427
      %v687 = vpop.f32.mrf.mxu0
      %v688 = vadd.f32 %v265, %v687
      %v689 = vpop.f32.mrf.mxu0
      %v690 = vpop.f32.mrf.mxu0
      %v691 = vadd.f32 %v265, %v690
      %v692 = vpop.f32.mrf.mxu0
      %693 = vmatprep.mubr.bf16.mxu0 %v430
      %694 = vmatmul.mubr.bf16.gmra.mxu0 %v429
      %v695 = vpop.f32.mrf.mxu0
      %v696 = vadd.f32 %v265, %v695
      %v697 = vpop.f32.mrf.mxu0
      %v698 = vpop.f32.mrf.mxu0
      %v699 = vadd.f32 %v265, %v698
      %v700 = vpop.f32.mrf.mxu0
      %701 = vmatprep.mubr.bf16.mxu0 %v432
      %702 = vmatmul.mubr.bf16.gmra.mxu0 %v431
      %v703 = vpop.f32.mrf.mxu0
      %v704 = vadd.f32 %v265, %v703
      %v705 = vpop.f32.mrf.mxu0
      %v706 = vpop.f32.mrf.mxu0
      %v707 = vadd.f32 %v265, %v706
      %v708 = vpop.f32.mrf.mxu0
      %709 = vmatprep.mubr.bf16.mxu0 %v434
      %710 = vmatmul.mubr.bf16.gmra.mxu0 %v433
      %v711 = vpop.f32.mrf.mxu0
      %v712 = vadd.f32 %v265, %v711
      %v713 = vpop.f32.mrf.mxu0
      %v714 = vpop.f32.mrf.mxu0
      %v715 = vadd.f32 %v265, %v714
      %v716 = vpop.f32.mrf.mxu0
      %717 = vmatprep.mubr.bf16.mxu0 %v436
      %718 = vmatmul.mubr.bf16.gmra.mxu0 %v435
      %v719 = vpop.f32.mrf.mxu0
      %v720 = vadd.f32 %v265, %v719
      %v721 = vpop.f32.mrf.mxu0
      %v722 = vpop.f32.mrf.mxu0
      %v723 = vadd.f32 %v265, %v722
      %v724 = vpop.f32.mrf.mxu0
      %725 = vmatprep.mubr.bf16.mxu0 %v438
      %726 = vmatmul.mubr.bf16.gmra.mxu0 %v437
      %v727 = vpop.f32.mrf.mxu0
      %v728 = vadd.f32 %v265, %v727
      %v729 = vpop.f32.mrf.mxu0
      %v730 = vpop.f32.mrf.mxu0
      %v731 = vadd.f32 %v265, %v730
      %v732 = vpop.f32.mrf.mxu0
      %733 = vmatprep.mubr.bf16.mxu0 %v440
      %734 = vmatmul.mubr.bf16.gmra.mxu0 %v439
      %v735 = vpop.f32.mrf.mxu0
      %v736 = vadd.f32 %v265, %v735
      %v737 = vpop.f32.mrf.mxu0
      %v738 = vpop.f32.mrf.mxu0
      %v739 = vadd.f32 %v265, %v738
      %v740 = vpop.f32.mrf.mxu0
      %741 = vmatprep.mubr.bf16.mxu0 %v442
      %742 = vmatmul.mubr.bf16.gmra.mxu0 %v441
      %v743 = vpop.f32.mrf.mxu0
      %v744 = vadd.f32 %v265, %v743
      %v745 = vpop.f32.mrf.mxu0
      %v746 = vpop.f32.mrf.mxu0
      %v747 = vadd.f32 %v265, %v746
      %v748 = vpop.f32.mrf.mxu0
      %749 = vmatprep.mubr.bf16.mxu0 %v444
      %750 = vmatmul.mubr.bf16.gmra.mxu0 %v443
      %v751 = vpop.f32.mrf.mxu0
      %v752 = vadd.f32 %v265, %v751
      %v753 = vpop.f32.mrf.mxu0
      %v754 = vpop.f32.mrf.mxu0
      %v755 = vadd.f32 %v265, %v754
      %v756 = vpop.f32.mrf.mxu0
      %757 = vmatprep.mubr.bf16.mxu0 %v446
      %758 = vmatmul.mubr.bf16.gmra.mxu0 %v445
      %v759 = vpop.f32.mrf.mxu0
      %v760 = vadd.f32 %v265, %v759
      %v761 = vpop.f32.mrf.mxu0
      %v762 = vpop.f32.mrf.mxu0
      %v763 = vadd.f32 %v265, %v762
      %v764 = vpop.f32.mrf.mxu0
      %765 = vmatprep.mubr.bf16.mxu0 %v448
      %766 = vmatmul.mubr.bf16.gmra.mxu0 %v447
      %v767 = vpop.f32.mrf.mxu0
      %v768 = vadd.f32 %v265, %v767
      %v769 = vpop.f32.mrf.mxu0
      %v770 = vpop.f32.mrf.mxu0
      %v771 = vadd.f32 %v265, %v770
      %v772 = vpop.f32.mrf.mxu0
      %773 = vmatprep.mubr.bf16.mxu0 %v450
      %774 = vmatmul.mubr.bf16.gmra.mxu0 %v449
      %v775 = vpop.f32.mrf.mxu0
      %v776 = vadd.f32 %v265, %v775
      %v777 = vpop.f32.mrf.mxu0
      %v778 = vpop.f32.mrf.mxu0
      %v779 = vadd.f32 %v265, %v778
      %v780 = vpop.f32.mrf.mxu0
      %781 = vmatprep.mubr.bf16.mxu0 %v452
      %782 = vmatmul.mubr.bf16.gmra.mxu0 %v451
      %v783 = vpop.f32.mrf.mxu0
      %v784 = vadd.f32 %v265, %v783
      %v785 = vpop.f32.mrf.mxu0
      %v786 = vpop.f32.mrf.mxu0
      %v787 = vadd.f32 %v265, %v786
      %v788 = vpop.f32.mrf.mxu0
      %789 = vmatprep.mubr.bf16.mxu0 %v454
      %790 = vmatmul.mubr.bf16.gmra.mxu0 %v453
      %v791 = vpop.f32.mrf.mxu0
      %v792 = vadd.f32 %v265, %v791
      %v793 = vpop.f32.mrf.mxu0
      %v794 = vpop.f32.mrf.mxu0
      %v795 = vadd.f32 %v265, %v794
      %v796 = vpop.f32.mrf.mxu0
      %797 = vmatprep.mubr.bf16.mxu0 %v456
      %798 = vmatmul.mubr.bf16.gmra.mxu0 %v455
      %v799 = vpop.f32.mrf.mxu0
      %v800 = vadd.f32 %v265, %v799
      %v801 = vpop.f32.mrf.mxu0
      %v802 = vpop.f32.mrf.mxu0
      %v803 = vadd.f32 %v265, %v802
      %v804 = vpop.f32.mrf.mxu0
      %805 = vmatprep.mubr.bf16.mxu0 %v458
      %806 = vmatmul.mubr.bf16.gmra.mxu0 %v457
      %v807 = vpop.f32.mrf.mxu0
      %v808 = vadd.f32 %v265, %v807
      %v809 = vpop.f32.mrf.mxu0
      %v810 = vpop.f32.mrf.mxu0
      %v811 = vadd.f32 %v265, %v810
      %v812 = vpop.f32.mrf.mxu0
      %813 = vmatprep.mubr.bf16.mxu0 %v460
      %814 = vmatmul.mubr.bf16.gmra.mxu0 %v459
      %v815 = vpop.f32.mrf.mxu0
      %v816 = vadd.f32 %v265, %v815
      %v817 = vpop.f32.mrf.mxu0
      %v818 = vpop.f32.mrf.mxu0
      %v819 = vadd.f32 %v265, %v818
      %v820 = vpop.f32.mrf.mxu0
      %821 = vmatprep.mubr.bf16.mxu0 %v462
      %822 = vmatmul.mubr.bf16.gmra.mxu0 %v461
      %v823 = vpop.f32.mrf.mxu0
      %v824 = vadd.f32 %v265, %v823
      %v825 = vpop.f32.mrf.mxu0
      %v826 = vpop.f32.mrf.mxu0
      %v827 = vadd.f32 %v265, %v826
      %v828 = vpop.f32.mrf.mxu0
      %829 = vmatprep.mubr.bf16.mxu0 %v464
      %830 = vmatmul.mubr.bf16.gmra.mxu0 %v463
      %v831 = vpop.f32.mrf.mxu0
      %v832 = vadd.f32 %v265, %v831
      %v833 = vpop.f32.mrf.mxu0
      %v834 = vpop.f32.mrf.mxu0
      %v835 = vadd.f32 %v265, %v834
      %v836 = vpop.f32.mrf.mxu0
      %837 = vmatprep.mubr.bf16.mxu0 %v466
      %838 = vmatmul.mubr.bf16.gmra.mxu0 %v465
      %v839 = vpop.f32.mrf.mxu0
      %v840 = vadd.f32 %v265, %v839
      %v841 = vpop.f32.mrf.mxu0
      %v842 = vpop.f32.mrf.mxu0
      %v843 = vadd.f32 %v265, %v842
      %v844 = vpop.f32.mrf.mxu0
      %845 = vdwg.mxu0
      %v846 = vmax.f32 %v648, 0.0
      %v847 = vmax.f32 %v651, 0.0
      %v848 = vmax.f32 %v656, 0.0
      %v849 = vmax.f32 %v659, 0.0
      %v850 = vmax.f32 %v664, 0.0
      %v851 = vmax.f32 %v667, 0.0
      %v852 = vmax.f32 %v672, 0.0
      %v853 = vmax.f32 %v675, 0.0
      %v854 = vmax.f32 %v680, 0.0
      %v855 = vmax.f32 %v683, 0.0
      %v856 = vmax.f32 %v688, 0.0
      %v857 = vmax.f32 %v691, 0.0
      %v858 = vmax.f32 %v696, 0.0
      %v859 = vmax.f32 %v699, 0.0
      %v860 = vmax.f32 %v704, 0.0
      %v861 = vmax.f32 %v707, 0.0
      %v862 = vmax.f32 %v712, 0.0
      %v863 = vmax.f32 %v715, 0.0
      %v864 = vmax.f32 %v720, 0.0
      %v865 = vmax.f32 %v723, 0.0
      %v866 = vmax.f32 %v728, 0.0
      %v867 = vmax.f32 %v731, 0.0
      %v868 = vmax.f32 %v736, 0.0
      %v869 = vmax.f32 %v739, 0.0
      %v870 = vmax.f32 %v744, 0.0
      %v871 = vmax.f32 %v747, 0.0
      %v872 = vmax.f32 %v752, 0.0
      %v873 = vmax.f32 %v755, 0.0
      %v874 = vmax.f32 %v760, 0.0
      %v875 = vmax.f32 %v763, 0.0
      %v876 = vmax.f32 %v768, 0.0
      %v877 = vmax.f32 %v771, 0.0
      %v878 = vmax.f32 %v776, 0.0
      %v879 = vmax.f32 %v779, 0.0
      %v880 = vmax.f32 %v784, 0.0
      %v881 = vmax.f32 %v787, 0.0
      %v882 = vmax.f32 %v792, 0.0
      %v883 = vmax.f32 %v795, 0.0
      %v884 = vmax.f32 %v800, 0.0
      %v885 = vmax.f32 %v803, 0.0
      %v886 = vmax.f32 %v808, 0.0
      %v887 = vmax.f32 %v811, 0.0
      %v888 = vmax.f32 %v816, 0.0
      %v889 = vmax.f32 %v819, 0.0
      %v890 = vmax.f32 %v824, 0.0
      %v891 = vmax.f32 %v827, 0.0
      %v892 = vmax.f32 %v832, 0.0
      %v893 = vmax.f32 %v835, 0.0
      %v894 = vmax.f32 %v840, 0.0
      %v895 = vmax.f32 %v843, 0.0
      %v896 = vpack.c.bf16 %v847, %v846
      %v897 = vpack.c.bf16 %v849, %v848
      %v898 = vpack.c.bf16 %v851, %v850
      %v899 = vpack.c.bf16 %v853, %v852
      %v900 = vpack.c.bf16 %v855, %v854
      %v901 = vpack.c.bf16 %v857, %v856
      %v902 = vpack.c.bf16 %v859, %v858
      %v903 = vpack.c.bf16 %v861, %v860
      %v904 = vpack.c.bf16 %v863, %v862
      %v905 = vpack.c.bf16 %v865, %v864
      %v906 = vpack.c.bf16 %v867, %v866
      %v907 = vpack.c.bf16 %v869, %v868
      %v908 = vpack.c.bf16 %v871, %v870
      %v909 = vpack.c.bf16 %v873, %v872
      %v910 = vpack.c.bf16 %v875, %v874
      %v911 = vpack.c.bf16 %v877, %v876
      %v912 = vpack.c.bf16 %v879, %v878
      %v913 = vpack.c.bf16 %v881, %v880
      %v914 = vpack.c.bf16 %v883, %v882
      %v915 = vpack.c.bf16 %v885, %v884
      %v916 = vpack.c.bf16 %v887, %v886
      %v917 = vpack.c.bf16 %v889, %v888
      %v918 = vpack.c.bf16 %v891, %v890
      %v919 = vpack.c.bf16 %v893, %v892
      %v920 = vpack.c.bf16 %v895, %v894
      %v946 = vunpack.c.l.b16 %v896
      %v947 = vunpack.c.h.b16 %v896
      %v948 = vunpack.c.l.b16 %v897
      %v949 = vunpack.c.h.b16 %v897
      %v950 = vunpack.c.l.b16 %v898
      %v951 = vunpack.c.h.b16 %v898
      %v952 = vunpack.c.l.b16 %v899
      %v953 = vunpack.c.h.b16 %v899
      %v954 = vunpack.c.l.b16 %v900
      %v955 = vunpack.c.h.b16 %v900
      %v956 = vunpack.c.l.b16 %v901
      %v957 = vunpack.c.h.b16 %v901
      %v958 = vunpack.c.l.b16 %v902
      %v959 = vunpack.c.h.b16 %v902
      %v960 = vunpack.c.l.b16 %v903
      %v961 = vunpack.c.h.b16 %v903
      %v962 = vunpack.c.l.b16 %v904
      %v963 = vunpack.c.h.b16 %v904
      %v964 = vunpack.c.l.b16 %v905
      %v965 = vunpack.c.h.b16 %v905
      %v966 = vunpack.c.l.b16 %v906
      %v967 = vunpack.c.h.b16 %v906
      %v968 = vunpack.c.l.b16 %v907
      %v969 = vunpack.c.h.b16 %v907
      %v970 = vunpack.c.l.b16 %v908
      %v971 = vunpack.c.h.b16 %v908
      %v972 = vunpack.c.l.b16 %v909
      %v973 = vunpack.c.h.b16 %v909
      %v974 = vunpack.c.l.b16 %v910
      %v975 = vunpack.c.h.b16 %v910
      %v976 = vunpack.c.l.b16 %v911
      %v977 = vunpack.c.h.b16 %v911
      %v978 = vunpack.c.l.b16 %v912
      %v979 = vunpack.c.h.b16 %v912
      %v980 = vunpack.c.l.b16 %v913
      %v981 = vunpack.c.h.b16 %v913
      %v982 = vunpack.c.l.b16 %v914
      %v983 = vunpack.c.h.b16 %v914
      %v984 = vunpack.c.l.b16 %v915
      %v985 = vunpack.c.h.b16 %v915
      %v986 = vunpack.c.l.b16 %v916
      %v987 = vunpack.c.h.b16 %v916
      %v988 = vunpack.c.l.b16 %v917
      %v989 = vunpack.c.h.b16 %v917
      %v990 = vunpack.c.l.b16 %v918
      %v991 = vunpack.c.h.b16 %v918
      %v992 = vunpack.c.l.b16 %v919
      %v993 = vunpack.c.h.b16 %v919
      %v994 = vunpack.c.l.b16 %v920
      %v995 = vunpack.c.h.b16 %v920
      %v996 = vpack.c.b16 %v946, %v946
      %v997 = vpack.c.b16 %v947, %v947
      %v998 = vpack.c.b16 %v948, %v948
      %v999 = vpack.c.b16 %v949, %v949
      %v1000 = vpack.c.b16 %v950, %v950
      %v1001 = vpack.c.b16 %v951, %v951
      %v1002 = vpack.c.b16 %v952, %v952
      %v1003 = vpack.c.b16 %v953, %v953
      %v1004 = vpack.c.b16 %v954, %v954
      %v1005 = vpack.c.b16 %v955, %v955
      %v1006 = vpack.c.b16 %v956, %v956
      %v1007 = vpack.c.b16 %v957, %v957
      %v1008 = vpack.c.b16 %v958, %v958
      %v1009 = vpack.c.b16 %v959, %v959
      %v1010 = vpack.c.b16 %v960, %v960
      %v1011 = vpack.c.b16 %v961, %v961
      %v1012 = vpack.c.b16 %v962, %v962
      %v1013 = vpack.c.b16 %v963, %v963
      %v1014 = vpack.c.b16 %v964, %v964
      %v1015 = vpack.c.b16 %v965, %v965
      %v1016 = vpack.c.b16 %v966, %v966
      %v1017 = vpack.c.b16 %v967, %v967
      %v1018 = vpack.c.b16 %v968, %v968
      %v1019 = vpack.c.b16 %v969, %v969
      %v1020 = vpack.c.b16 %v970, %v970
      %v1021 = vpack.c.b16 %v971, %v971
      %v1022 = vpack.c.b16 %v972, %v972
      %v1023 = vpack.c.b16 %v973, %v973
      %v1024 = vpack.c.b16 %v974, %v974
      %v1025 = vpack.c.b16 %v975, %v975
      %v1026 = vpack.c.b16 %v976, %v976
      %v1027 = vpack.c.b16 %v977, %v977
      %v1028 = vpack.c.b16 %v978, %v978
      %v1029 = vpack.c.b16 %v979, %v979
      %v1030 = vpack.c.b16 %v980, %v980
      %v1031 = vpack.c.b16 %v981, %v981
      %v1032 = vpack.c.b16 %v982, %v982
      %v1033 = vpack.c.b16 %v983, %v983
      %v1034 = vpack.c.b16 %v984, %v984
      %v1035 = vpack.c.b16 %v985, %v985
      %v1036 = vpack.c.b16 %v986, %v986
      %v1037 = vpack.c.b16 %v987, %v987
      %v1038 = vpack.c.b16 %v988, %v988
      %v1039 = vpack.c.b16 %v989, %v989
      %v1040 = vpack.c.b16 %v990, %v990
      %v1041 = vpack.c.b16 %v991, %v991
      %v1042 = vpack.c.b16 %v992, %v992
      %v1043 = vpack.c.b16 %v993, %v993
      %v1044 = vpack.c.b16 %v994, %v994
      %v1045 = vpack.c.b16 %v995, %v995
      %vm1096 = vcmask 125952
      %1097 = vst.msk [vmem:[%s175] sm:$0xf] %vm1096, %v996
      %1098 = vst.msk [vmem:[%s175 + $0x4] sm:$0xf] %vm1096, %v997
      %1099 = vst.msk [vmem:[%s175 + $0x8] sm:$0xf] %vm1096, %v998
      %1100 = vst.msk [vmem:[%s175 + $0xc] sm:$0xf] %vm1096, %v999
      %1101 = vst.msk [vmem:[%s175 + $0x10] sm:$0xf] %vm1096, %v1000
      %1102 = vst.msk [vmem:[%s175 + $0x14] sm:$0xf] %vm1096, %v1001
      %1103 = vst.msk [vmem:[%s175 + $0x18] sm:$0xf] %vm1096, %v1002
      %1104 = vst.msk [vmem:[%s175 + $0x1c] sm:$0xf] %vm1096, %v1003
      %1105 = vst.msk [vmem:[%s175 + $0x20] sm:$0xf] %vm1096, %v1004
      %1106 = vst.msk [vmem:[%s175 + $0x24] sm:$0xf] %vm1096, %v1005
      %1107 = vst.msk [vmem:[%s175 + $0x28] sm:$0xf] %vm1096, %v1006
      %1108 = vst.msk [vmem:[%s175 + $0x2c] sm:$0xf] %vm1096, %v1007
      %1109 = vst.msk [vmem:[%s175 + $0x30] sm:$0xf] %vm1096, %v1008
      %1110 = vst.msk [vmem:[%s175 + $0x34] sm:$0xf] %vm1096, %v1009
      %1111 = vst.msk [vmem:[%s175 + $0x38] sm:$0xf] %vm1096, %v1010
      %1112 = vst.msk [vmem:[%s175 + $0x3c] sm:$0xf] %vm1096, %v1011
      %1113 = vst.msk [vmem:[%s175 + $0x40] sm:$0xf] %vm1096, %v1012
      %1114 = vst.msk [vmem:[%s175 + $0x44] sm:$0xf] %vm1096, %v1013
      %1115 = vst.msk [vmem:[%s175 + $0x48] sm:$0xf] %vm1096, %v1014
      %1116 = vst.msk [vmem:[%s175 + $0x4c] sm:$0xf] %vm1096, %v1015
      %1117 = vst.msk [vmem:[%s175 + $0x50] sm:$0xf] %vm1096, %v1016
      %1118 = vst.msk [vmem:[%s175 + $0x54] sm:$0xf] %vm1096, %v1017
      %1119 = vst.msk [vmem:[%s175 + $0x58] sm:$0xf] %vm1096, %v1018
      %1120 = vst.msk [vmem:[%s175 + $0x5c] sm:$0xf] %vm1096, %v1019
      %1121 = vst.msk [vmem:[%s175 + $0x60] sm:$0xf] %vm1096, %v1020
      %1122 = vst.msk [vmem:[%s175 + $0x64] sm:$0xf] %vm1096, %v1021
      %1123 = vst.msk [vmem:[%s175 + $0x68] sm:$0xf] %vm1096, %v1022
      %1124 = vst.msk [vmem:[%s175 + $0x6c] sm:$0xf] %vm1096, %v1023
      %1125 = vst.msk [vmem:[%s175 + $0x70] sm:$0xf] %vm1096, %v1024
      %1126 = vst.msk [vmem:[%s175 + $0x74] sm:$0xf] %vm1096, %v1025
      %1127 = vst.msk [vmem:[%s175 + $0x78] sm:$0xf] %vm1096, %v1026
      %1128 = vst.msk [vmem:[%s175 + $0x7c] sm:$0xf] %vm1096, %v1027
      %1129 = vst.msk [vmem:[%s175 + $0x80] sm:$0xf] %vm1096, %v1028
      %1130 = vst.msk [vmem:[%s175 + $0x84] sm:$0xf] %vm1096, %v1029
      %1131 = vst.msk [vmem:[%s175 + $0x88] sm:$0xf] %vm1096, %v1030
      %1132 = vst.msk [vmem:[%s175 + $0x8c] sm:$0xf] %vm1096, %v1031
      %1133 = vst.msk [vmem:[%s175 + $0x90] sm:$0xf] %vm1096, %v1032
      %1134 = vst.msk [vmem:[%s175 + $0x94] sm:$0xf] %vm1096, %v1033
      %1135 = vst.msk [vmem:[%s175 + $0x98] sm:$0xf] %vm1096, %v1034
      %1136 = vst.msk [vmem:[%s175 + $0x9c] sm:$0xf] %vm1096, %v1035
      %1137 = vst.msk [vmem:[%s175 + $0xa0] sm:$0xf] %vm1096, %v1036
      %1138 = vst.msk [vmem:[%s175 + $0xa4] sm:$0xf] %vm1096, %v1037
      %1139 = vst.msk [vmem:[%s175 + $0xa8] sm:$0xf] %vm1096, %v1038
      %1140 = vst.msk [vmem:[%s175 + $0xac] sm:$0xf] %vm1096, %v1039
      %1141 = vst.msk [vmem:[%s175 + $0xb0] sm:$0xf] %vm1096, %v1040
      %1142 = vst.msk [vmem:[%s175 + $0xb4] sm:$0xf] %vm1096, %v1041
      %1143 = vst.msk [vmem:[%s175 + $0xb8] sm:$0xf] %vm1096, %v1042
      %1144 = vst.msk [vmem:[%s175 + $0xbc] sm:$0xf] %vm1096, %v1043
      %1145 = vst.msk [vmem:[%s175 + $0xc0] sm:$0xf] %vm1096, %v1044
      %1146 = vst.msk [vmem:[%s175 + $0xc4] sm:$0xf] %vm1096, %v1045
      %s1147 = smul.u32 50, %s14
      %p1148 = scmp.lt.s32.totalorder %s1147, 99
      %s1149 = scalar_select %p1148, %s1147, 99
      %s1150 = smul.addr %s1149, 4
      %s1151 = scalar_lea.vmem %s3, %s1150
      // Predicated region
      $region33: #{dqn_forward.2} parent=31 // pred_check
        %p1152 = pneg %p100
      $region34: #{dqn_forward.2} parent=31 // pred_check_branch
        %1154 = sbr.rel (%p1152) target = $region36
      $region35: #{dqn_forward.2} parent=31 // pred_region
        %s1155 = smul.u32 50, %s14
      $region36: #{dqn_forward.2} parent=31 // pred_fallthru
        _
    $region32: #{dqn_forward.2} parent=5 // pred_fallthru
      _
    %p1156 = scmp.le.s32.totalorder 2, %s9
    // Predicated region
    $region37: #{dqn_forward.2} parent=5 // pred_check
      %p1157 = pneg %p1156
    $region38: #{dqn_forward.2} parent=5 // pred_check_branch
      %1159 = sbr.rel (%p1157) target = $region40
    $region39: #{dqn_forward.2} parent=5 // pred_region
      %s1160 = ssub.s32 %s9, 2
      // Predicated region
      $region41: #{dqn_forward.2} parent=39 // pred_check
        %p1161 = pneg %p106
      $region42: #{dqn_forward.2} parent=39 // pred_check_branch
        %1163 = sbr.rel (%p1161) target = $region44
      $region43: #{dqn_forward.2} parent=39 // pred_region
        %s1164 = smul.u32 50, %s15
        %p1165 = scmp.lt.s32.totalorder %s1164, 99
        %s1166 = scalar_select %p1165, %s1164, 99
        %s1167 = smul.addr %s1166, 4
        %s1168 = scalar_lea.vmem %s3, %s1167
      $region44: #{dqn_forward.2} parent=39 // pred_fallthru
        _
    $region40: #{dqn_forward.2} parent=5 // pred_fallthru
      _
  $region6: #{dqn_forward.2} parent=0 // loop_footer
    %s13 = sadd.s32 1, %s9
  $region7: #{dqn_forward.2} parent=0 // loop_footer_branch
    %8 = sbr.rel target = $region3
  $region8: #{dqn_forward.2} parent=0 // loop_exit
    _

// kernel: dqn_forward.3
$region0: #{dqn_forward.3}
  #allocation0 [shape = 'u32[]', space=smem, size = 0x4, offset = 0x4, fixed_abs, tag = 'smem constant byte address 0x4 - core index']
  #allocation1 [shape = 'u32[144,128]{1,0:T(1,128)}', space=vmem, size = 0x12000, scoped, tag = 'internal scratch']
  #allocation2 [shape = 'f32[1,2592]{1,0:T(1,128)}', space=vmem, size = 0x2a00, scoped, tag = 'scratch operand']
  %s0 = inlined_call_operand.vmem [shape: bf16[2,81,256], index: 0, kind: input, shape index: {}]
  %s1 = inlined_call_operand.vmem [shape: bf16[256,32], index: 1, kind: input, shape index: {}]
  %s2 = inlined_call_operand.vmem [shape: f32[1,32], index: 2, kind: input, shape index: {}]
  %s3 = inlined_call_operand.vmem [shape: bf16[2592,256], index: 3, kind: input, shape index: {}]
  %s4 = inlined_call_operand.vmem [shape: f32[1,256], index: 4, kind: input, shape index: {}]
  %s5 = inlined_call_operand.vmem [shape: bf16[256,128], index: 5, kind: input, shape index: {}]
  %s6 = inlined_call_operand.vmem [shape: f32[1,128], index: 6, kind: input, shape index: {}]
  %s7 = inlined_call_operand.hbm [shape: f32[2,1,128], index: 7, kind: output, shape index: {}]
  %s8 = sld [smem:[#allocation0]]
  $region61: #{dqn_forward.3} parent=0
    _
  %s10 = ssub.s32 1, %s8
  %s11 = scalar_select 0, %s10, %s8
  $region1: #{dqn_forward.3} parent=0
    #allocation3 [shape = 'u8[1024]{0}', space=vmem, size = 0x400, scoped, tag = 'output window, operand 0']
    #allocation4 [shape = 's32[2]{0}', space=sflag, size = 0x8, scoped, tag = 'scoped memory for dqn_forward.3']
    %12 = vsyncpa [#allocation4], 0
    %s13 = scalar_lea.sflag [#allocation4], 1
    %14 = vsyncpa %s13, 0
    loop: start=0, step=1, limit=4
    $region2: #{dqn_forward.3} parent=1 // loop_pre_header
      _
    $region3: #{dqn_forward.3} parent=1 // loop_header
      %s16 = sphi 0, %s20
      %p17 = scmp.ge.s32.totalorder %s16, 4
      %s26 = sphi 0, %s28
      %s29 = sphi 0, %s26
      %s30 = sphi 0, %s29
      %s46 = sphi 0, %s30
      %s50 = sphi 0, %s50
      %s52 = sphi 0, %s50
      %s53 = sphi 0, %s52
      %s67 = sphi 0, %s53
      %s71 = sphi 0, %s71
      %s73 = sphi 0, %s71
      %s74 = sphi 0, %s73
      %s88 = sphi 0, %s74
      %s92 = sphi 0, %s92
      %s94 = sphi 0, %s92
      %s95 = sphi 0, %s94
      %s109 = sphi 0, %s95
      %s113 = sphi 0, %s113
      %s115 = sphi 0, %s113
      %s116 = sphi 0, %s115
      %s130 = sphi 0, %s116
      %s134 = sphi 0, %s134
      %s136 = sphi 0, %s134
      %s137 = sphi 0, %s136
      %s151 = sphi 0, %s137
      %s155 = sphi 0, %s155
      %s157 = sphi 0, %s155
      %s158 = sphi 0, %s157
      %s172 = sphi 0, %s158
      %s178 = sphi 0, %s180
      %s181 = sphi 0, %s178
      %s182 = sphi 0, %s181
      %s198 = sphi 0, %s182
    $region4: #{dqn_forward.3} parent=1 // loop_header_branch
      %19 = sbr.rel (%p17) target = $region8
    $region5: #{dqn_forward.3} parent=1 // loop_body
      %s21 = ssub.s32 %s16, 1
      %s22 = ssub.s32 %s16, 2
      %s23 = sadd.s32 %s16, 1
      %s24 = ssub.s32 %s16, %s23
      %p25 = scmp.eq.s32.totalorder %s24, 0
      %s27 = sadd.s32 %s26, 1
      %s28 = scalar_select %p25, %s26, %s27
      %p31 = pneg %p25
      %p32 = scmp.eq.s32.totalorder %s16, 1
      %p33 = por %p31, %p32
      %p34 = scmp.ne.s32.totalorder %s26, %s29
      %p35 = scmp.eq.s32.totalorder %s16, 0
      %p36 = por %p34, %p35
      %p37 = scmp.ne.s32.totalorder %s26, %s29
      %p38 = scmp.eq.s32.totalorder %s21, 1
      %p39 = por %p37, %p38
      %p40 = scmp.ne.s32.totalorder %s29, %s30
      %p41 = scmp.eq.s32.totalorder %s21, 0
      %p42 = por %p40, %p41
      %p43 = scmp.ne.s32.totalorder %s29, %s30
      %p44 = scmp.eq.s32.totalorder %s22, 1
      %p45 = por %p43, %p44
      %p47 = scmp.ne.s32.totalorder %s30, %s46
      %p48 = scmp.eq.s32.totalorder %s22, 0
      %p49 = por %p47, %p48
      %s51 = sadd.s32 %s50, 1
      %p54 = scmp.eq.s32.totalorder %s16, 1
      %p55 = scmp.ne.s32.totalorder %s50, %s52
      %p56 = scmp.eq.s32.totalorder %s16, 0
      %p57 = por %p55, %p56
      %p58 = scmp.ne.s32.totalorder %s50, %s52
      %p59 = scmp.eq.s32.totalorder %s21, 1
      %p60 = por %p58, %p59
      %p61 = scmp.ne.s32.totalorder %s52, %s53
      %p62 = scmp.eq.s32.totalorder %s21, 0
      %p63 = por %p61, %p62
      %p64 = scmp.ne.s32.totalorder %s52, %s53
      %p65 = scmp.eq.s32.totalorder %s22, 1
      %p66 = por %p64, %p65
      %p68 = scmp.ne.s32.totalorder %s53, %s67
      %p69 = scmp.eq.s32.totalorder %s22, 0
      %p70 = por %p68, %p69
      %s72 = sadd.s32 %s71, 1
      %p75 = scmp.eq.s32.totalorder %s16, 1
      %p76 = scmp.ne.s32.totalorder %s71, %s73
      %p77 = scmp.eq.s32.totalorder %s16, 0
      %p78 = por %p76, %p77
      %p79 = scmp.ne.s32.totalorder %s71, %s73
      %p80 = scmp.eq.s32.totalorder %s21, 1
      %p81 = por %p79, %p80
      %p82 = scmp.ne.s32.totalorder %s73, %s74
      %p83 = scmp.eq.s32.totalorder %s21, 0
      %p84 = por %p82, %p83
      %p85 = scmp.ne.s32.totalorder %s73, %s74
      %p86 = scmp.eq.s32.totalorder %s22, 1
      %p87 = por %p85, %p86
      %p89 = scmp.ne.s32.totalorder %s74, %s88
      %p90 = scmp.eq.s32.totalorder %s22, 0
      %p91 = por %p89, %p90
      %s93 = sadd.s32 %s92, 1
      %p96 = scmp.eq.s32.totalorder %s16, 1
      %p97 = scmp.ne.s32.totalorder %s92, %s94
      %p98 = scmp.eq.s32.totalorder %s16, 0
      %p99 = por %p97, %p98
      %p100 = scmp.ne.s32.totalorder %s92, %s94
      %p101 = scmp.eq.s32.totalorder %s21, 1
      %p102 = por %p100, %p101
      %p103 = scmp.ne.s32.totalorder %s94, %s95
      %p104 = scmp.eq.s32.totalorder %s21, 0
      %p105 = por %p103, %p104
      %p106 = scmp.ne.s32.totalorder %s94, %s95
      %p107 = scmp.eq.s32.totalorder %s22, 1
      %p108 = por %p106, %p107
      %p110 = scmp.ne.s32.totalorder %s95, %s109
      %p111 = scmp.eq.s32.totalorder %s22, 0
      %p112 = por %p110, %p111
      %s114 = sadd.s32 %s113, 1
      %p117 = scmp.eq.s32.totalorder %s16, 1
      %p118 = scmp.ne.s32.totalorder %s113, %s115
      %p119 = scmp.eq.s32.totalorder %s16, 0
      %p120 = por %p118, %p119
      %p121 = scmp.ne.s32.totalorder %s113, %s115
      %p122 = scmp.eq.s32.totalorder %s21, 1
      %p123 = por %p121, %p122
      %p124 = scmp.ne.s32.totalorder %s115, %s116
      %p125 = scmp.eq.s32.totalorder %s21, 0
      %p126 = por %p124, %p125
      %p127 = scmp.ne.s32.totalorder %s115, %s116
      %p128 = scmp.eq.s32.totalorder %s22, 1
      %p129 = por %p127, %p128
      %p131 = scmp.ne.s32.totalorder %s116, %s130
      %p132 = scmp.eq.s32.totalorder %s22, 0
      %p133 = por %p131, %p132
      %s135 = sadd.s32 %s134, 1
      %p138 = scmp.eq.s32.totalorder %s16, 1
      %p139 = scmp.ne.s32.totalorder %s134, %s136
      %p140 = scmp.eq.s32.totalorder %s16, 0
      %p141 = por %p139, %p140
      %p142 = scmp.ne.s32.totalorder %s134, %s136
      %p143 = scmp.eq.s32.totalorder %s21, 1
      %p144 = por %p142, %p143
      %p145 = scmp.ne.s32.totalorder %s136, %s137
      %p146 = scmp.eq.s32.totalorder %s21, 0
      %p147 = por %p145, %p146
      %p148 = scmp.ne.s32.totalorder %s136, %s137
      %p149 = scmp.eq.s32.totalorder %s22, 1
      %p150 = por %p148, %p149
      %p152 = scmp.ne.s32.totalorder %s137, %s151
      %p153 = scmp.eq.s32.totalorder %s22, 0
      %p154 = por %p152, %p153
      %s156 = sadd.s32 %s155, 1
      %p159 = scmp.eq.s32.totalorder %s16, 1
      %p160 = scmp.ne.s32.totalorder %s155, %s157
      %p161 = scmp.eq.s32.totalorder %s16, 0
      %p162 = por %p160, %p161
      %p163 = scmp.ne.s32.totalorder %s155, %s157
      %p164 = scmp.eq.s32.totalorder %s21, 1
      %p165 = por %p163, %p164
      %p166 = scmp.ne.s32.totalorder %s157, %s158
      %p167 = scmp.eq.s32.totalorder %s21, 0
      %p168 = por %p166, %p167
      %p169 = scmp.ne.s32.totalorder %s157, %s158
      %p170 = scmp.eq.s32.totalorder %s22, 1
      %p171 = por %p169, %p170
      %p173 = scmp.ne.s32.totalorder %s158, %s172
      %p174 = scmp.eq.s32.totalorder %s22, 0
      %p175 = por %p173, %p174
      %s176 = ssub.s32 %s16, %s23
      %p177 = scmp.eq.s32.totalorder %s176, 0
      %s179 = sadd.s32 %s178, 1
      %s180 = scalar_select %p177, %s178, %s179
      %p183 = pneg %p177
      %p184 = scmp.eq.s32.totalorder %s16, 1
      %p185 = por %p183, %p184
      %p186 = scmp.ne.s32.totalorder %s178, %s181
      %p187 = scmp.eq.s32.totalorder %s16, 0
      %p188 = por %p186, %p187
      %p189 = scmp.ne.s32.totalorder %s178, %s181
      %p190 = scmp.eq.s32.totalorder %s21, 1
      %p191 = por %p189, %p190
      %p192 = scmp.ne.s32.totalorder %s181, %s182
      %p193 = scmp.eq.s32.totalorder %s21, 0
      %p194 = por %p192, %p193
      %p195 = scmp.ne.s32.totalorder %s181, %s182
      %p196 = scmp.eq.s32.totalorder %s22, 1
      %p197 = por %p195, %p196
      %p199 = scmp.ne.s32.totalorder %s182, %s198
      %p200 = scmp.eq.s32.totalorder %s22, 0
      %p201 = por %p199, %p200
      %p202 = scmp.le.s32.totalorder 1, %s16
      %p203 = scmp.lt.s32.totalorder %s16, 3
      %p204 = pnand %p202, %p203
      %p205 = pneg %p204
      // Predicated region
      $region9: #{dqn_forward.3} parent=5 // pred_check
        _
      $region10: #{dqn_forward.3} parent=5 // pred_check_branch
        %207 = sbr.rel (%p204) target = $region12
      $region11: #{dqn_forward.3} parent=5 // pred_region
        %s208 = ssub.s32 %s16, 1
        // Predicated region
        $region13: #{dqn_forward.3} parent=11 // pred_check
          %p209 = pneg %p63
        $region14: #{dqn_forward.3} parent=11 // pred_check_branch
          %211 = sbr.rel (%p209) target = $region16
        $region15: #{dqn_forward.3} parent=11 // pred_region
          _
        $region16: #{dqn_forward.3} parent=11 // pred_fallthru
          _
        // Predicated region
        $region17: #{dqn_forward.3} parent=11 // pred_check
          %p212 = pneg %p84
        $region18: #{dqn_forward.3} parent=11 // pred_check_branch
          %214 = sbr.rel (%p212) target = $region20
        $region19: #{dqn_forward.3} parent=11 // pred_region
          _
        $region20: #{dqn_forward.3} parent=11 // pred_fallthru
          _
        // Predicated region
        $region21: #{dqn_forward.3} parent=11 // pred_check
          %p215 = pneg %p105
        $region22: #{dqn_forward.3} parent=11 // pred_check_branch
          %217 = sbr.rel (%p215) target = $region24
        $region23: #{dqn_forward.3} parent=11 // pred_region
          _
        $region24: #{dqn_forward.3} parent=11 // pred_fallthru
          _
        // Predicated region
        $region25: #{dqn_forward.3} parent=11 // pred_check
          %p218 = pneg %p126
        $region26: #{dqn_forward.3} parent=11 // pred_check_branch
          %220 = sbr.rel (%p218) target = $region28
        $region27: #{dqn_forward.3} parent=11 // pred_region
          _
        $region28: #{dqn_forward.3} parent=11 // pred_fallthru
          _
        // Predicated region
        $region29: #{dqn_forward.3} parent=11 // pred_check
          %p221 = pneg %p147
        $region30: #{dqn_forward.3} parent=11 // pred_check_branch
          %223 = sbr.rel (%p221) target = $region32
        $region31: #{dqn_forward.3} parent=11 // pred_region
          _
        $region32: #{dqn_forward.3} parent=11 // pred_fallthru
          _
        // Predicated region
        $region33: #{dqn_forward.3} parent=11 // pred_check
          %p224 = pneg %p168
        $region34: #{dqn_forward.3} parent=11 // pred_check_branch
          %226 = sbr.rel (%p224) target = $region36
        $region35: #{dqn_forward.3} parent=11 // pred_region
          _
        $region36: #{dqn_forward.3} parent=11 // pred_fallthru
          _
      $region12: #{dqn_forward.3} parent=5 // pred_fallthru
        _
      %p227 = scmp.lt.s32.totalorder %s16, 2
      // Predicated region
      $region37: #{dqn_forward.3} parent=5 // pred_check
        %p228 = pneg %p227
      $region38: #{dqn_forward.3} parent=5 // pred_check_branch
        %230 = sbr.rel (%p228) target = $region40
      $region39: #{dqn_forward.3} parent=5 // pred_region
        // Predicated region
        $region41: #{dqn_forward.3} parent=39 // pred_check
          %p231 = pneg %p36
        $region42: #{dqn_forward.3} parent=39 // pred_check_branch
          %233 = sbr.rel (%p231) target = $region44
        $region43: #{dqn_forward.3} parent=39 // pred_region
          %p234 = scmp.lt.s32.totalorder %s16, 1
          %s235 = scalar_select %p234, %s16, 1
          %s236 = smul.addr %s235, 22
          %s237 = smul.addr %s236, 4
          %s238 = scalar_lea.vmem %s0, %s237
        $region44: #{dqn_forward.3} parent=39 // pred_fallthru
          _
      $region40: #{dqn_forward.3} parent=5 // pred_fallthru
        _
      %p239 = scmp.le.s32.totalorder 1, %s16
      %p240 = scmp.lt.s32.totalorder %s16, 3
      %p241 = pnand %p239, %p240
      %p242 = pneg %p241
      // Predicated region
      $region45: #{dqn_forward.3} parent=5 // pred_check
        _
      $region46: #{dqn_forward.3} parent=5 // pred_check_branch
        %244 = sbr.rel (%p241) target = $region48
      $region47: #{dqn_forward.3} parent=5 // pred_region
        %s245 = ssub.s32 %s16, 1
        %p246 = scmp.lt.s32.totalorder %s21, 1
        %s247 = scalar_select %p246, %s21, 1
        %s248 = smul.addr %s247, 22
        %s249 = smul.addr %s248, 4
        %s250 = scalar_lea.vmem %s0, %s249
        %p251 = pneg %p42
        %p252 = pneg %p39
        %p253 = pneg %p63
        %p254 = pneg %p60
        %p255 = pneg %p84
        %p256 = pneg %p81
        %p257 = pneg %p105
        %p258 = pneg %p102
        %p259 = pneg %p126
        %p260 = pneg %p123
        %p261 = pneg %p147
        %p262 = pneg %p144
        %p263 = pneg %p168
        %p264 = pneg %p165
        %p265 = pneg %p194
        %p266 = pneg %p191
        %s267 = sand.u32 %s181, 1
        %s268 = scalar_lea.sflag [#allocation4], %s267
        %s269 = sand.u32 %s181, 1
        %s270 = scalar_lea.vmem [#allocation3], %s269
        %p271 = scmp.lt.s32.totalorder %s21, 1
        %s272 = scalar_select %p271, %s21, 1
        %s273 = smul.addr %s272, 22
        %s274 = smul.addr %s273, 4
        %s275 = scalar_lea.vmem %s0, %s274
        %v277 = vld [vmem:[%s275] sm:$0xff]
        %v278 = vld [vmem:[%s275 + $0x8] sm:$0xff]
        %v279 = vld [vmem:[%s275 + $0x10] sm:$0xff]
        %v280 = vld [vmem:[%s275 + $0x18] sm:$0xff]
        %v281 = vld [vmem:[%s275 + $0x20] sm:$0xff]
        %v282 = vld [vmem:[%s275 + $0x28] sm:$0xff]
        %v283 = vld [vmem:[%s275 + $0x30] sm:$0xff]
        %v284 = vld [vmem:[%s275 + $0x38] sm:$0xff]
        %v285 = vld [vmem:[%s275 + $0x40] sm:$0xff]
        %v286 = vld [vmem:[%s275 + $0x48] sm:$0xff]
        %v287 = vld [vmem:[%s275 + $0x50] sm:$0x11]
        %v288 = vld [vmem:[%s1] sm:$0xf]
        %v289 = vld [vmem:[%s1 + $0x4] sm:$0xf]
        %v290 = vld [vmem:[%s1 + $0x8] sm:$0xf]
        %v291 = vld [vmem:[%s1 + $0xc] sm:$0xf]
        %v292 = vld [vmem:[%s1 + $0x10] sm:$0xf]
        %v293 = vld [vmem:[%s1 + $0x14] sm:$0xf]
        %v294 = vld [vmem:[%s1 + $0x18] sm:$0xf]
        %v295 = vld [vmem:[%s1 + $0x1c] sm:$0xf]
        %v296 = vld [vmem:[%s1 + $0x20] sm:$0xf]
        %v297 = vld [vmem:[%s1 + $0x24] sm:$0xf]
        %v298 = vld [vmem:[%s1 + $0x28] sm:$0xf]
        %v299 = vld [vmem:[%s1 + $0x2c] sm:$0xf]
        %v300 = vld [vmem:[%s1 + $0x30] sm:$0xf]
        %v301 = vld [vmem:[%s1 + $0x34] sm:$0xf]
        %v302 = vld [vmem:[%s1 + $0x38] sm:$0xf]
        %v303 = vld [vmem:[%s1 + $0x3c] sm:$0xf]
        %v304 = vld [vmem:[%s1 + $0x40] sm:$0xf]
        %v305 = vld [vmem:[%s1 + $0x44] sm:$0xf]
        %v306 = vld [vmem:[%s1 + $0x48] sm:$0xf]
        %v307 = vld [vmem:[%s1 + $0x4c] sm:$0xf]
        %v308 = vld [vmem:[%s1 + $0x50] sm:$0xf]
        %v309 = vld [vmem:[%s1 + $0x54] sm:$0xf]
        %v310 = vld [vmem:[%s1 + $0x58] sm:$0xf]
        %v311 = vld [vmem:[%s1 + $0x5c] sm:$0xf]
        %v312 = vld [vmem:[%s1 + $0x60] sm:$0xf]
        %v313 = vld [vmem:[%s1 + $0x64] sm:$0xf]
        %v314 = vld [vmem:[%s1 + $0x68] sm:$0xf]
        %v315 = vld [vmem:[%s1 + $0x6c] sm:$0xf]
        %v316 = vld [vmem:[%s1 + $0x70] sm:$0xf]
        %v317 = vld [vmem:[%s1 + $0x74] sm:$0xf]
        %v318 = vld [vmem:[%s1 + $0x78] sm:$0xf]
        %v319 = vld [vmem:[%s1 + $0x7c] sm:$0xf]
        %v320 = vld [vmem:[%s2] sm:$0x1]
        %v322 = vlaneseq
        %v323 = vshrl.u32 %v322, 7
        %v324 = vsub.s32 0, %v323
        %v325 = vrot.slane %v320, %v324
        %v338 = vunpack.c.l.b16 %v277
        %v339 = vunpack.c.h.b16 %v277
        %v340 = vunpack.c.l.b16 %v278
        %v341 = vunpack.c.h.b16 %v278
        %v342 = vunpack.c.l.b16 %v279
        %v343 = vunpack.c.h.b16 %v279
        %v344 = vunpack.c.l.b16 %v280
        %v345 = vunpack.c.h.b16 %v280
        %v346 = vunpack.c.l.b16 %v281
        %v347 = vunpack.c.h.b16 %v281
        %v348 = vunpack.c.l.b16 %v282
        %v349 = vunpack.c.h.b16 %v282
        %v350 = vunpack.c.l.b16 %v283
        %v351 = vunpack.c.h.b16 %v283
        %v352 = vunpack.c.l.b16 %v284
        %v353 = vunpack.c.h.b16 %v284
        %v354 = vunpack.c.l.b16 %v285
        %v355 = vunpack.c.h.b16 %v285
        %v356 = vunpack.c.l.b16 %v286
        %v357 = vunpack.c.h.b16 %v286
        %v358 = vunpack.c.l.b16 %v287
        %v359 = vunpack.c.h.b16 %v287
        %v360 = vpack.c.b16 %v340, %v338
        %v361 = vpack.c.b16 %v341, %v339
        %v362 = vpack.c.b16 %v344, %v342
        %v363 = vpack.c.b16 %v345, %v343
        %v364 = vpack.c.b16 %v348, %v346
        %v365 = vpack.c.b16 %v349, %v347
        %v366 = vpack.c.b16 %v352, %v350
        %v367 = vpack.c.b16 %v353, %v351
        %v368 = vpack.c.b16 %v356, %v354
        %v369 = vpack.c.b16 %v357, %v355
        %v370 = vpack.c.b16 %v358, %v358
        %v371 = vpack.c.b16 %v359, %v359
        %v416 = vunpack.c.l.b16 %v288
        %v417 = vunpack.c.l.b16 %v289
        %v418 = vunpack.c.l.b16 %v290
        %v419 = vunpack.c.l.b16 %v291
        %v420 = vunpack.c.l.b16 %v292
        %v421 = vunpack.c.l.b16 %v293
        %v422 = vunpack.c.l.b16 %v294
        %v423 = vunpack.c.l.b16 %v295
        %v424 = vunpack.c.l.b16 %v296
        %v425 = vunpack.c.l.b16 %v297
        %v426 = vunpack.c.l.b16 %v298
        %v427 = vunpack.c.l.b16 %v299
        %v428 = vunpack.c.l.b16 %v300
        %v429 = vunpack.c.l.b16 %v301
        %v430 = vunpack.c.l.b16 %v302
        %v431 = vunpack.c.l.b16 %v303
        %v432 = vunpack.c.l.b16 %v304
        %v433 = vunpack.c.l.b16 %v305
        %v434 = vunpack.c.l.b16 %v306
        %v435 = vunpack.c.l.b16 %v307
        %v436 = vunpack.c.l.b16 %v308
        %v437 = vunpack.c.l.b16 %v309
        %v438 = vunpack.c.l.b16 %v310
        %v439 = vunpack.c.l.b16 %v311
        %v440 = vunpack.c.l.b16 %v312
        %v441 = vunpack.c.l.b16 %v313
        %v442 = vunpack.c.l.b16 %v314
        %v443 = vunpack.c.l.b16 %v315
        %v444 = vunpack.c.l.b16 %v316
        %v445 = vunpack.c.l.b16 %v317
        %v446 = vunpack.c.l.b16 %v318
        %v447 = vunpack.c.l.b16 %v319
        %v448 = vpack.c.b16 %v417, %v416
        %v449 = vpack.c.b16 %v419, %v418
        %v450 = vpack.c.b16 %v421, %v420
        %v451 = vpack.c.b16 %v423, %v422
        %v452 = vpack.c.b16 %v425, %v424
        %v453 = vpack.c.b16 %v427, %v426
        %v454 = vpack.c.b16 %v429, %v428
        %v455 = vpack.c.b16 %v431, %v430
        %v456 = vpack.c.b16 %v433, %v432
        %v457 = vpack.c.b16 %v435, %v434
        %v458 = vpack.c.b16 %v437, %v436
        %v459 = vpack.c.b16 %v439, %v438
        %v460 = vpack.c.b16 %v441, %v440
        %v461 = vpack.c.b16 %v443, %v442
        %v462 = vpack.c.b16 %v445, %v444
        %v463 = vpack.c.b16 %v447, %v446
        %480 = vmatprep.subr.bf16.mxu0 0
        %481 = vmatpush1.bf16.msra.mxu0 %v455
        %482 = vmatprep.subr.bf16.mxu0 0
        %483 = vmatpush1.bf16.msra.mxu0 %v454
        %484 = vmatprep.subr.bf16.mxu0 0
        %485 = vmatpush1.bf16.msra.mxu0 %v453
        %486 = vmatprep.subr.bf16.mxu0 0
        %487 = vmatpush1.bf16.msra.mxu0 %v452
        %488 = vmatprep.subr.bf16.mxu0 0
        %489 = vmatpush1.bf16.msra.mxu0 %v451
        %490 = vmatprep.subr.bf16.mxu0 0
        %491 = vmatpush1.bf16.msra.mxu0 %v450
        %492 = vmatprep.subr.bf16.mxu0 0
        %493 = vmatpush1.bf16.msra.mxu0 %v449
        %494 = vmatprep.subr.bf16.mxu0 0
        %495 = vmatpush1.bf16.msra.mxu0 %v448
        %496 = vmatprep.subr.bf16.mxu0 0
        %497 = vmatpush2.bf16.msra.mxu0 %v463
        %498 = vmatprep.subr.bf16.mxu0 0
        %499 = vmatpush2.bf16.msra.mxu0 %v462
        %500 = vmatprep.subr.bf16.mxu0 0
        %501 = vmatpush2.bf16.msra.mxu0 %v461
        %502 = vmatprep.subr.bf16.mxu0 0
        %503 = vmatpush2.bf16.msra.mxu0 %v460
        %504 = vmatprep.subr.bf16.mxu0 0
        %505 = vmatpush2.bf16.msra.mxu0 %v459
        %506 = vmatprep.subr.bf16.mxu0 0
        %507 = vmatpush2.bf16.msra.mxu0 %v458
        %508 = vmatprep.subr.bf16.mxu0 0
        %509 = vmatpush2.bf16.msra.mxu0 %v457
        %510 = vmatprep.subr.bf16.mxu0 0
        %511 = vmatpush2.bf16.msra.mxu0 %v456
        %512 = vmatprep.mubr.bf16.mxu0 %v361
        %513 = vmatmul.mubr.bf16.gmra.mxu0 %v360
        %v514 = vpop.f32.mrf.mxu0
        %v515 = vadd.f32 %v325, %v514
        %v516 = vpop.f32.mrf.mxu0
        %v517 = vpop.f32.mrf.mxu0
        %v518 = vadd.f32 %v325, %v517
        %v519 = vpop.f32.mrf.mxu0
        %520 = vmatprep.mubr.bf16.mxu0 %v363
        %521 = vmatmul.mubr.bf16.gmra.mxu0 %v362
        %v522 = vpop.f32.mrf.mxu0
        %v523 = vadd.f32 %v325, %v522
        %v524 = vpop.f32.mrf.mxu0
        %v525 = vpop.f32.mrf.mxu0
        %v526 = vadd.f32 %v325, %v525
        %v527 = vpop.f32.mrf.mxu0
        %528 = vmatprep.mubr.bf16.mxu0 %v365
        %529 = vmatmul.mubr.bf16.gmra.mxu0 %v364
        %v530 = vpop.f32.mrf.mxu0
        %v531 = vadd.f32 %v325, %v530
        %v532 = vpop.f32.mrf.mxu0
        %v533 = vpop.f32.mrf.mxu0
        %v534 = vadd.f32 %v325, %v533
        %v535 = vpop.f32.mrf.mxu0
        %536 = vmatprep.mubr.bf16.mxu0 %v367
        %537 = vmatmul.mubr.bf16.gmra.mxu0 %v366
        %v538 = vpop.f32.mrf.mxu0
        %v539 = vadd.f32 %v325, %v538
        %v540 = vpop.f32.mrf.mxu0
        %v541 = vpop.f32.mrf.mxu0
        %v542 = vadd.f32 %v325, %v541
        %v543 = vpop.f32.mrf.mxu0
        %544 = vmatprep.mubr.bf16.mxu0 %v369
        %545 = vmatmul.mubr.bf16.gmra.mxu0 %v368
        %v546 = vpop.f32.mrf.mxu0
        %v547 = vadd.f32 %v325, %v546
        %v548 = vpop.f32.mrf.mxu0
        %v549 = vpop.f32.mrf.mxu0
        %v550 = vadd.f32 %v325, %v549
        %v551 = vpop.f32.mrf.mxu0
        %552 = vmatprep.mubr.bf16.mxu0 %v371
        %553 = vmatmul.mubr.bf16.gmra.mxu0 %v370
        %v554 = vpop.f32.mrf.mxu0
        %v555 = vadd.f32 %v325, %v554
        %v556 = vpop.f32.mrf.mxu0
        %v557 = vpop.f32.mrf.mxu0
        %v558 = vpop.f32.mrf.mxu0
        %559 = vdwg.mxu0
        %v560 = vmax.f32 %v515, 0.0
        %v561 = vmax.f32 %v518, 0.0
        %v562 = vmax.f32 %v523, 0.0
        %v563 = vmax.f32 %v526, 0.0
        %v564 = vmax.f32 %v531, 0.0
        %v565 = vmax.f32 %v534, 0.0
        %v566 = vmax.f32 %v539, 0.0
        %v567 = vmax.f32 %v542, 0.0
        %v568 = vmax.f32 %v547, 0.0
        %v569 = vmax.f32 %v550, 0.0
        %v570 = vmax.f32 %v555, 0.0
        %v571 = vlaneseq
        %vm572 = vcmp.ge.s32.totalorder %v571, 0
        %vm573 = vcmp.lt.s32.totalorder %v571, 32
        %vm574 = vmand %vm572, %vm573
        %575 = vst.msk [vmem:[#allocation2] sm:$0x1] %vm574, %v560
        %v578 = vunpack.c.l.s4 1966171168
        %v579 = vunpack.c.0.s8 %v578
        %v580 = vlaneseq
        %v581 = vshrl.u32 %v580, 7
        %v582 = vsub.s32 %v579, %v581
        %v583 = vrot.slane %v560, %v582
        %v584 = vcombine.high %v583, %v583
        %v586 = vunpack.c.l.s4 1966171168
        %v587 = vunpack.c.0.s8 %v586
        %v588 = vlaneseq
        %v589 = vshrl.u32 %v588, 7
        %v590 = vsub.s32 %v587, %v589
        %v591 = vrot.slane %v583, %v590
        %v593 = vunpack.c.l.s4 1966171168
        %v594 = vunpack.c.0.s8 %v593
        %v595 = vlaneseq
        %v596 = vshrl.u32 %v595, 7
        %v597 = vsub.s32 %v594, %v596
        %v598 = vrot.slane %v584, %v597
        %599 = vrot.lane.b32.xlu0 %v598, 32
        %v600 = vpop.permute.xlu0 %599
        %vm602 = vcmp.ge.s32.totalorder %v571, 32
        %vm603 = vcmp.lt.s32.totalorder %v571, 64
        %vm604 = vmand %vm602, %vm603
        %605 = vst.msk [vmem:[#allocation2] sm:$0x1] %vm604, %v600
        %v606 = vcombine.high %v591, %v591
        %607 = vrot.lane.b32.xlu0 %v606, 64
        %v608 = vpop.permute.xlu0 %607
        %vm610 = vcmp.ge.s32.totalorder %v571, 64
        %vm611 = vcmp.lt.s32.totalorder %v571, 96
        %vm612 = vmand %vm610, %vm611
        %613 = vst.msk [vmem:[#allocation2] sm:$0x1] %vm612, %v608
        %v614 = vcombine.high %v598, %v598
        %615 = vrot.lane.b32.xlu0 %v614, 96
        %v616 = vpop.permute.xlu0 %615
        %vm618 = vcmp.ge.s32.totalorder %v571, 96
        %vm619 = vcmp.lt.s32.totalorder %v571, 128
        %vm620 = vmand %vm618, %vm619
        %621 = vst.msk [vmem:[#allocation2] sm:$0x1] %vm620, %v616
        %v622 = vcombine.high %v560, %v560
        %v624 = vunpack.c.l.s4 1966171168
        %v625 = vunpack.c.0.s8 %v624
        %v626 = vlaneseq
        %v627 = vshrl.u32 %v626, 7
        %v628 = vsub.s32 %v625, %v627
        %v629 = vrot.slane %v622, %v628
        %v631 = vunpack.c.l.s4 1966171168
        %v632 = vunpack.c.0.s8 %v631
        %v633 = vlaneseq
        %v634 = vshrl.u32 %v633, 7
        %v635 = vsub.s32 %v632, %v634
        %v636 = vrot.slane %v629, %v635
        %638 = vst.msk [vmem:[#allocation2 + $0x1] sm:$0x1] %vm574, %v636
        %v639 = vcombine.high %v629, %v629
        %v641 = vunpack.c.l.s4 1966171168
        %v642 = vunpack.c.0.s8 %v641
        %v643 = vlaneseq
        %v644 = vshrl.u32 %v643, 7
        %v645 = vsub.s32 %v642, %v644
        %v646 = vrot.slane %v639, %v645
        %647 = vrot.lane.b32.xlu0 %v646, 32
        %v648 = vpop.permute.xlu0 %647
        %650 = vst.msk [vmem:[#allocation2 + $0x1] sm:$0x1] %vm604, %v648
        %v651 = vcombine.high %v636, %v636
        %652 = vrot.lane.b32.xlu0 %v651, 64
        %v653 = vpop.permute.xlu0 %652
        %655 = vst.msk [vmem:[#allocation2 + $0x1] sm:$0x1] %vm612, %v653
        %v656 = vcombine.high %v646, %v646
        %657 = vrot.lane.b32.xlu0 %v656, 96
        %v658 = vpop.permute.xlu0 %657
        %660 = vst.msk [vmem:[#allocation2 + $0x1] sm:$0x1] %vm620, %v658
        %661 = vst.msk [vmem:[#allocation2 + $0x2] sm:$0x1] %vm574, %v561
        %v664 = vunpack.c.l.s4 1966171168
        %v665 = vunpack.c.0.s8 %v664
        %v666 = vlaneseq
        %v667 = vshrl.u32 %v666, 7
        %v668 = vsub.s32 %v665, %v667
        %v669 = vrot.slane %v561, %v668
        %v670 = vcombine.high %v669, %v669
        %v672 = vunpack.c.l.s4 1966171168
        %v673 = vunpack.c.0.s8 %v672
        %v674 = vlaneseq
        %v675 = vshrl.u32 %v674, 7
        %v676 = vsub.s32 %v673, %v675
        %v677 = vrot.slane %v669, %v676
        %v679 = vunpack.c.l.s4 1966171168
        %v680 = vunpack.c.0.s8 %v679
        %v681 = vlaneseq
        %v682 = vshrl.u32 %v681, 7
        %v683 = vsub.s32 %v680, %v682
        %v684 = vrot.slane %v670, %v683
        %685 = vrot.lane.b32.xlu0 %v684, 32
        %v686 = vpop.permute.xlu0 %685
        %688 = vst.msk [vmem:[#allocation2 + $0x2] sm:$0x1] %vm604, %v686
        %v689 = vcombine.high %v677, %v677
        %690 = vrot.lane.b32.xlu0 %v689, 64
        %v691 = vpop.permute.xlu0 %690
        %693 = vst.msk [vmem:[#allocation2 + $0x2] sm:$0x1] %vm612, %v691
        %v694 = vcombine.high %v684, %v684
        %695 = vrot.lane.b32.xlu0 %v694, 96
        %v696 = vpop.permute.xlu0 %695
        %698 = vst.msk [vmem:[#allocation2 + $0x2] sm:$0x1] %vm620, %v696
        %v699 = vcombine.high %v561, %v561
        %v701 = vunpack.c.l.s4 1966171168
        %v702 = vunpack.c.0.s8 %v701
        %v703 = vlaneseq
        %v704 = vshrl.u32 %v703, 7
        %v705 = vsub.s32 %v702, %v704
        %v706 = vrot.slane %v699, %v705
        %v708 = vunpack.c.l.s4 1966171168
        %v709 = vunpack.c.0.s8 %v708
        %v710 = vlaneseq
        %v711 = vshrl.u32 %v710, 7
        %v712 = vsub.s32 %v709, %v711
        %v713 = vrot.slane %v706, %v712
        %715 = vst.msk [vmem:[#allocation2 + $0x3] sm:$0x1] %vm574, %v713
        %v716 = vcombine.high %v706, %v706
        %v718 = vunpack.c.l.s4 1966171168
        %v719 = vunpack.c.0.s8 %v718
        %v720 = vlaneseq
        %v721 = vshrl.u32 %v720, 7
        %v722 = vsub.s32 %v719, %v721
        %v723 = vrot.slane %v716, %v722
        %724 = vrot.lane.b32.xlu0 %v723, 32
        %v725 = vpop.permute.xlu0 %724
        %727 = vst.msk [vmem:[#allocation2 + $0x3] sm:$0x1] %vm604, %v725
        %v728 = vcombine.high %v713, %v713
        %729 = vrot.lane.b32.xlu0 %v728, 64
        %v730 = vpop.permute.xlu0 %729
        %732 = vst.msk [vmem:[#allocation2 + $0x3] sm:$0x1] %vm612, %v730
        %v733 = vcombine.high %v723, %v723
        %734 = vrot.lane.b32.xlu0 %v733, 96
        %v735 = vpop.permute.xlu0 %734
        %737 = vst.msk [vmem:[#allocation2 + $0x3] sm:$0x1] %vm620, %v735
        %738 = vst.msk [vmem:[#allocation2 + $0x4] sm:$0x1] %vm574, %v562
        %v741 = vunpack.c.l.s4 1966171168
        %v742 = vunpack.c.0.s8 %v741
        %v743 = vlaneseq
        %v744 = vshrl.u32 %v743, 7
        %v745 = vsub.s32 %v742, %v744
        %v746 = vrot.slane %v562, %v745
        %v747 = vcombine.high %v746, %v746
        %v749 = vunpack.c.l.s4 1966171168
        %v750 = vunpack.c.0.s8 %v749
        %v751 = vlaneseq
        %v752 = vshrl.u32 %v751, 7
        %v753 = vsub.s32 %v750, %v752
        %v754 = vrot.slane %v746, %v753
        %v756 = vunpack.c.l.s4 1966171168
        %v757 = vunpack.c.0.s8 %v756
        %v758 = vlaneseq
        %v759 = vshrl.u32 %v758, 7
        %v760 = vsub.s32 %v757, %v759
        %v761 = vrot.slane %v747, %v760
        %762 = vrot.lane.b32.xlu0 %v761, 32
        %v763 = vpop.permute.xlu0 %762
        %765 = vst.msk [vmem:[#allocation2 + $0x4] sm:$0x1] %vm604, %v763
        %v766 = vcombine.high %v754, %v754
        %767 = vrot.lane.b32.xlu0 %v766, 64
        %v768 = vpop.permute.xlu0 %767
        %770 = vst.msk [vmem:[#allocation2 + $0x4] sm:$0x1] %vm612, %v768
        %v771 = vcombine.high %v761, %v761
        %772 = vrot.lane.b32.xlu0 %v771, 96
        %v773 = vpop.permute.xlu0 %772
        %775 = vst.msk [vmem:[#allocation2 + $0x4] sm:$0x1] %vm620, %v773
        %v776 = vcombine.high %v562, %v562
        %v778 = vunpack.c.l.s4 1966171168
        %v779 = vunpack.c.0.s8 %v778
        %v780 = vlaneseq
        %v781 = vshrl.u32 %v780, 7
        %v782 = vsub.s32 %v779, %v781
        %v783 = vrot.slane %v776, %v782
        %v785 = vunpack.c.l.s4 1966171168
        %v786 = vunpack.c.0.s8 %v785
        %v787 = vlaneseq
        %v788 = vshrl.u32 %v787, 7
        %v789 = vsub.s32 %v786, %v788
        %v790 = vrot.slane %v783, %v789
        %792 = vst.msk [vmem:[#allocation2 + $0x5] sm:$0x1] %vm574, %v790
        %v793 = vcombine.high %v783, %v783
        %v795 = vunpack.c.l.s4 1966171168
        %v796 = vunpack.c.0.s8 %v795
        %v797 = vlaneseq
        %v798 = vshrl.u32 %v797, 7
        %v799 = vsub.s32 %v796, %v798
        %v800 = vrot.slane %v793, %v799
        %801 = vrot.lane.b32.xlu0 %v800, 32
        %v802 = vpop.permute.xlu0 %801
        %804 = vst.msk [vmem:[#allocation2 + $0x5] sm:$0x1] %vm604, %v802
        %v805 = vcombine.high %v790, %v790
        %806 = vrot.lane.b32.xlu0 %v805, 64
        %v807 = vpop.permute.xlu0 %806
        %809 = vst.msk [vmem:[#allocation2 + $0x5] sm:$0x1] %vm612, %v807
        %v810 = vcombine.high %v800, %v800
        %811 = vrot.lane.b32.xlu0 %v810, 96
        %v812 = vpop.permute.xlu0 %811
        %814 = vst.msk [vmem:[#allocation2 + $0x5] sm:$0x1] %vm620, %v812
        %815 = vst.msk [vmem:[#allocation2 + $0x6] sm:$0x1] %vm574, %v563
        %v818 = vunpack.c.l.s4 1966171168
        %v819 = vunpack.c.0.s8 %v818
        %v820 = vlaneseq
        %v821 = vshrl.u32 %v820, 7
        %v822 = vsub.s32 %v819, %v821
        %v823 = vrot.slane %v563, %v822
        %v824 = vcombine.high %v823, %v823
        %v826 = vunpack.c.l.s4 1966171168
        %v827 = vunpack.c.0.s8 %v826
        %v828 = vlaneseq
        %v829 = vshrl.u32 %v828, 7
        %v830 = vsub.s32 %v827, %v829
        %v831 = vrot.slane %v823, %v830
        %v833 = vunpack.c.l.s4 1966171168
        %v834 = vunpack.c.0.s8 %v833
        %v835 = vlaneseq
        %v836 = vshrl.u32 %v835, 7
        %v837 = vsub.s32 %v834, %v836
        %v838 = vrot.slane %v824, %v837
        %839 = vrot.lane.b32.xlu0 %v838, 32
        %v840 = vpop.permute.xlu0 %839
        %842 = vst.msk [vmem:[#allocation2 + $0x6] sm:$0x1] %vm604, %v840
        %v843 = vcombine.high %v831, %v831
        %844 = vrot.lane.b32.xlu0 %v843, 64
        %v845 = vpop.permute.xlu0 %844
        %847 = vst.msk [vmem:[#allocation2 + $0x6] sm:$0x1] %vm612, %v845
        %v848 = vcombine.high %v838, %v838
        %849 = vrot.lane.b32.xlu0 %v848, 96
        %v850 = vpop.permute.xlu0 %849
        %852 = vst.msk [vmem:[#allocation2 + $0x6] sm:$0x1] %vm620, %v850
        %v853 = vcombine.high %v563, %v563
        %v855 = vunpack.c.l.s4 1966171168
        %v856 = vunpack.c.0.s8 %v855
        %v857 = vlaneseq
        %v858 = vshrl.u32 %v857, 7
        %v859 = vsub.s32 %v856, %v858
        %v860 = vrot.slane %v853, %v859
        %v862 = vunpack.c.l.s4 1966171168
        %v863 = vunpack.c.0.s8 %v862
        %v864 = vlaneseq
        %v865 = vshrl.u32 %v864, 7
        %v866 = vsub.s32 %v863, %v865
        %v867 = vrot.slane %v860, %v866
        %869 = vst.msk [vmem:[#allocation2 + $0x7] sm:$0x1] %vm574, %v867
        %v870 = vcombine.high %v860, %v860
        %v872 = vunpack.c.l.s4 1966171168
        %v873 = vunpack.c.0.s8 %v872
        %v874 = vlaneseq
        %v875 = vshrl.u32 %v874, 7
        %v876 = vsub.s32 %v873, %v875
        %v877 = vrot.slane %v870, %v876
        %878 = vrot.lane.b32.xlu0 %v877, 32
        %v879 = vpop.permute.xlu0 %878
        %881 = vst.msk [vmem:[#allocation2 + $0x7] sm:$0x1] %vm604, %v879
        %v882 = vcombine.high %v867, %v867
        %883 = vrot.lane.b32.xlu0 %v882, 64
        %v884 = vpop.permute.xlu0 %883
        %886 = vst.msk [vmem:[#allocation2 + $0x7] sm:$0x1] %vm612, %v884
        %v887 = vcombine.high %v877, %v877
        %888 = vrot.lane.b32.xlu0 %v887, 96
        %v889 = vpop.permute.xlu0 %888
        %891 = vst.msk [vmem:[#allocation2 + $0x7] sm:$0x1] %vm620, %v889
        %892 = vst.msk [vmem:[#allocation2 + $0x8] sm:$0x1] %vm574, %v564
        %v895 = vunpack.c.l.s4 1966171168
        %v896 = vunpack.c.0.s8 %v895
        %v897 = vlaneseq
        %v898 = vshrl.u32 %v897, 7
        %v899 = vsub.s32 %v896, %v898
        %v900 = vrot.slane %v564, %v899
        %v901 = vcombine.high %v900, %v900
        %v903 = vunpack.c.l.s4 1966171168
        %v904 = vunpack.c.0.s8 %v903
        %v905 = vlaneseq
        %v906 = vshrl.u32 %v905, 7
        %v907 = vsub.s32 %v904, %v906
        %v908 = vrot.slane %v900, %v907
        %v910 = vunpack.c.l.s4 1966171168
        %v911 = vunpack.c.0.s8 %v910
        %v912 = vlaneseq
        %v913 = vshrl.u32 %v912, 7
        %v914 = vsub.s32 %v911, %v913
        %v915 = vrot.slane %v901, %v914
        %916 = vrot.lane.b32.xlu0 %v915, 32
        %v917 = vpop.permute.xlu0 %916
        %919 = vst.msk [vmem:[#allocation2 + $0x8] sm:$0x1] %vm604, %v917
        %v920 = vcombine.high %v908, %v908
        %921 = vrot.lane.b32.xlu0 %v920, 64
        %v922 = vpop.permute.xlu0 %921
        %924 = vst.msk [vmem:[#allocation2 + $0x8] sm:$0x1] %vm612, %v922
        %v925 = vcombine.high %v915, %v915
        %926 = vrot.lane.b32.xlu0 %v925, 96
        %v927 = vpop.permute.xlu0 %926
        %929 = vst.msk [vmem:[#allocation2 + $0x8] sm:$0x1] %vm620, %v927
        %v930 = vcombine.high %v564, %v564
        %v932 = vunpack.c.l.s4 1966171168
        %v933 = vunpack.c.0.s8 %v932
        %v934 = vlaneseq
        %v935 = vshrl.u32 %v934, 7
        %v936 = vsub.s32 %v933, %v935
        %v937 = vrot.slane %v930, %v936
        %v939 = vunpack.c.l.s4 1966171168
        %v940 = vunpack.c.0.s8 %v939
        %v941 = vlaneseq
        %v942 = vshrl.u32 %v941, 7
        %v943 = vsub.s32 %v940, %v942
        %v944 = vrot.slane %v937, %v943
        %946 = vst.msk [vmem:[#allocation2 + $0x9] sm:$0x1] %vm574, %v944
        %v947 = vcombine.high %v937, %v937
        %v949 = vunpack.c.l.s4 1966171168
        %v950 = vunpack.c.0.s8 %v949
        %v951 = vlaneseq
        %v952 = vshrl.u32 %v951, 7
        %v953 = vsub.s32 %v950, %v952
        %v954 = vrot.slane %v947, %v953
        %955 = vrot.lane.b32.xlu0 %v954, 32
        %v956 = vpop.permute.xlu0 %955
        %958 = vst.msk [vmem:[#allocation2 + $0x9] sm:$0x1] %vm604, %v956
        %v959 = vcombine.high %v944, %v944
        %960 = vrot.lane.b32.xlu0 %v959, 64
        %v961 = vpop.permute.xlu0 %960
        %963 = vst.msk [vmem:[#allocation2 + $0x9] sm:$0x1] %vm612, %v961
        %v964 = vcombine.high %v954, %v954
        %965 = vrot.lane.b32.xlu0 %v964, 96
        %v966 = vpop.permute.xlu0 %965
        %968 = vst.msk [vmem:[#allocation2 + $0x9] sm:$0x1] %vm620, %v966
        %969 = vst.msk [vmem:[#allocation2 + $0xa] sm:$0x1] %vm574, %v565
        %v972 = vunpack.c.l.s4 1966171168
        %v973 = vunpack.c.0.s8 %v972
        %v974 = vlaneseq
        %v975 = vshrl.u32 %v974, 7
        %v976 = vsub.s32 %v973, %v975
        %v977 = vrot.slane %v565, %v976
        %v978 = vcombine.high %v977, %v977
        %v980 = vunpack.c.l.s4 1966171168
        %v981 = vunpack.c.0.s8 %v980
        %v982 = vlaneseq
        %v983 = vshrl.u32 %v982, 7
        %v984 = vsub.s32 %v981, %v983
        %v985 = vrot.slane %v977, %v984
        %v987 = vunpack.c.l.s4 1966171168
        %v988 = vunpack.c.0.s8 %v987
        %v989 = vlaneseq
        %v990 = vshrl.u32 %v989, 7
        %v991 = vsub.s32 %v988, %v990
        %v992 = vrot.slane %v978, %v991
        %993 = vrot.lane.b32.xlu0 %v992, 32
        %v994 = vpop.permute.xlu0 %993
        %996 = vst.msk [vmem:[#allocation2 + $0xa] sm:$0x1] %vm604, %v994
        %v997 = vcombine.high %v985, %v985
        %998 = vrot.lane.b32.xlu0 %v997, 64
        %v999 = vpop.permute.xlu0 %998
        %1001 = vst.msk [vmem:[#allocation2 + $0xa] sm:$0x1] %vm612, %v999
        %v1002 = vcombine.high %v992, %v992
        %1003 = vrot.lane.b32.xlu0 %v1002, 96
        %v1004 = vpop.permute.xlu0 %1003
        %1006 = vst.msk [vmem:[#allocation2 + $0xa] sm:$0x1] %vm620, %v1004
        %v1007 = vcombine.high %v565, %v565
        %v1009 = vunpack.c.l.s4 1966171168
        %v1010 = vunpack.c.0.s8 %v1009
        %v1011 = vlaneseq
        %v1012 = vshrl.u32 %v1011, 7
        %v1013 = vsub.s32 %v1010, %v1012
        %v1014 = vrot.slane %v1007, %v1013
        %v1016 = vunpack.c.l.s4 1966171168
        %v1017 = vunpack.c.0.s8 %v1016
        %v1018 = vlaneseq
        %v1019 = vshrl.u32 %v1018, 7
        %v1020 = vsub.s32 %v1017, %v1019
        %v1021 = vrot.slane %v1014, %v1020
        %1023 = vst.msk [vmem:[#allocation2 + $0xb] sm:$0x1] %vm574, %v1021
        %v1024 = vcombine.high %v1014, %v1014
        %v1026 = vunpack.c.l.s4 1966171168
        %v1027 = vunpack.c.0.s8 %v1026
        %v1028 = vlaneseq
        %v1029 = vshrl.u32 %v1028, 7
        %v1030 = vsub.s32 %v1027, %v1029
        %v1031 = vrot.slane %v1024, %v1030
        %1032 = vrot.lane.b32.xlu0 %v1031, 32
        %v1033 = vpop.permute.xlu0 %1032
        %1035 = vst.msk [vmem:[#allocation2 + $0xb] sm:$0x1] %vm604, %v1033
        %v1036 = vcombine.high %v1021, %v1021
        %1037 = vrot.lane.b32.xlu0 %v1036, 64
        %v1038 = vpop.permute.xlu0 %1037
        %1040 = vst.msk [vmem:[#allocation2 + $0xb] sm:$0x1] %vm612, %v1038
        %v1041 = vcombine.high %v1031, %v1031
        %1042 = vrot.lane.b32.xlu0 %v1041, 96
        %v1043 = vpop.permute.xlu0 %1042
        %1045 = vst.msk [vmem:[#allocation2 + $0xb] sm:$0x1] %vm620, %v1043
        %1046 = vst.msk [vmem:[#allocation2 + $0xc] sm:$0x1] %vm574, %v566
        %v1049 = vunpack.c.l.s4 1966171168
        %v1050 = vunpack.c.0.s8 %v1049
        %v1051 = vlaneseq
        %v1052 = vshrl.u32 %v1051, 7
        %v1053 = vsub.s32 %v1050, %v1052
        %v1054 = vrot.slane %v566, %v1053
        %v1055 = vcombine.high %v1054, %v1054
        %v1057 = vunpack.c.l.s4 1966171168
        %v1058 = vunpack.c.0.s8 %v1057
        %v1059 = vlaneseq
        %v1060 = vshrl.u32 %v1059, 7
        %v1061 = vsub.s32 %v1058, %v1060
        %v1062 = vrot.slane %v1054, %v1061
        %v1064 = vunpack.c.l.s4 1966171168
        %v1065 = vunpack.c.0.s8 %v1064
        %v1066 = vlaneseq
        %v1067 = vshrl.u32 %v1066, 7
        %v1068 = vsub.s32 %v1065, %v1067
        %v1069 = vrot.slane %v1055, %v1068
        %1070 = vrot.lane.b32.xlu0 %v1069, 32
        %v1071 = vpop.permute.xlu0 %1070
        %1073 = vst.msk [vmem:[#allocation2 + $0xc] sm:$0x1] %vm604, %v1071
        %v1074 = vcombine.high %v1062, %v1062
        %1075 = vrot.lane.b32.xlu0 %v1074, 64
        %v1076 = vpop.permute.xlu0 %1075
        %1078 = vst.msk [vmem:[#allocation2 + $0xc] sm:$0x1] %vm612, %v1076
        %v1079 = vcombine.high %v1069, %v1069
        %1080 = vrot.lane.b32.xlu0 %v1079, 96
        %v1081 = vpop.permute.xlu0 %1080
        %1083 = vst.msk [vmem:[#allocation2 + $0xc] sm:$0x1] %vm620, %v1081
        %v1084 = vcombine.high %v566, %v566
        %v1086 = vunpack.c.l.s4 1966171168
        %v1087 = vunpack.c.0.s8 %v1086
        %v1088 = vlaneseq
        %v1089 = vshrl.u32 %v1088, 7
        %v1090 = vsub.s32 %v1087, %v1089
        %v1091 = vrot.slane %v1084, %v1090
        %v1093 = vunpack.c.l.s4 1966171168
        %v1094 = vunpack.c.0.s8 %v1093
        %v1095 = vlaneseq
        %v1096 = vshrl.u32 %v1095, 7
        %v1097 = vsub.s32 %v1094, %v1096
        %v1098 = vrot.slane %v1091, %v1097
        %1100 = vst.msk [vmem:[#allocation2 + $0xd] sm:$0x1] %vm574, %v1098
        %v1101 = vcombine.high %v1091, %v1091
        %v1103 = vunpack.c.l.s4 1966171168
        %v1104 = vunpack.c.0.s8 %v1103
        %v1105 = vlaneseq
        %v1106 = vshrl.u32 %v1105, 7
        %v1107 = vsub.s32 %v1104, %v1106
        %v1108 = vrot.slane %v1101, %v1107
        %1109 = vrot.lane.b32.xlu0 %v1108, 32
        %v1110 = vpop.permute.xlu0 %1109
        %1112 = vst.msk [vmem:[#allocation2 + $0xd] sm:$0x1] %vm604, %v1110
        %v1113 = vcombine.high %v1098, %v1098
        %1114 = vrot.lane.b32.xlu0 %v1113, 64
        %v1115 = vpop.permute.xlu0 %1114
        %1117 = vst.msk [vmem:[#allocation2 + $0xd] sm:$0x1] %vm612, %v1115
        %v1118 = vcombine.high %v1108, %v1108
        %1119 = vrot.lane.b32.xlu0 %v1118, 96
        %v1120 = vpop.permute.xlu0 %1119
        %1122 = vst.msk [vmem:[#allocation2 + $0xd] sm:$0x1] %vm620, %v1120
        %1123 = vst.msk [vmem:[#allocation2 + $0xe] sm:$0x1] %vm574, %v567
        %v1126 = vunpack.c.l.s4 1966171168
        %v1127 = vunpack.c.0.s8 %v1126
        %v1128 = vlaneseq
        %v1129 = vshrl.u32 %v1128, 7
        %v1130 = vsub.s32 %v1127, %v1129
        %v1131 = vrot.slane %v567, %v1130
        %v1132 = vcombine.high %v1131, %v1131
        %v1134 = vunpack.c.l.s4 1966171168
        %v1135 = vunpack.c.0.s8 %v1134
        %v1136 = vlaneseq
        %v1137 = vshrl.u32 %v1136, 7
        %v1138 = vsub.s32 %v1135, %v1137
        %v1139 = vrot.slane %v1131, %v1138
        %v1141 = vunpack.c.l.s4 1966171168
        %v1142 = vunpack.c.0.s8 %v1141
        %v1143 = vlaneseq
        %v1144 = vshrl.u32 %v1143, 7
        %v1145 = vsub.s32 %v1142, %v1144
        %v1146 = vrot.slane %v1132, %v1145
        %1147 = vrot.lane.b32.xlu0 %v1146, 32
        %v1148 = vpop.permute.xlu0 %1147
        %1150 = vst.msk [vmem:[#allocation2 + $0xe] sm:$0x1] %vm604, %v1148
        %v1151 = vcombine.high %v1139, %v1139
        %1152 = vrot.lane.b32.xlu0 %v1151, 64
        %v1153 = vpop.permute.xlu0 %1152
        %1155 = vst.msk [vmem:[#allocation2 + $0xe] sm:$0x1] %vm612, %v1153
        %v1156 = vcombine.high %v1146, %v1146
        %1157 = vrot.lane.b32.xlu0 %v1156, 96
        %v1158 = vpop.permute.xlu0 %1157
        %1160 = vst.msk [vmem:[#allocation2 + $0xe] sm:$0x1] %vm620, %v1158
        %v1161 = vcombine.high %v567, %v567
        %v1163 = vunpack.c.l.s4 1966171168
        %v1164 = vunpack.c.0.s8 %v1163
        %v1165 = vlaneseq
        %v1166 = vshrl.u32 %v1165, 7
        %v1167 = vsub.s32 %v1164, %v1166
        %v1168 = vrot.slane %v1161, %v1167
        %v1170 = vunpack.c.l.s4 1966171168
        %v1171 = vunpack.c.0.s8 %v1170
        %v1172 = vlaneseq
        %v1173 = vshrl.u32 %v1172, 7
        %v1174 = vsub.s32 %v1171, %v1173
        %v1175 = vrot.slane %v1168, %v1174
        %1177 = vst.msk [vmem:[#allocation2 + $0xf] sm:$0x1] %vm574, %v1175
        %v1178 = vcombine.high %v1168, %v1168
        %v1180 = vunpack.c.l.s4 1966171168
        %v1181 = vunpack.c.0.s8 %v1180
        %v1182 = vlaneseq
        %v1183 = vshrl.u32 %v1182, 7
        %v1184 = vsub.s32 %v1181, %v1183
        %v1185 = vrot.slane %v1178, %v1184
        %1186 = vrot.lane.b32.xlu0 %v1185, 32
        %v1187 = vpop.permute.xlu0 %1186
        %1189 = vst.msk [vmem:[#allocation2 + $0xf] sm:$0x1] %vm604, %v1187
        %v1190 = vcombine.high %v1175, %v1175
        %1191 = vrot.lane.b32.xlu0 %v1190, 64
        %v1192 = vpop.permute.xlu0 %1191
        %1194 = vst.msk [vmem:[#allocation2 + $0xf] sm:$0x1] %vm612, %v1192
        %v1195 = vcombine.high %v1185, %v1185
        %1196 = vrot.lane.b32.xlu0 %v1195, 96
        %v1197 = vpop.permute.xlu0 %1196
        %1199 = vst.msk [vmem:[#allocation2 + $0xf] sm:$0x1] %vm620, %v1197
        %1200 = vst.msk [vmem:[#allocation2 + $0x10] sm:$0x1] %vm574, %v568
        %v1203 = vunpack.c.l.s4 1966171168
        %v1204 = vunpack.c.0.s8 %v1203
        %v1205 = vlaneseq
        %v1206 = vshrl.u32 %v1205, 7
        %v1207 = vsub.s32 %v1204, %v1206
        %v1208 = vrot.slane %v568, %v1207
        %v1209 = vcombine.high %v1208, %v1208
        %v1211 = vunpack.c.l.s4 1966171168
        %v1212 = vunpack.c.0.s8 %v1211
        %v1213 = vlaneseq
        %v1214 = vshrl.u32 %v1213, 7
        %v1215 = vsub.s32 %v1212, %v1214
        %v1216 = vrot.slane %v1208, %v1215
        %v1218 = vunpack.c.l.s4 1966171168
        %v1219 = vunpack.c.0.s8 %v1218
        %v1220 = vlaneseq
        %v1221 = vshrl.u32 %v1220, 7
        %v1222 = vsub.s32 %v1219, %v1221
        %v1223 = vrot.slane %v1209, %v1222
        %1224 = vrot.lane.b32.xlu0 %v1223, 32
        %v1225 = vpop.permute.xlu0 %1224
        %1227 = vst.msk [vmem:[#allocation2 + $0x10] sm:$0x1] %vm604, %v1225
        %v1228 = vcombine.high %v1216, %v1216
        %1229 = vrot.lane.b32.xlu0 %v1228, 64
        %v1230 = vpop.permute.xlu0 %1229
        %1232 = vst.msk [vmem:[#allocation2 + $0x10] sm:$0x1] %vm612, %v1230
        %v1233 = vcombine.high %v1223, %v1223
        %1234 = vrot.lane.b32.xlu0 %v1233, 96
        %v1235 = vpop.permute.xlu0 %1234
        %1237 = vst.msk [vmem:[#allocation2 + $0x10] sm:$0x1] %vm620, %v1235
        %v1238 = vcombine.high %v568, %v568
        %v1240 = vunpack.c.l.s4 1966171168
        %v1241 = vunpack.c.0.s8 %v1240
        %v1242 = vlaneseq
        %v1243 = vshrl.u32 %v1242, 7
        %v1244 = vsub.s32 %v1241, %v1243
        %v1245 = vrot.slane %v1238, %v1244
        %v1247 = vunpack.c.l.s4 1966171168
        %v1248 = vunpack.c.0.s8 %v1247
        %v1249 = vlaneseq
        %v1250 = vshrl.u32 %v1249, 7
        %v1251 = vsub.s32 %v1248, %v1250
        %v1252 = vrot.slane %v1245, %v1251
        %1254 = vst.msk [vmem:[#allocation2 + $0x11] sm:$0x1] %vm574, %v1252
        %v1255 = vcombine.high %v1245, %v1245
        %v1257 = vunpack.c.l.s4 1966171168
        %v1258 = vunpack.c.0.s8 %v1257
        %v1259 = vlaneseq
        %v1260 = vshrl.u32 %v1259, 7
        %v1261 = vsub.s32 %v1258, %v1260
        %v1262 = vrot.slane %v1255, %v1261
        %1263 = vrot.lane.b32.xlu0 %v1262, 32
        %v1264 = vpop.permute.xlu0 %1263
        %1266 = vst.msk [vmem:[#allocation2 + $0x11] sm:$0x1] %vm604, %v1264
        %v1267 = vcombine.high %v1252, %v1252
        %1268 = vrot.lane.b32.xlu0 %v1267, 64
        %v1269 = vpop.permute.xlu0 %1268
        %1271 = vst.msk [vmem:[#allocation2 + $0x11] sm:$0x1] %vm612, %v1269
        %v1272 = vcombine.high %v1262, %v1262
        %1273 = vrot.lane.b32.xlu0 %v1272, 96
        %v1274 = vpop.permute.xlu0 %1273
        %1276 = vst.msk [vmem:[#allocation2 + $0x11] sm:$0x1] %vm620, %v1274
        %1277 = vst.msk [vmem:[#allocation2 + $0x12] sm:$0x1] %vm574, %v569
        %v1280 = vunpack.c.l.s4 1966171168
        %v1281 = vunpack.c.0.s8 %v1280
        %v1282 = vlaneseq
        %v1283 = vshrl.u32 %v1282, 7
        %v1284 = vsub.s32 %v1281, %v1283
        %v1285 = vrot.slane %v569, %v1284
        %v1286 = vcombine.high %v1285, %v1285
        %v1288 = vunpack.c.l.s4 1966171168
        %v1289 = vunpack.c.0.s8 %v1288
        %v1290 = vlaneseq
        %v1291 = vshrl.u32 %v1290, 7
        %v1292 = vsub.s32 %v1289, %v1291
        %v1293 = vrot.slane %v1285, %v1292
        %v1295 = vunpack.c.l.s4 1966171168
        %v1296 = vunpack.c.0.s8 %v1295
        %v1297 = vlaneseq
        %v1298 = vshrl.u32 %v1297, 7
        %v1299 = vsub.s32 %v1296, %v1298
        %v1300 = vrot.slane %v1286, %v1299
        %1301 = vrot.lane.b32.xlu0 %v1300, 32
        %v1302 = vpop.permute.xlu0 %1301
        %1304 = vst.msk [vmem:[#allocation2 + $0x12] sm:$0x1] %vm604, %v1302
        %v1305 = vcombine.high %v1293, %v1293
        %1306 = vrot.lane.b32.xlu0 %v1305, 64
        %v1307 = vpop.permute.xlu0 %1306
        %1309 = vst.msk [vmem:[#allocation2 + $0x12] sm:$0x1] %vm612, %v1307
        %v1310 = vcombine.high %v1300, %v1300
        %1311 = vrot.lane.b32.xlu0 %v1310, 96
        %v1312 = vpop.permute.xlu0 %1311
        %1314 = vst.msk [vmem:[#allocation2 + $0x12] sm:$0x1] %vm620, %v1312
        %v1315 = vcombine.high %v569, %v569
        %v1317 = vunpack.c.l.s4 1966171168
        %v1318 = vunpack.c.0.s8 %v1317
        %v1319 = vlaneseq
        %v1320 = vshrl.u32 %v1319, 7
        %v1321 = vsub.s32 %v1318, %v1320
        %v1322 = vrot.slane %v1315, %v1321
        %v1324 = vunpack.c.l.s4 1966171168
        %v1325 = vunpack.c.0.s8 %v1324
        %v1326 = vlaneseq
        %v1327 = vshrl.u32 %v1326, 7
        %v1328 = vsub.s32 %v1325, %v1327
        %v1329 = vrot.slane %v1322, %v1328
        %1331 = vst.msk [vmem:[#allocation2 + $0x13] sm:$0x1] %vm574, %v1329
        %v1332 = vcombine.high %v1322, %v1322
        %v1334 = vunpack.c.l.s4 1966171168
        %v1335 = vunpack.c.0.s8 %v1334
        %v1336 = vlaneseq
        %v1337 = vshrl.u32 %v1336, 7
        %v1338 = vsub.s32 %v1335, %v1337
        %v1339 = vrot.slane %v1332, %v1338
        %1340 = vrot.lane.b32.xlu0 %v1339, 32
        %v1341 = vpop.permute.xlu0 %1340
        %1343 = vst.msk [vmem:[#allocation2 + $0x13] sm:$0x1] %vm604, %v1341
        %v1344 = vcombine.high %v1329, %v1329
        %1345 = vrot.lane.b32.xlu0 %v1344, 64
        %v1346 = vpop.permute.xlu0 %1345
        %1348 = vst.msk [vmem:[#allocation2 + $0x13] sm:$0x1] %vm612, %v1346
        %v1349 = vcombine.high %v1339, %v1339
        %1350 = vrot.lane.b32.xlu0 %v1349, 96
        %v1351 = vpop.permute.xlu0 %1350
        %1353 = vst.msk [vmem:[#allocation2 + $0x13] sm:$0x1] %vm620, %v1351
        %1354 = vst.msk [vmem:[#allocation2 + $0x14] sm:$0x1] %vm574, %v570
        %v1355 = vld [vmem:[#allocation2] sm:$0xff]
        %v1356 = vld [vmem:[#allocation2 + $0x8] sm:$0xff]
        %v1357 = vld [vmem:[#allocation2 + $0x10] sm:$0x1f]
        %v1361 = vlaneseq
        %v1362 = vshrl.u32 %v1361, 7
        %v1363 = vsub.s32 0, %v1362
        %v1364 = vrot.slane %v1355, %v1363
        %v1365 = vlaneseq
        %v1366 = vshrl.u32 %v1365, 7
        %v1367 = vsub.s32 1, %v1366
        %v1368 = vrot.slane %v1355, %v1367
        %v1369 = vlaneseq
        %v1370 = vshrl.u32 %v1369, 7
        %v1371 = vsub.s32 2, %v1370
        %v1372 = vrot.slane %v1355, %v1371
        %v1373 = vlaneseq
        %v1374 = vshrl.u32 %v1373, 7
        %v1375 = vsub.s32 3, %v1374
        %v1376 = vrot.slane %v1355, %v1375
        %v1377 = vlaneseq
        %v1378 = vshrl.u32 %v1377, 7
        %v1379 = vsub.s32 4, %v1378
        %v1380 = vrot.slane %v1355, %v1379
        %v1381 = vlaneseq
        %v1382 = vshrl.u32 %v1381, 7
        %v1383 = vsub.s32 5, %v1382
        %v1384 = vrot.slane %v1355, %v1383
        %v1385 = vlaneseq
        %v1386 = vshrl.u32 %v1385, 7
        %v1387 = vsub.s32 6, %v1386
        %v1388 = vrot.slane %v1355, %v1387
        %v1389 = vlaneseq
        %v1390 = vshrl.u32 %v1389, 7
        %v1391 = vsub.s32 7, %v1390
        %v1392 = vrot.slane %v1355, %v1391
        %v1393 = vlaneseq
        %v1394 = vshrl.u32 %v1393, 7
        %v1395 = vsub.s32 0, %v1394
        %v1396 = vrot.slane %v1356, %v1395
        %v1397 = vlaneseq
        %v1398 = vshrl.u32 %v1397, 7
        %v1399 = vsub.s32 1, %v1398
        %v1400 = vrot.slane %v1356, %v1399
        %v1401 = vlaneseq
        %v1402 = vshrl.u32 %v1401, 7
        %v1403 = vsub.s32 2, %v1402
        %v1404 = vrot.slane %v1356, %v1403
        %v1405 = vlaneseq
        %v1406 = vshrl.u32 %v1405, 7
        %v1407 = vsub.s32 3, %v1406
        %v1408 = vrot.slane %v1356, %v1407
        %v1409 = vlaneseq
        %v1410 = vshrl.u32 %v1409, 7
        %v1411 = vsub.s32 4, %v1410
        %v1412 = vrot.slane %v1356, %v1411
        %v1413 = vlaneseq
        %v1414 = vshrl.u32 %v1413, 7
        %v1415 = vsub.s32 5, %v1414
        %v1416 = vrot.slane %v1356, %v1415
        %v1417 = vlaneseq
        %v1418 = vshrl.u32 %v1417, 7
        %v1419 = vsub.s32 6, %v1418
        %v1420 = vrot.slane %v1356, %v1419
        %v1421 = vlaneseq
        %v1422 = vshrl.u32 %v1421, 7
        %v1423 = vsub.s32 7, %v1422
        %v1424 = vrot.slane %v1356, %v1423
        %v1425 = vlaneseq
        %v1426 = vshrl.u32 %v1425, 7
        %v1427 = vsub.s32 0, %v1426
        %v1428 = vrot.slane %v1357, %v1427
        %v1429 = vlaneseq
        %v1430 = vshrl.u32 %v1429, 7
        %v1431 = vsub.s32 1, %v1430
        %v1432 = vrot.slane %v1357, %v1431
        %v1433 = vlaneseq
        %v1434 = vshrl.u32 %v1433, 7
        %v1435 = vsub.s32 2, %v1434
        %v1436 = vrot.slane %v1357, %v1435
        %v1437 = vlaneseq
        %v1438 = vshrl.u32 %v1437, 7
        %v1439 = vsub.s32 3, %v1438
        %v1440 = vrot.slane %v1357, %v1439
        %v1441 = vlaneseq
        %v1442 = vshrl.u32 %v1441, 7
        %v1443 = vsub.s32 4, %v1442
        %v1444 = vrot.slane %v1357, %v1443
        %v1466 = vpack.c.bf16 %v1364, %v1364
        %v1467 = vpack.c.bf16 %v1368, %v1368
        %v1468 = vpack.c.bf16 %v1372, %v1372
        %v1469 = vpack.c.bf16 %v1376, %v1376
        %v1470 = vpack.c.bf16 %v1380, %v1380
        %v1471 = vpack.c.bf16 %v1384, %v1384
        %v1472 = vpack.c.bf16 %v1388, %v1388
        %v1473 = vpack.c.bf16 %v1392, %v1392
        %v1474 = vpack.c.bf16 %v1396, %v1396
        %v1475 = vpack.c.bf16 %v1400, %v1400
        %v1476 = vpack.c.bf16 %v1404, %v1404
        %v1477 = vpack.c.bf16 %v1408, %v1408
        %v1478 = vpack.c.bf16 %v1412, %v1412
        %v1479 = vpack.c.bf16 %v1416, %v1416
        %v1480 = vpack.c.bf16 %v1420, %v1420
        %v1481 = vpack.c.bf16 %v1424, %v1424
        %v1482 = vpack.c.bf16 %v1428, %v1428
        %v1483 = vpack.c.bf16 %v1432, %v1432
        %v1484 = vpack.c.bf16 %v1436, %v1436
        %v1485 = vpack.c.bf16 %v1440, %v1440
        %v1486 = vpack.c.bf16 %v1444, %v1444
        %v1487 = vld [vmem:[%s3] sm:$0xff]
        %v1488 = vld [vmem:[%s3 + $0x8] sm:$0xff]
        %v1489 = vld [vmem:[%s3 + $0x10] sm:$0xff]
        %v1490 = vld [vmem:[%s3 + $0x18] sm:$0xff]
        %v1491 = vld [vmem:[%s3 + $0x20] sm:$0xff]
        %v1492 = vld [vmem:[%s3 + $0x28] sm:$0xff]
        %v1493 = vld [vmem:[%s3 + $0x30] sm:$0xff]
        %v1494 = vld [vmem:[%s3 + $0x38] sm:$0xff]
        %v1495 = vld [vmem:[%s3 + $0x40] sm:$0xff]
        %v1496 = vld [vmem:[%s3 + $0x48] sm:$0xff]
        %v1497 = vld [vmem:[%s3 + $0x50] sm:$0xff]
        %v1498 = vld [vmem:[%s3 + $0x58] sm:$0xff]
        %v1499 = vld [vmem:[%s3 + $0x60] sm:$0xff]
        %v1500 = vld [vmem:[%s3 + $0x68] sm:$0xff]
        %v1501 = vld [vmem:[%s3 + $0x70] sm:$0xff]
        %v1502 = vld [vmem:[%s3 + $0x78] sm:$0xff]
        %v1503 = vld [vmem:[%s3 + $0x80] sm:$0xff]
        %v1504 = vld [vmem:[%s3 + $0x88] sm:$0xff]
        %v1505 = vld [vmem:[%s3 + $0x90] sm:$0xff]
        %v1506 = vld [vmem:[%s3 + $0x98] sm:$0xff]
        %v1507 = vld [vmem:[%s3 + $0xa0] sm:$0xff]
        %v1508 = vld [vmem:[%s3 + $0xa8] sm:$0xff]
        %v1509 = vld [vmem:[%s3 + $0xb0] sm:$0xff]
        %v1510 = vld [vmem:[%s3 + $0xb8] sm:$0xff]
        %v1511 = vld [vmem:[%s3 + $0xc0] sm:$0xff]
        %v1512 = vld [vmem:[%s3 + $0xc8] sm:$0xff]
        %v1513 = vld [vmem:[%s3 + $0xd0] sm:$0xff]
        %v1514 = vld [vmem:[%s3 + $0xd8] sm:$0xff]
        %v1515 = vld [vmem:[%s3 + $0xe0] sm:$0xff]
        %v1516 = vld [vmem:[%s3 + $0xe8] sm:$0xff]
        %v1517 = vld [vmem:[%s3 + $0xf0] sm:$0xff]
        %v1518 = vld [vmem:[%s3 + $0xf8] sm:$0xff]
        %v1519 = vld [vmem:[%s3 + $0x100] sm:$0xff]
        %v1520 = vld [vmem:[%s3 + $0x108] sm:$0xff]
        %v1521 = vld [vmem:[%s3 + $0x110] sm:$0xff]
        %v1522 = vld [vmem:[%s3 + $0x118] sm:$0xff]
        %v1523 = vld [vmem:[%s3 + $0x120] sm:$0xff]
        %v1524 = vld [vmem:[%s3 + $0x128] sm:$0xff]
        %v1525 = vld [vmem:[%s3 + $0x130] sm:$0xff]
        %v1526 = vld [vmem:[%s3 + $0x138] sm:$0xff]
        %v1527 = vld [vmem:[%s3 + $0x140] sm:$0xff]
        %v1528 = vld [vmem:[%s3 + $0x148] sm:$0xff]
        %v1529 = vld [vmem:[%s3 + $0x150] sm:$0xff]
        %v1530 = vld [vmem:[%s3 + $0x158] sm:$0xff]
        %v1531 = vld [vmem:[%s3 + $0x160] sm:$0xff]
        %v1532 = vld [vmem:[%s3 + $0x168] sm:$0xff]
        %v1533 = vld [vmem:[%s3 + $0x170] sm:$0xff]
        %v1534 = vld [vmem:[%s3 + $0x178] sm:$0xff]
        %v1535 = vld [vmem:[%s3 + $0x180] sm:$0xff]
        %v1536 = vld [vmem:[%s3 + $0x188] sm:$0xff]
        %v1537 = vld [vmem:[%s3 + $0x190] sm:$0xff]
        %v1538 = vld [vmem:[%s3 + $0x198] sm:$0xff]
        %v1539 = vld [vmem:[%s3 + $0x1a0] sm:$0xff]
        %v1540 = vld [vmem:[%s3 + $0x1a8] sm:$0xff]
        %v1541 = vld [vmem:[%s3 + $0x1b0] sm:$0xff]
        %v1542 = vld [vmem:[%s3 + $0x1b8] sm:$0xff]
        %v1543 = vld [vmem:[%s3 + $0x1c0] sm:$0xff]
        %v1544 = vld [vmem:[%s3 + $0x1c8] sm:$0xff]
        %v1545 = vld [vmem:[%s3 + $0x1d0] sm:$0xff]
        %v1546 = vld [vmem:[%s3 + $0x1d8] sm:$0xff]
        %v1547 = vld [vmem:[%s3 + $0x1e0] sm:$0xff]
        %v1548 = vld [vmem:[%s3 + $0x1e8] sm:$0xff]
        %v1549 = vld [vmem:[%s3 + $0x1f0] sm:$0xff]
        %v1550 = vld [vmem:[%s3 + $0x1f8] sm:$0xff]
        %v1551 = vld [vmem:[%s3 + $0x200] sm:$0xff]
        %v1552 = vld [vmem:[%s3 + $0x208] sm:$0xff]
        %v1553 = vld [vmem:[%s3 + $0x210] sm:$0xff]
        %v1554 = vld [vmem:[%s3 + $0x218] sm:$0xff]
        %v1555 = vld [vmem:[%s3 + $0x220] sm:$0xff]
        %v1556 = vld [vmem:[%s3 + $0x228] sm:$0xff]
        %v1557 = vld [vmem:[%s3 + $0x230] sm:$0xff]
        %v1558 = vld [vmem:[%s3 + $0x238] sm:$0xff]
        %v1559 = vld [vmem:[%s3 + $0x240] sm:$0xff]
        %v1560 = vld [vmem:[%s3 + $0x248] sm:$0xff]
        %v1561 = vld [vmem:[%s3 + $0x250] sm:$0xff]
        %v1562 = vld [vmem:[%s3 + $0x258] sm:$0xff]
        %v1563 = vld [vmem:[%s3 + $0x260] sm:$0xff]
        %v1564 = vld [vmem:[%s3 + $0x268] sm:$0xff]
        %v1565 = vld [vmem:[%s3 + $0x270] sm:$0xff]
        %v1566 = vld [vmem:[%s3 + $0x278] sm:$0xff]
        %v1567 = vld [vmem:[%s3 + $0x280] sm:$0xff]
        %v1568 = vld [vmem:[%s3 + $0x288] sm:$0xff]
        %v1569 = vld [vmem:[%s3 + $0x290] sm:$0xff]
        %v1570 = vld [vmem:[%s3 + $0x298] sm:$0xff]
        %v1571 = vld [vmem:[%s3 + $0x2a0] sm:$0xff]
        %v1572 = vld [vmem:[%s3 + $0x2a8] sm:$0xff]
        %v1573 = vld [vmem:[%s3 + $0x2b0] sm:$0xff]
        %v1574 = vld [vmem:[%s3 + $0x2b8] sm:$0xff]
        %v1575 = vld [vmem:[%s3 + $0x2c0] sm:$0xff]
        %v1576 = vld [vmem:[%s3 + $0x2c8] sm:$0xff]
        %v1577 = vld [vmem:[%s3 + $0x2d0] sm:$0xff]
        %v1578 = vld [vmem:[%s3 + $0x2d8] sm:$0xff]
        %v1579 = vld [vmem:[%s3 + $0x2e0] sm:$0xff]
        %v1580 = vld [vmem:[%s3 + $0x2e8] sm:$0xff]
        %v1581 = vld [vmem:[%s3 + $0x2f0] sm:$0xff]
        %v1582 = vld [vmem:[%s3 + $0x2f8] sm:$0xff]
        %v1583 = vld [vmem:[%s3 + $0x300] sm:$0xff]
        %v1584 = vld [vmem:[%s3 + $0x308] sm:$0xff]
        %v1585 = vld [vmem:[%s3 + $0x310] sm:$0xff]
        %v1586 = vld [vmem:[%s3 + $0x318] sm:$0xff]
        %v1587 = vld [vmem:[%s3 + $0x320] sm:$0xff]
        %v1588 = vld [vmem:[%s3 + $0x328] sm:$0xff]
        %v1589 = vld [vmem:[%s3 + $0x330] sm:$0xff]
        %v1590 = vld [vmem:[%s3 + $0x338] sm:$0xff]
        %v1591 = vld [vmem:[%s3 + $0x340] sm:$0xff]
        %v1592 = vld [vmem:[%s3 + $0x348] sm:$0xff]
        %v1593 = vld [vmem:[%s3 + $0x350] sm:$0xff]
        %v1594 = vld [vmem:[%s3 + $0x358] sm:$0xff]
        %v1595 = vld [vmem:[%s3 + $0x360] sm:$0xff]
        %v1596 = vld [vmem:[%s3 + $0x368] sm:$0xff]
        %v1597 = vld [vmem:[%s3 + $0x370] sm:$0xff]
        %v1598 = vld [vmem:[%s3 + $0x378] sm:$0xff]
        %v1599 = vld [vmem:[%s3 + $0x380] sm:$0xff]
        %v1600 = vld [vmem:[%s3 + $0x388] sm:$0xff]
        %v1601 = vld [vmem:[%s3 + $0x390] sm:$0xff]
        %v1602 = vld [vmem:[%s3 + $0x398] sm:$0xff]
        %v1603 = vld [vmem:[%s3 + $0x3a0] sm:$0xff]
        %v1604 = vld [vmem:[%s3 + $0x3a8] sm:$0xff]
        %v1605 = vld [vmem:[%s3 + $0x3b0] sm:$0xff]
        %v1606 = vld [vmem:[%s3 + $0x3b8] sm:$0xff]
        %v1607 = vld [vmem:[%s3 + $0x3c0] sm:$0xff]
        %v1608 = vld [vmem:[%s3 + $0x3c8] sm:$0xff]
        %v1609 = vld [vmem:[%s3 + $0x3d0] sm:$0xff]
        %v1610 = vld [vmem:[%s3 + $0x3d8] sm:$0xff]
        %v1611 = vld [vmem:[%s3 + $0x3e0] sm:$0xff]
        %v1612 = vld [vmem:[%s3 + $0x3e8] sm:$0xff]
        %v1613 = vld [vmem:[%s3 + $0x3f0] sm:$0xff]
        %v1614 = vld [vmem:[%s3 + $0x3f8] sm:$0xff]
        %v1615 = vld [vmem:[%s3 + $0x400] sm:$0xff]
        %v1616 = vld [vmem:[%s3 + $0x408] sm:$0xff]
        %v1617 = vld [vmem:[%s3 + $0x410] sm:$0xff]
        %v1618 = vld [vmem:[%s3 + $0x418] sm:$0xff]
        %v1619 = vld [vmem:[%s3 + $0x420] sm:$0xff]
        %v1620 = vld [vmem:[%s3 + $0x428] sm:$0xff]
        %v1621 = vld [vmem:[%s3 + $0x430] sm:$0xff]
        %v1622 = vld [vmem:[%s3 + $0x438] sm:$0xff]
        %v1623 = vld [vmem:[%s3 + $0x440] sm:$0xff]
        %v1624 = vld [vmem:[%s3 + $0x448] sm:$0xff]
        %v1625 = vld [vmem:[%s3 + $0x450] sm:$0xff]
        %v1626 = vld [vmem:[%s3 + $0x458] sm:$0xff]
        %v1627 = vld [vmem:[%s3 + $0x460] sm:$0xff]
        %v1628 = vld [vmem:[%s3 + $0x468] sm:$0xff]
        %v1629 = vld [vmem:[%s3 + $0x470] sm:$0xff]
        %v1630 = vld [vmem:[%s3 + $0x478] sm:$0xff]
        %v1631 = vld [vmem:[%s3 + $0x480] sm:$0xff]
        %v1632 = vld [vmem:[%s3 + $0x488] sm:$0xff]
        %v1633 = vld [vmem:[%s3 + $0x490] sm:$0xff]
        %v1634 = vld [vmem:[%s3 + $0x498] sm:$0xff]
        %v1635 = vld [vmem:[%s3 + $0x4a0] sm:$0xff]
        %v1636 = vld [vmem:[%s3 + $0x4a8] sm:$0xff]
        %v1637 = vld [vmem:[%s3 + $0x4b0] sm:$0xff]
        %v1638 = vld [vmem:[%s3 + $0x4b8] sm:$0xff]
        %v1639 = vld [vmem:[%s3 + $0x4c0] sm:$0xff]
        %v1640 = vld [vmem:[%s3 + $0x4c8] sm:$0xff]
        %v1641 = vld [vmem:[%s3 + $0x4d0] sm:$0xff]
        %v1642 = vld [vmem:[%s3 + $0x4d8] sm:$0xff]
        %v1643 = vld [vmem:[%s3 + $0x4e0] sm:$0xff]
        %v1644 = vld [vmem:[%s3 + $0x4e8] sm:$0xff]
        %v1645 = vld [vmem:[%s3 + $0x4f0] sm:$0xff]
        %v1646 = vld [vmem:[%s3 + $0x4f8] sm:$0xff]
        %v1647 = vld [vmem:[%s3 + $0x500] sm:$0xff]
        %v1648 = vld [vmem:[%s3 + $0x508] sm:$0xff]
        %v1649 = vld [vmem:[%s3 + $0x510] sm:$0xff]
        %v1650 = vld [vmem:[%s3 + $0x518] sm:$0xff]
        %v1651 = vld [vmem:[%s3 + $0x520] sm:$0xff]
        %v1652 = vld [vmem:[%s3 + $0x528] sm:$0xff]
        %v1653 = vld [vmem:[%s3 + $0x530] sm:$0xff]
        %v1654 = vld [vmem:[%s3 + $0x538] sm:$0xff]
        %v1655 = vld [vmem:[%s3 + $0x540] sm:$0xff]
        %v1656 = vld [vmem:[%s3 + $0x548] sm:$0xff]
        %v1657 = vld [vmem:[%s3 + $0x550] sm:$0xff]
        %v1658 = vld [vmem:[%s3 + $0x558] sm:$0xff]
        %v1659 = vld [vmem:[%s3 + $0x560] sm:$0xff]
        %v1660 = vld [vmem:[%s3 + $0x568] sm:$0xff]
        %v1661 = vld [vmem:[%s3 + $0x570] sm:$0xff]
        %v1662 = vld [vmem:[%s3 + $0x578] sm:$0xff]
        %v1663 = vld [vmem:[%s3 + $0x580] sm:$0xff]
        %v1664 = vld [vmem:[%s3 + $0x588] sm:$0xff]
        %v1665 = vld [vmem:[%s3 + $0x590] sm:$0xff]
        %v1666 = vld [vmem:[%s3 + $0x598] sm:$0xff]
        %v1667 = vld [vmem:[%s3 + $0x5a0] sm:$0xff]
        %v1668 = vld [vmem:[%s3 + $0x5a8] sm:$0xff]
        %v1669 = vld [vmem:[%s3 + $0x5b0] sm:$0xff]
        %v1670 = vld [vmem:[%s3 + $0x5b8] sm:$0xff]
        %v1671 = vld [vmem:[%s3 + $0x5c0] sm:$0xff]
        %v1672 = vld [vmem:[%s3 + $0x5c8] sm:$0xff]
        %v1673 = vld [vmem:[%s3 + $0x5d0] sm:$0xff]
        %v1674 = vld [vmem:[%s3 + $0x5d8] sm:$0xff]
        %v1675 = vld [vmem:[%s3 + $0x5e0] sm:$0xff]
        %v1676 = vld [vmem:[%s3 + $0x5e8] sm:$0xff]
        %v1677 = vld [vmem:[%s3 + $0x5f0] sm:$0xff]
        %v1678 = vld [vmem:[%s3 + $0x5f8] sm:$0xff]
        %v1679 = vld [vmem:[%s3 + $0x600] sm:$0xff]
        %v1680 = vld [vmem:[%s3 + $0x608] sm:$0xff]
        %v1681 = vld [vmem:[%s3 + $0x610] sm:$0xff]
        %v1682 = vld [vmem:[%s3 + $0x618] sm:$0xff]
        %v1683 = vld [vmem:[%s3 + $0x620] sm:$0xff]
        %v1684 = vld [vmem:[%s3 + $0x628] sm:$0xff]
        %v1685 = vld [vmem:[%s3 + $0x630] sm:$0xff]
        %v1686 = vld [vmem:[%s3 + $0x638] sm:$0xff]
        %v1687 = vld [vmem:[%s3 + $0x640] sm:$0xff]
        %v1688 = vld [vmem:[%s3 + $0x648] sm:$0xff]
        %v1689 = vld [vmem:[%s3 + $0x650] sm:$0xff]
        %v1690 = vld [vmem:[%s3 + $0x658] sm:$0xff]
        %v1691 = vld [vmem:[%s3 + $0x660] sm:$0xff]
        %v1692 = vld [vmem:[%s3 + $0x668] sm:$0xff]
        %v1693 = vld [vmem:[%s3 + $0x670] sm:$0xff]
        %v1694 = vld [vmem:[%s3 + $0x678] sm:$0xff]
        %v1695 = vld [vmem:[%s3 + $0x680] sm:$0xff]
        %v1696 = vld [vmem:[%s3 + $0x688] sm:$0xff]
        %v1697 = vld [vmem:[%s3 + $0x690] sm:$0xff]
        %v1698 = vld [vmem:[%s3 + $0x698] sm:$0xff]
        %v1699 = vld [vmem:[%s3 + $0x6a0] sm:$0xff]
        %v1700 = vld [vmem:[%s3 + $0x6a8] sm:$0xff]
        %v1701 = vld [vmem:[%s3 + $0x6b0] sm:$0xff]
        %v1702 = vld [vmem:[%s3 + $0x6b8] sm:$0xff]
        %v1703 = vld [vmem:[%s3 + $0x6c0] sm:$0xff]
        %v1704 = vld [vmem:[%s3 + $0x6c8] sm:$0xff]
        %v1705 = vld [vmem:[%s3 + $0x6d0] sm:$0xff]
        %v1706 = vld [vmem:[%s3 + $0x6d8] sm:$0xff]
        %v1707 = vld [vmem:[%s3 + $0x6e0] sm:$0xff]
        %v1708 = vld [vmem:[%s3 + $0x6e8] sm:$0xff]
        %v1709 = vld [vmem:[%s3 + $0x6f0] sm:$0xff]
        %v1710 = vld [vmem:[%s3 + $0x6f8] sm:$0xff]
        %v1711 = vld [vmem:[%s3 + $0x700] sm:$0xff]
        %v1712 = vld [vmem:[%s3 + $0x708] sm:$0xff]
        %v1713 = vld [vmem:[%s3 + $0x710] sm:$0xff]
        %v1714 = vld [vmem:[%s3 + $0x718] sm:$0xff]
        %v1715 = vld [vmem:[%s3 + $0x720] sm:$0xff]
        %v1716 = vld [vmem:[%s3 + $0x728] sm:$0xff]
        %v1717 = vld [vmem:[%s3 + $0x730] sm:$0xff]
        %v1718 = vld [vmem:[%s3 + $0x738] sm:$0xff]
        %v1719 = vld [vmem:[%s3 + $0x740] sm:$0xff]
        %v1720 = vld [vmem:[%s3 + $0x748] sm:$0xff]
        %v1721 = vld [vmem:[%s3 + $0x750] sm:$0xff]
        %v1722 = vld [vmem:[%s3 + $0x758] sm:$0xff]
        %v1723 = vld [vmem:[%s3 + $0x760] sm:$0xff]
        %v1724 = vld [vmem:[%s3 + $0x768] sm:$0xff]
        %v1725 = vld [vmem:[%s3 + $0x770] sm:$0xff]
        %v1726 = vld [vmem:[%s3 + $0x778] sm:$0xff]
        %v1727 = vld [vmem:[%s3 + $0x780] sm:$0xff]
        %v1728 = vld [vmem:[%s3 + $0x788] sm:$0xff]
        %v1729 = vld [vmem:[%s3 + $0x790] sm:$0xff]
        %v1730 = vld [vmem:[%s3 + $0x798] sm:$0xff]
        %v1731 = vld [vmem:[%s3 + $0x7a0] sm:$0xff]
        %v1732 = vld [vmem:[%s3 + $0x7a8] sm:$0xff]
        %v1733 = vld [vmem:[%s3 + $0x7b0] sm:$0xff]
        %v1734 = vld [vmem:[%s3 + $0x7b8] sm:$0xff]
        %v1735 = vld [vmem:[%s3 + $0x7c0] sm:$0xff]
        %v1736 = vld [vmem:[%s3 + $0x7c8] sm:$0xff]
        %v1737 = vld [vmem:[%s3 + $0x7d0] sm:$0xff]
        %v1738 = vld [vmem:[%s3 + $0x7d8] sm:$0xff]
        %v1739 = vld [vmem:[%s3 + $0x7e0] sm:$0xff]
        %v1740 = vld [vmem:[%s3 + $0x7e8] sm:$0xff]
        %v1741 = vld [vmem:[%s3 + $0x7f0] sm:$0xff]
        %v1742 = vld [vmem:[%s3 + $0x7f8] sm:$0xff]
        %v1743 = vld [vmem:[%s3 + $0x800] sm:$0xff]
        %v1744 = vld [vmem:[%s3 + $0x808] sm:$0xff]
        %v1745 = vld [vmem:[%s3 + $0x810] sm:$0xff]
        %v1746 = vld [vmem:[%s3 + $0x818] sm:$0xff]
        %v1747 = vld [vmem:[%s3 + $0x820] sm:$0xff]
        %v1748 = vld [vmem:[%s3 + $0x828] sm:$0xff]
        %v1749 = vld [vmem:[%s3 + $0x830] sm:$0xff]
        %v1750 = vld [vmem:[%s3 + $0x838] sm:$0xff]
        %v1751 = vld [vmem:[%s3 + $0x840] sm:$0xff]
        %v1752 = vld [vmem:[%s3 + $0x848] sm:$0xff]
        %v1753 = vld [vmem:[%s3 + $0x850] sm:$0xff]
        %v1754 = vld [vmem:[%s3 + $0x858] sm:$0xff]
        %v1755 = vld [vmem:[%s3 + $0x860] sm:$0xff]
        %v1756 = vld [vmem:[%s3 + $0x868] sm:$0xff]
        %v1757 = vld [vmem:[%s3 + $0x870] sm:$0xff]
        %v1758 = vld [vmem:[%s3 + $0x878] sm:$0xff]
        %v1759 = vld [vmem:[%s3 + $0x880] sm:$0xff]
        %v1760 = vld [vmem:[%s3 + $0x888] sm:$0xff]
        %v1761 = vld [vmem:[%s3 + $0x890] sm:$0xff]
        %v1762 = vld [vmem:[%s3 + $0x898] sm:$0xff]
        %v1763 = vld [vmem:[%s3 + $0x8a0] sm:$0xff]
        %v1764 = vld [vmem:[%s3 + $0x8a8] sm:$0xff]
        %v1765 = vld [vmem:[%s3 + $0x8b0] sm:$0xff]
        %v1766 = vld [vmem:[%s3 + $0x8b8] sm:$0xff]
        %v1767 = vld [vmem:[%s3 + $0x8c0] sm:$0xff]
        %v1768 = vld [vmem:[%s3 + $0x8c8] sm:$0xff]
        %v1769 = vld [vmem:[%s3 + $0x8d0] sm:$0xff]
        %v1770 = vld [vmem:[%s3 + $0x8d8] sm:$0xff]
        %v1771 = vld [vmem:[%s3 + $0x8e0] sm:$0xff]
        %v1772 = vld [vmem:[%s3 + $0x8e8] sm:$0xff]
        %v1773 = vld [vmem:[%s3 + $0x8f0] sm:$0xff]
        %v1774 = vld [vmem:[%s3 + $0x8f8] sm:$0xff]
        %v1775 = vld [vmem:[%s3 + $0x900] sm:$0xff]
        %v1776 = vld [vmem:[%s3 + $0x908] sm:$0xff]
        %v1777 = vld [vmem:[%s3 + $0x910] sm:$0xff]
        %v1778 = vld [vmem:[%s3 + $0x918] sm:$0xff]
        %v1779 = vld [vmem:[%s3 + $0x920] sm:$0xff]
        %v1780 = vld [vmem:[%s3 + $0x928] sm:$0xff]
        %v1781 = vld [vmem:[%s3 + $0x930] sm:$0xff]
        %v1782 = vld [vmem:[%s3 + $0x938] sm:$0xff]
        %v1783 = vld [vmem:[%s3 + $0x940] sm:$0xff]
        %v1784 = vld [vmem:[%s3 + $0x948] sm:$0xff]
        %v1785 = vld [vmem:[%s3 + $0x950] sm:$0xff]
        %v1786 = vld [vmem:[%s3 + $0x958] sm:$0xff]
        %v1787 = vld [vmem:[%s3 + $0x960] sm:$0xff]
        %v1788 = vld [vmem:[%s3 + $0x968] sm:$0xff]
        %v1789 = vld [vmem:[%s3 + $0x970] sm:$0xff]
        %v1790 = vld [vmem:[%s3 + $0x978] sm:$0xff]
        %v1791 = vld [vmem:[%s3 + $0x980] sm:$0xff]
        %v1792 = vld [vmem:[%s3 + $0x988] sm:$0xff]
        %v1793 = vld [vmem:[%s3 + $0x990] sm:$0xff]
        %v1794 = vld [vmem:[%s3 + $0x998] sm:$0xff]
        %v1795 = vld [vmem:[%s3 + $0x9a0] sm:$0xff]
        %v1796 = vld [vmem:[%s3 + $0x9a8] sm:$0xff]
        %v1797 = vld [vmem:[%s3 + $0x9b0] sm:$0xff]
        %v1798 = vld [vmem:[%s3 + $0x9b8] sm:$0xff]
        %v1799 = vld [vmem:[%s3 + $0x9c0] sm:$0xff]
        %v1800 = vld [vmem:[%s3 + $0x9c8] sm:$0xff]
        %v1801 = vld [vmem:[%s3 + $0x9d0] sm:$0xff]
        %v1802 = vld [vmem:[%s3 + $0x9d8] sm:$0xff]
        %v1803 = vld [vmem:[%s3 + $0x9e0] sm:$0xff]
        %v1804 = vld [vmem:[%s3 + $0x9e8] sm:$0xff]
        %v1805 = vld [vmem:[%s3 + $0x9f0] sm:$0xff]
        %v1806 = vld [vmem:[%s3 + $0x9f8] sm:$0xff]
        %v1807 = vld [vmem:[%s3 + $0xa00] sm:$0xff]
        %v1808 = vld [vmem:[%s3 + $0xa08] sm:$0xff]
        %v1809 = vld [vmem:[%s3 + $0xa10] sm:$0xff]
        %v1810 = vld [vmem:[%s3 + $0xa18] sm:$0xff]
        %v1811 = vld [vmem:[%s4] sm:$0x3]
        %v2136 = vunpack.c.l.b16 %v1487
        %v2137 = vunpack.c.h.b16 %v1487
        %v2138 = vunpack.c.l.b16 %v1488
        %v2139 = vunpack.c.h.b16 %v1488
        %v2140 = vunpack.c.l.b16 %v1489
        %v2141 = vunpack.c.h.b16 %v1489
        %v2142 = vunpack.c.l.b16 %v1490
        %v2143 = vunpack.c.h.b16 %v1490
        %v2144 = vunpack.c.l.b16 %v1491
        %v2145 = vunpack.c.h.b16 %v1491
        %v2146 = vunpack.c.l.b16 %v1492
        %v2147 = vunpack.c.h.b16 %v1492
        %v2148 = vunpack.c.l.b16 %v1493
        %v2149 = vunpack.c.h.b16 %v1493
        %v2150 = vunpack.c.l.b16 %v1494
        %v2151 = vunpack.c.h.b16 %v1494
        %v2152 = vunpack.c.l.b16 %v1495
        %v2153 = vunpack.c.h.b16 %v1495
        %v2154 = vunpack.c.l.b16 %v1496
        %v2155 = vunpack.c.h.b16 %v1496
        %v2156 = vunpack.c.l.b16 %v1497
        %v2157 = vunpack.c.h.b16 %v1497
        %v2158 = vunpack.c.l.b16 %v1498
        %v2159 = vunpack.c.h.b16 %v1498
        %v2160 = vunpack.c.l.b16 %v1499
        %v2161 = vunpack.c.h.b16 %v1499
        %v2162 = vunpack.c.l.b16 %v1500
        %v2163 = vunpack.c.h.b16 %v1500
        %v2164 = vunpack.c.l.b16 %v1501
        %v2165 = vunpack.c.h.b16 %v1501
        %v2166 = vunpack.c.l.b16 %v1502
        %v2167 = vunpack.c.h.b16 %v1502
        %v2168 = vunpack.c.l.b16 %v1503
        %v2169 = vunpack.c.h.b16 %v1503
        %v2170 = vunpack.c.l.b16 %v1504
        %v2171 = vunpack.c.h.b16 %v1504
        %v2172 = vunpack.c.l.b16 %v1505
        %v2173 = vunpack.c.h.b16 %v1505
        %v2174 = vunpack.c.l.b16 %v1506
        %v2175 = vunpack.c.h.b16 %v1506
        %v2176 = vunpack.c.l.b16 %v1507
        %v2177 = vunpack.c.h.b16 %v1507
        %v2178 = vunpack.c.l.b16 %v1508
        %v2179 = vunpack.c.h.b16 %v1508
        %v2180 = vunpack.c.l.b16 %v1509
        %v2181 = vunpack.c.h.b16 %v1509
        %v2182 = vunpack.c.l.b16 %v1510
        %v2183 = vunpack.c.h.b16 %v1510
        %v2184 = vunpack.c.l.b16 %v1511
        %v2185 = vunpack.c.h.b16 %v1511
        %v2186 = vunpack.c.l.b16 %v1512
        %v2187 = vunpack.c.h.b16 %v1512
        %v2188 = vunpack.c.l.b16 %v1513
        %v2189 = vunpack.c.h.b16 %v1513
        %v2190 = vunpack.c.l.b16 %v1514
        %v2191 = vunpack.c.h.b16 %v1514
        %v2192 = vunpack.c.l.b16 %v1515
        %v2193 = vunpack.c.h.b16 %v1515
        %v2194 = vunpack.c.l.b16 %v1516
        %v2195 = vunpack.c.h.b16 %v1516
        %v2196 = vunpack.c.l.b16 %v1517
        %v2197 = vunpack.c.h.b16 %v1517
        %v2198 = vunpack.c.l.b16 %v1518
        %v2199 = vunpack.c.h.b16 %v1518
        %v2200 = vunpack.c.l.b16 %v1519
        %v2201 = vunpack.c.h.b16 %v1519
        %v2202 = vunpack.c.l.b16 %v1520
        %v2203 = vunpack.c.h.b16 %v1520
        %v2204 = vunpack.c.l.b16 %v1521
        %v2205 = vunpack.c.h.b16 %v1521
        %v2206 = vunpack.c.l.b16 %v1522
        %v2207 = vunpack.c.h.b16 %v1522
        %v2208 = vunpack.c.l.b16 %v1523
        %v2209 = vunpack.c.h.b16 %v1523
        %v2210 = vunpack.c.l.b16 %v1524
        %v2211 = vunpack.c.h.b16 %v1524
        %v2212 = vunpack.c.l.b16 %v1525
        %v2213 = vunpack.c.h.b16 %v1525
        %v2214 = vunpack.c.l.b16 %v1526
        %v2215 = vunpack.c.h.b16 %v1526
        %v2216 = vunpack.c.l.b16 %v1527
        %v2217 = vunpack.c.h.b16 %v1527
        %v2218 = vunpack.c.l.b16 %v1528
        %v2219 = vunpack.c.h.b16 %v1528
        %v2220 = vunpack.c.l.b16 %v1529
        %v2221 = vunpack.c.h.b16 %v1529
        %v2222 = vunpack.c.l.b16 %v1530
        %v2223 = vunpack.c.h.b16 %v1530
        %v2224 = vunpack.c.l.b16 %v1531
        %v2225 = vunpack.c.h.b16 %v1531
        %v2226 = vunpack.c.l.b16 %v1532
        %v2227 = vunpack.c.h.b16 %v1532
        %v2228 = vunpack.c.l.b16 %v1533
        %v2229 = vunpack.c.h.b16 %v1533
        %v2230 = vunpack.c.l.b16 %v1534
        %v2231 = vunpack.c.h.b16 %v1534
        %v2232 = vunpack.c.l.b16 %v1535
        %v2233 = vunpack.c.h.b16 %v1535
        %v2234 = vunpack.c.l.b16 %v1536
        %v2235 = vunpack.c.h.b16 %v1536
        %v2236 = vunpack.c.l.b16 %v1537
        %v2237 = vunpack.c.h.b16 %v1537
        %v2238 = vunpack.c.l.b16 %v1538
        %v2239 = vunpack.c.h.b16 %v1538
        %v2240 = vunpack.c.l.b16 %v1539
        %v2241 = vunpack.c.h.b16 %v1539
        %v2242 = vunpack.c.l.b16 %v1540
        %v2243 = vunpack.c.h.b16 %v1540
        %v2244 = vunpack.c.l.b16 %v1541
        %v2245 = vunpack.c.h.b16 %v1541
        %v2246 = vunpack.c.l.b16 %v1542
        %v2247 = vunpack.c.h.b16 %v1542
        %v2248 = vunpack.c.l.b16 %v1543
        %v2249 = vunpack.c.h.b16 %v1543
        %v2250 = vunpack.c.l.b16 %v1544
        %v2251 = vunpack.c.h.b16 %v1544
        %v2252 = vunpack.c.l.b16 %v1545
        %v2253 = vunpack.c.h.b16 %v1545
        %v2254 = vunpack.c.l.b16 %v1546
        %v2255 = vunpack.c.h.b16 %v1546
        %v2256 = vunpack.c.l.b16 %v1547
        %v2257 = vunpack.c.h.b16 %v1547
        %v2258 = vunpack.c.l.b16 %v1548
        %v2259 = vunpack.c.h.b16 %v1548
        %v2260 = vunpack.c.l.b16 %v1549
        %v2261 = vunpack.c.h.b16 %v1549
        %v2262 = vunpack.c.l.b16 %v1550
        %v2263 = vunpack.c.h.b16 %v1550
        %v2264 = vunpack.c.l.b16 %v1551
        %v2265 = vunpack.c.h.b16 %v1551
        %v2266 = vunpack.c.l.b16 %v1552
        %v2267 = vunpack.c.h.b16 %v1552
        %v2268 = vunpack.c.l.b16 %v1553
        %v2269 = vunpack.c.h.b16 %v1553
        %v2270 = vunpack.c.l.b16 %v1554
        %v2271 = vunpack.c.h.b16 %v1554
        %v2272 = vunpack.c.l.b16 %v1555
        %v2273 = vunpack.c.h.b16 %v1555
        %v2274 = vunpack.c.l.b16 %v1556
        %v2275 = vunpack.c.h.b16 %v1556
        %v2276 = vunpack.c.l.b16 %v1557
        %v2277 = vunpack.c.h.b16 %v1557
        %v2278 = vunpack.c.l.b16 %v1558
        %v2279 = vunpack.c.h.b16 %v1558
        %v2280 = vunpack.c.l.b16 %v1559
        %v2281 = vunpack.c.h.b16 %v1559
        %v2282 = vunpack.c.l.b16 %v1560
        %v2283 = vunpack.c.h.b16 %v1560
        %v2284 = vunpack.c.l.b16 %v1561
        %v2285 = vunpack.c.h.b16 %v1561
        %v2286 = vunpack.c.l.b16 %v1562
        %v2287 = vunpack.c.h.b16 %v1562
        %v2288 = vunpack.c.l.b16 %v1563
        %v2289 = vunpack.c.h.b16 %v1563
        %v2290 = vunpack.c.l.b16 %v1564
        %v2291 = vunpack.c.h.b16 %v1564
        %v2292 = vunpack.c.l.b16 %v1565
        %v2293 = vunpack.c.h.b16 %v1565
        %v2294 = vunpack.c.l.b16 %v1566
        %v2295 = vunpack.c.h.b16 %v1566
        %v2296 = vunpack.c.l.b16 %v1567
        %v2297 = vunpack.c.h.b16 %v1567
        %v2298 = vunpack.c.l.b16 %v1568
        %v2299 = vunpack.c.h.b16 %v1568
        %v2300 = vunpack.c.l.b16 %v1569
        %v2301 = vunpack.c.h.b16 %v1569
        %v2302 = vunpack.c.l.b16 %v1570
        %v2303 = vunpack.c.h.b16 %v1570
        %v2304 = vunpack.c.l.b16 %v1571
        %v2305 = vunpack.c.h.b16 %v1571
        %v2306 = vunpack.c.l.b16 %v1572
        %v2307 = vunpack.c.h.b16 %v1572
        %v2308 = vunpack.c.l.b16 %v1573
        %v2309 = vunpack.c.h.b16 %v1573
        %v2310 = vunpack.c.l.b16 %v1574
        %v2311 = vunpack.c.h.b16 %v1574
        %v2312 = vunpack.c.l.b16 %v1575
        %v2313 = vunpack.c.h.b16 %v1575
        %v2314 = vunpack.c.l.b16 %v1576
        %v2315 = vunpack.c.h.b16 %v1576
        %v2316 = vunpack.c.l.b16 %v1577
        %v2317 = vunpack.c.h.b16 %v1577
        %v2318 = vunpack.c.l.b16 %v1578
        %v2319 = vunpack.c.h.b16 %v1578
        %v2320 = vunpack.c.l.b16 %v1579
        %v2321 = vunpack.c.h.b16 %v1579
        %v2322 = vunpack.c.l.b16 %v1580
        %v2323 = vunpack.c.h.b16 %v1580
        %v2324 = vunpack.c.l.b16 %v1581
        %v2325 = vunpack.c.h.b16 %v1581
        %v2326 = vunpack.c.l.b16 %v1582
        %v2327 = vunpack.c.h.b16 %v1582
        %v2328 = vunpack.c.l.b16 %v1583
        %v2329 = vunpack.c.h.b16 %v1583
        %v2330 = vunpack.c.l.b16 %v1584
        %v2331 = vunpack.c.h.b16 %v1584
        %v2332 = vunpack.c.l.b16 %v1585
        %v2333 = vunpack.c.h.b16 %v1585
        %v2334 = vunpack.c.l.b16 %v1586
        %v2335 = vunpack.c.h.b16 %v1586
        %v2336 = vunpack.c.l.b16 %v1587
        %v2337 = vunpack.c.h.b16 %v1587
        %v2338 = vunpack.c.l.b16 %v1588
        %v2339 = vunpack.c.h.b16 %v1588
        %v2340 = vunpack.c.l.b16 %v1589
        %v2341 = vunpack.c.h.b16 %v1589
        %v2342 = vunpack.c.l.b16 %v1590
        %v2343 = vunpack.c.h.b16 %v1590
        %v2344 = vunpack.c.l.b16 %v1591
        %v2345 = vunpack.c.h.b16 %v1591
        %v2346 = vunpack.c.l.b16 %v1592
        %v2347 = vunpack.c.h.b16 %v1592
        %v2348 = vunpack.c.l.b16 %v1593
        %v2349 = vunpack.c.h.b16 %v1593
        %v2350 = vunpack.c.l.b16 %v1594
        %v2351 = vunpack.c.h.b16 %v1594
        %v2352 = vunpack.c.l.b16 %v1595
        %v2353 = vunpack.c.h.b16 %v1595
        %v2354 = vunpack.c.l.b16 %v1596
        %v2355 = vunpack.c.h.b16 %v1596
        %v2356 = vunpack.c.l.b16 %v1597
        %v2357 = vunpack.c.h.b16 %v1597
        %v2358 = vunpack.c.l.b16 %v1598
        %v2359 = vunpack.c.h.b16 %v1598
        %v2360 = vunpack.c.l.b16 %v1599
        %v2361 = vunpack.c.h.b16 %v1599
        %v2362 = vunpack.c.l.b16 %v1600
        %v2363 = vunpack.c.h.b16 %v1600
        %v2364 = vunpack.c.l.b16 %v1601
        %v2365 = vunpack.c.h.b16 %v1601
        %v2366 = vunpack.c.l.b16 %v1602
        %v2367 = vunpack.c.h.b16 %v1602
        %v2368 = vunpack.c.l.b16 %v1603
        %v2369 = vunpack.c.h.b16 %v1603
        %v2370 = vunpack.c.l.b16 %v1604
        %v2371 = vunpack.c.h.b16 %v1604
        %v2372 = vunpack.c.l.b16 %v1605
        %v2373 = vunpack.c.h.b16 %v1605
        %v2374 = vunpack.c.l.b16 %v1606
        %v2375 = vunpack.c.h.b16 %v1606
        %v2376 = vunpack.c.l.b16 %v1607
        %v2377 = vunpack.c.h.b16 %v1607
        %v2378 = vunpack.c.l.b16 %v1608
        %v2379 = vunpack.c.h.b16 %v1608
        %v2380 = vunpack.c.l.b16 %v1609
        %v2381 = vunpack.c.h.b16 %v1609
        %v2382 = vunpack.c.l.b16 %v1610
        %v2383 = vunpack.c.h.b16 %v1610
        %v2384 = vunpack.c.l.b16 %v1611
        %v2385 = vunpack.c.h.b16 %v1611
        %v2386 = vunpack.c.l.b16 %v1612
        %v2387 = vunpack.c.h.b16 %v1612
        %v2388 = vunpack.c.l.b16 %v1613
        %v2389 = vunpack.c.h.b16 %v1613
        %v2390 = vunpack.c.l.b16 %v1614
        %v2391 = vunpack.c.h.b16 %v1614
        %v2392 = vunpack.c.l.b16 %v1615
        %v2393 = vunpack.c.h.b16 %v1615
        %v2394 = vunpack.c.l.b16 %v1616
        %v2395 = vunpack.c.h.b16 %v1616
        %v2396 = vunpack.c.l.b16 %v1617
        %v2397 = vunpack.c.h.b16 %v1617
        %v2398 = vunpack.c.l.b16 %v1618
        %v2399 = vunpack.c.h.b16 %v1618
        %v2400 = vunpack.c.l.b16 %v1619
        %v2401 = vunpack.c.h.b16 %v1619
        %v2402 = vunpack.c.l.b16 %v1620
        %v2403 = vunpack.c.h.b16 %v1620
        %v2404 = vunpack.c.l.b16 %v1621
        %v2405 = vunpack.c.h.b16 %v1621
        %v2406 = vunpack.c.l.b16 %v1622
        %v2407 = vunpack.c.h.b16 %v1622
        %v2408 = vunpack.c.l.b16 %v1623
        %v2409 = vunpack.c.h.b16 %v1623
        %v2410 = vunpack.c.l.b16 %v1624
        %v2411 = vunpack.c.h.b16 %v1624
        %v2412 = vunpack.c.l.b16 %v1625
        %v2413 = vunpack.c.h.b16 %v1625
        %v2414 = vunpack.c.l.b16 %v1626
        %v2415 = vunpack.c.h.b16 %v1626
        %v2416 = vunpack.c.l.b16 %v1627
        %v2417 = vunpack.c.h.b16 %v1627
        %v2418 = vunpack.c.l.b16 %v1628
        %v2419 = vunpack.c.h.b16 %v1628
        %v2420 = vunpack.c.l.b16 %v1629
        %v2421 = vunpack.c.h.b16 %v1629
        %v2422 = vunpack.c.l.b16 %v1630
        %v2423 = vunpack.c.h.b16 %v1630
        %v2424 = vunpack.c.l.b16 %v1631
        %v2425 = vunpack.c.h.b16 %v1631
        %v2426 = vunpack.c.l.b16 %v1632
        %v2427 = vunpack.c.h.b16 %v1632
        %v2428 = vunpack.c.l.b16 %v1633
        %v2429 = vunpack.c.h.b16 %v1633
        %v2430 = vunpack.c.l.b16 %v1634
        %v2431 = vunpack.c.h.b16 %v1634
        %v2432 = vunpack.c.l.b16 %v1635
        %v2433 = vunpack.c.h.b16 %v1635
        %v2434 = vunpack.c.l.b16 %v1636
        %v2435 = vunpack.c.h.b16 %v1636
        %v2436 = vunpack.c.l.b16 %v1637
        %v2437 = vunpack.c.h.b16 %v1637
        %v2438 = vunpack.c.l.b16 %v1638
        %v2439 = vunpack.c.h.b16 %v1638
        %v2440 = vunpack.c.l.b16 %v1639
        %v2441 = vunpack.c.h.b16 %v1639
        %v2442 = vunpack.c.l.b16 %v1640
        %v2443 = vunpack.c.h.b16 %v1640
        %v2444 = vunpack.c.l.b16 %v1641
        %v2445 = vunpack.c.h.b16 %v1641
        %v2446 = vunpack.c.l.b16 %v1642
        %v2447 = vunpack.c.h.b16 %v1642
        %v2448 = vunpack.c.l.b16 %v1643
        %v2449 = vunpack.c.h.b16 %v1643
        %v2450 = vunpack.c.l.b16 %v1644
        %v2451 = vunpack.c.h.b16 %v1644
        %v2452 = vunpack.c.l.b16 %v1645
        %v2453 = vunpack.c.h.b16 %v1645
        %v2454 = vunpack.c.l.b16 %v1646
        %v2455 = vunpack.c.h.b16 %v1646
        %v2456 = vunpack.c.l.b16 %v1647
        %v2457 = vunpack.c.h.b16 %v1647
        %v2458 = vunpack.c.l.b16 %v1648
        %v2459 = vunpack.c.h.b16 %v1648
        %v2460 = vunpack.c.l.b16 %v1649
        %v2461 = vunpack.c.h.b16 %v1649
        %v2462 = vunpack.c.l.b16 %v1650
        %v2463 = vunpack.c.h.b16 %v1650
        %v2464 = vunpack.c.l.b16 %v1651
        %v2465 = vunpack.c.h.b16 %v1651
        %v2466 = vunpack.c.l.b16 %v1652
        %v2467 = vunpack.c.h.b16 %v1652
        %v2468 = vunpack.c.l.b16 %v1653
        %v2469 = vunpack.c.h.b16 %v1653
        %v2470 = vunpack.c.l.b16 %v1654
        %v2471 = vunpack.c.h.b16 %v1654
        %v2472 = vunpack.c.l.b16 %v1655
        %v2473 = vunpack.c.h.b16 %v1655
        %v2474 = vunpack.c.l.b16 %v1656
        %v2475 = vunpack.c.h.b16 %v1656
        %v2476 = vunpack.c.l.b16 %v1657
        %v2477 = vunpack.c.h.b16 %v1657
        %v2478 = vunpack.c.l.b16 %v1658
        %v2479 = vunpack.c.h.b16 %v1658
        %v2480 = vunpack.c.l.b16 %v1659
        %v2481 = vunpack.c.h.b16 %v1659
        %v2482 = vunpack.c.l.b16 %v1660
        %v2483 = vunpack.c.h.b16 %v1660
        %v2484 = vunpack.c.l.b16 %v1661
        %v2485 = vunpack.c.h.b16 %v1661
        %v2486 = vunpack.c.l.b16 %v1662
        %v2487 = vunpack.c.h.b16 %v1662
        %v2488 = vunpack.c.l.b16 %v1663
        %v2489 = vunpack.c.h.b16 %v1663
        %v2490 = vunpack.c.l.b16 %v1664
        %v2491 = vunpack.c.h.b16 %v1664
        %v2492 = vunpack.c.l.b16 %v1665
        %v2493 = vunpack.c.h.b16 %v1665
        %v2494 = vunpack.c.l.b16 %v1666
        %v2495 = vunpack.c.h.b16 %v1666
        %v2496 = vunpack.c.l.b16 %v1667
        %v2497 = vunpack.c.h.b16 %v1667
        %v2498 = vunpack.c.l.b16 %v1668
        %v2499 = vunpack.c.h.b16 %v1668
        %v2500 = vunpack.c.l.b16 %v1669
        %v2501 = vunpack.c.h.b16 %v1669
        %v2502 = vunpack.c.l.b16 %v1670
        %v2503 = vunpack.c.h.b16 %v1670
        %v2504 = vunpack.c.l.b16 %v1671
        %v2505 = vunpack.c.h.b16 %v1671
        %v2506 = vunpack.c.l.b16 %v1672
        %v2507 = vunpack.c.h.b16 %v1672
        %v2508 = vunpack.c.l.b16 %v1673
        %v2509 = vunpack.c.h.b16 %v1673
        %v2510 = vunpack.c.l.b16 %v1674
        %v2511 = vunpack.c.h.b16 %v1674
        %v2512 = vunpack.c.l.b16 %v1675
        %v2513 = vunpack.c.h.b16 %v1675
        %v2514 = vunpack.c.l.b16 %v1676
        %v2515 = vunpack.c.h.b16 %v1676
        %v2516 = vunpack.c.l.b16 %v1677
        %v2517 = vunpack.c.h.b16 %v1677
        %v2518 = vunpack.c.l.b16 %v1678
        %v2519 = vunpack.c.h.b16 %v1678
        %v2520 = vunpack.c.l.b16 %v1679
        %v2521 = vunpack.c.h.b16 %v1679
        %v2522 = vunpack.c.l.b16 %v1680
        %v2523 = vunpack.c.h.b16 %v1680
        %v2524 = vunpack.c.l.b16 %v1681
        %v2525 = vunpack.c.h.b16 %v1681
        %v2526 = vunpack.c.l.b16 %v1682
        %v2527 = vunpack.c.h.b16 %v1682
        %v2528 = vunpack.c.l.b16 %v1683
        %v2529 = vunpack.c.h.b16 %v1683
        %v2530 = vunpack.c.l.b16 %v1684
        %v2531 = vunpack.c.h.b16 %v1684
        %v2532 = vunpack.c.l.b16 %v1685
        %v2533 = vunpack.c.h.b16 %v1685
        %v2534 = vunpack.c.l.b16 %v1686
        %v2535 = vunpack.c.h.b16 %v1686
        %v2536 = vunpack.c.l.b16 %v1687
        %v2537 = vunpack.c.h.b16 %v1687
        %v2538 = vunpack.c.l.b16 %v1688
        %v2539 = vunpack.c.h.b16 %v1688
        %v2540 = vunpack.c.l.b16 %v1689
        %v2541 = vunpack.c.h.b16 %v1689
        %v2542 = vunpack.c.l.b16 %v1690
        %v2543 = vunpack.c.h.b16 %v1690
        %v2544 = vunpack.c.l.b16 %v1691
        %v2545 = vunpack.c.h.b16 %v1691
        %v2546 = vunpack.c.l.b16 %v1692
        %v2547 = vunpack.c.h.b16 %v1692
        %v2548 = vunpack.c.l.b16 %v1693
        %v2549 = vunpack.c.h.b16 %v1693
        %v2550 = vunpack.c.l.b16 %v1694
        %v2551 = vunpack.c.h.b16 %v1694
        %v2552 = vunpack.c.l.b16 %v1695
        %v2553 = vunpack.c.h.b16 %v1695
        %v2554 = vunpack.c.l.b16 %v1696
        %v2555 = vunpack.c.h.b16 %v1696
        %v2556 = vunpack.c.l.b16 %v1697
        %v2557 = vunpack.c.h.b16 %v1697
        %v2558 = vunpack.c.l.b16 %v1698
        %v2559 = vunpack.c.h.b16 %v1698
        %v2560 = vunpack.c.l.b16 %v1699
        %v2561 = vunpack.c.h.b16 %v1699
        %v2562 = vunpack.c.l.b16 %v1700
        %v2563 = vunpack.c.h.b16 %v1700
        %v2564 = vunpack.c.l.b16 %v1701
        %v2565 = vunpack.c.h.b16 %v1701
        %v2566 = vunpack.c.l.b16 %v1702
        %v2567 = vunpack.c.h.b16 %v1702
        %v2568 = vunpack.c.l.b16 %v1703
        %v2569 = vunpack.c.h.b16 %v1703
        %v2570 = vunpack.c.l.b16 %v1704
        %v2571 = vunpack.c.h.b16 %v1704
        %v2572 = vunpack.c.l.b16 %v1705
        %v2573 = vunpack.c.h.b16 %v1705
        %v2574 = vunpack.c.l.b16 %v1706
        %v2575 = vunpack.c.h.b16 %v1706
        %v2576 = vunpack.c.l.b16 %v1707
        %v2577 = vunpack.c.h.b16 %v1707
        %v2578 = vunpack.c.l.b16 %v1708
        %v2579 = vunpack.c.h.b16 %v1708
        %v2580 = vunpack.c.l.b16 %v1709
        %v2581 = vunpack.c.h.b16 %v1709
        %v2582 = vunpack.c.l.b16 %v1710
        %v2583 = vunpack.c.h.b16 %v1710
        %v2584 = vunpack.c.l.b16 %v1711
        %v2585 = vunpack.c.h.b16 %v1711
        %v2586 = vunpack.c.l.b16 %v1712
        %v2587 = vunpack.c.h.b16 %v1712
        %v2588 = vunpack.c.l.b16 %v1713
        %v2589 = vunpack.c.h.b16 %v1713
        %v2590 = vunpack.c.l.b16 %v1714
        %v2591 = vunpack.c.h.b16 %v1714
        %v2592 = vunpack.c.l.b16 %v1715
        %v2593 = vunpack.c.h.b16 %v1715
        %v2594 = vunpack.c.l.b16 %v1716
        %v2595 = vunpack.c.h.b16 %v1716
        %v2596 = vunpack.c.l.b16 %v1717
        %v2597 = vunpack.c.h.b16 %v1717
        %v2598 = vunpack.c.l.b16 %v1718
        %v2599 = vunpack.c.h.b16 %v1718
        %v2600 = vunpack.c.l.b16 %v1719
        %v2601 = vunpack.c.h.b16 %v1719
        %v2602 = vunpack.c.l.b16 %v1720
        %v2603 = vunpack.c.h.b16 %v1720
        %v2604 = vunpack.c.l.b16 %v1721
        %v2605 = vunpack.c.h.b16 %v1721
        %v2606 = vunpack.c.l.b16 %v1722
        %v2607 = vunpack.c.h.b16 %v1722
        %v2608 = vunpack.c.l.b16 %v1723
        %v2609 = vunpack.c.h.b16 %v1723
        %v2610 = vunpack.c.l.b16 %v1724
        %v2611 = vunpack.c.h.b16 %v1724
        %v2612 = vunpack.c.l.b16 %v1725
        %v2613 = vunpack.c.h.b16 %v1725
        %v2614 = vunpack.c.l.b16 %v1726
        %v2615 = vunpack.c.h.b16 %v1726
        %v2616 = vunpack.c.l.b16 %v1727
        %v2617 = vunpack.c.h.b16 %v1727
        %v2618 = vunpack.c.l.b16 %v1728
        %v2619 = vunpack.c.h.b16 %v1728
        %v2620 = vunpack.c.l.b16 %v1729
        %v2621 = vunpack.c.h.b16 %v1729
        %v2622 = vunpack.c.l.b16 %v1730
        %v2623 = vunpack.c.h.b16 %v1730
        %v2624 = vunpack.c.l.b16 %v1731
        %v2625 = vunpack.c.h.b16 %v1731
        %v2626 = vunpack.c.l.b16 %v1732
        %v2627 = vunpack.c.h.b16 %v1732
        %v2628 = vunpack.c.l.b16 %v1733
        %v2629 = vunpack.c.h.b16 %v1733
        %v2630 = vunpack.c.l.b16 %v1734
        %v2631 = vunpack.c.h.b16 %v1734
        %v2632 = vunpack.c.l.b16 %v1735
        %v2633 = vunpack.c.h.b16 %v1735
        %v2634 = vunpack.c.l.b16 %v1736
        %v2635 = vunpack.c.h.b16 %v1736
        %v2636 = vunpack.c.l.b16 %v1737
        %v2637 = vunpack.c.h.b16 %v1737
        %v2638 = vunpack.c.l.b16 %v1738
        %v2639 = vunpack.c.h.b16 %v1738
        %v2640 = vunpack.c.l.b16 %v1739
        %v2641 = vunpack.c.h.b16 %v1739
        %v2642 = vunpack.c.l.b16 %v1740
        %v2643 = vunpack.c.h.b16 %v1740
        %v2644 = vunpack.c.l.b16 %v1741
        %v2645 = vunpack.c.h.b16 %v1741
        %v2646 = vunpack.c.l.b16 %v1742
        %v2647 = vunpack.c.h.b16 %v1742
        %v2648 = vunpack.c.l.b16 %v1743
        %v2649 = vunpack.c.h.b16 %v1743
        %v2650 = vunpack.c.l.b16 %v1744
        %v2651 = vunpack.c.h.b16 %v1744
        %v2652 = vunpack.c.l.b16 %v1745
        %v2653 = vunpack.c.h.b16 %v1745
        %v2654 = vunpack.c.l.b16 %v1746
        %v2655 = vunpack.c.h.b16 %v1746
        %v2656 = vunpack.c.l.b16 %v1747
        %v2657 = vunpack.c.h.b16 %v1747
        %v2658 = vunpack.c.l.b16 %v1748
        %v2659 = vunpack.c.h.b16 %v1748
        %v2660 = vunpack.c.l.b16 %v1749
        %v2661 = vunpack.c.h.b16 %v1749
        %v2662 = vunpack.c.l.b16 %v1750
        %v2663 = vunpack.c.h.b16 %v1750
        %v2664 = vunpack.c.l.b16 %v1751
        %v2665 = vunpack.c.h.b16 %v1751
        %v2666 = vunpack.c.l.b16 %v1752
        %v2667 = vunpack.c.h.b16 %v1752
        %v2668 = vunpack.c.l.b16 %v1753
        %v2669 = vunpack.c.h.b16 %v1753
        %v2670 = vunpack.c.l.b16 %v1754
        %v2671 = vunpack.c.h.b16 %v1754
        %v2672 = vunpack.c.l.b16 %v1755
        %v2673 = vunpack.c.h.b16 %v1755
        %v2674 = vunpack.c.l.b16 %v1756
        %v2675 = vunpack.c.h.b16 %v1756
        %v2676 = vunpack.c.l.b16 %v1757
        %v2677 = vunpack.c.h.b16 %v1757
        %v2678 = vunpack.c.l.b16 %v1758
        %v2679 = vunpack.c.h.b16 %v1758
        %v2680 = vunpack.c.l.b16 %v1759
        %v2681 = vunpack.c.h.b16 %v1759
        %v2682 = vunpack.c.l.b16 %v1760
        %v2683 = vunpack.c.h.b16 %v1760
        %v2684 = vunpack.c.l.b16 %v1761
        %v2685 = vunpack.c.h.b16 %v1761
        %v2686 = vunpack.c.l.b16 %v1762
        %v2687 = vunpack.c.h.b16 %v1762
        %v2688 = vunpack.c.l.b16 %v1763
        %v2689 = vunpack.c.h.b16 %v1763
        %v2690 = vunpack.c.l.b16 %v1764
        %v2691 = vunpack.c.h.b16 %v1764
        %v2692 = vunpack.c.l.b16 %v1765
        %v2693 = vunpack.c.h.b16 %v1765
        %v2694 = vunpack.c.l.b16 %v1766
        %v2695 = vunpack.c.h.b16 %v1766
        %v2696 = vunpack.c.l.b16 %v1767
        %v2697 = vunpack.c.h.b16 %v1767
        %v2698 = vunpack.c.l.b16 %v1768
        %v2699 = vunpack.c.h.b16 %v1768
        %v2700 = vunpack.c.l.b16 %v1769
        %v2701 = vunpack.c.h.b16 %v1769
        %v2702 = vunpack.c.l.b16 %v1770
        %v2703 = vunpack.c.h.b16 %v1770
        %v2704 = vunpack.c.l.b16 %v1771
        %v2705 = vunpack.c.h.b16 %v1771
        %v2706 = vunpack.c.l.b16 %v1772
        %v2707 = vunpack.c.h.b16 %v1772
        %v2708 = vunpack.c.l.b16 %v1773
        %v2709 = vunpack.c.h.b16 %v1773
        %v2710 = vunpack.c.l.b16 %v1774
        %v2711 = vunpack.c.h.b16 %v1774
        %v2712 = vunpack.c.l.b16 %v1775
        %v2713 = vunpack.c.h.b16 %v1775
        %v2714 = vunpack.c.l.b16 %v1776
        %v2715 = vunpack.c.h.b16 %v1776
        %v2716 = vunpack.c.l.b16 %v1777
        %v2717 = vunpack.c.h.b16 %v1777
        %v2718 = vunpack.c.l.b16 %v1778
        %v2719 = vunpack.c.h.b16 %v1778
        %v2720 = vunpack.c.l.b16 %v1779
        %v2721 = vunpack.c.h.b16 %v1779
        %v2722 = vunpack.c.l.b16 %v1780
        %v2723 = vunpack.c.h.b16 %v1780
        %v2724 = vunpack.c.l.b16 %v1781
        %v2725 = vunpack.c.h.b16 %v1781
        %v2726 = vunpack.c.l.b16 %v1782
        %v2727 = vunpack.c.h.b16 %v1782
        %v2728 = vunpack.c.l.b16 %v1783
        %v2729 = vunpack.c.h.b16 %v1783
        %v2730 = vunpack.c.l.b16 %v1784
        %v2731 = vunpack.c.h.b16 %v1784
        %v2732 = vunpack.c.l.b16 %v1785
        %v2733 = vunpack.c.h.b16 %v1785
        %v2734 = vunpack.c.l.b16 %v1786
        %v2735 = vunpack.c.h.b16 %v1786
        %v2736 = vunpack.c.l.b16 %v1787
        %v2737 = vunpack.c.h.b16 %v1787
        %v2738 = vunpack.c.l.b16 %v1788
        %v2739 = vunpack.c.h.b16 %v1788
        %v2740 = vunpack.c.l.b16 %v1789
        %v2741 = vunpack.c.h.b16 %v1789
        %v2742 = vunpack.c.l.b16 %v1790
        %v2743 = vunpack.c.h.b16 %v1790
        %v2744 = vunpack.c.l.b16 %v1791
        %v2745 = vunpack.c.h.b16 %v1791
        %v2746 = vunpack.c.l.b16 %v1792
        %v2747 = vunpack.c.h.b16 %v1792
        %v2748 = vunpack.c.l.b16 %v1793
        %v2749 = vunpack.c.h.b16 %v1793
        %v2750 = vunpack.c.l.b16 %v1794
        %v2751 = vunpack.c.h.b16 %v1794
        %v2752 = vunpack.c.l.b16 %v1795
        %v2753 = vunpack.c.h.b16 %v1795
        %v2754 = vunpack.c.l.b16 %v1796
        %v2755 = vunpack.c.h.b16 %v1796
        %v2756 = vunpack.c.l.b16 %v1797
        %v2757 = vunpack.c.h.b16 %v1797
        %v2758 = vunpack.c.l.b16 %v1798
        %v2759 = vunpack.c.h.b16 %v1798
        %v2760 = vunpack.c.l.b16 %v1799
        %v2761 = vunpack.c.h.b16 %v1799
        %v2762 = vunpack.c.l.b16 %v1800
        %v2763 = vunpack.c.h.b16 %v1800
        %v2764 = vunpack.c.l.b16 %v1801
        %v2765 = vunpack.c.h.b16 %v1801
        %v2766 = vunpack.c.l.b16 %v1802
        %v2767 = vunpack.c.h.b16 %v1802
        %v2768 = vunpack.c.l.b16 %v1803
        %v2769 = vunpack.c.h.b16 %v1803
        %v2770 = vunpack.c.l.b16 %v1804
        %v2771 = vunpack.c.h.b16 %v1804
        %v2772 = vunpack.c.l.b16 %v1805
        %v2773 = vunpack.c.h.b16 %v1805
        %v2774 = vunpack.c.l.b16 %v1806
        %v2775 = vunpack.c.h.b16 %v1806
        %v2776 = vunpack.c.l.b16 %v1807
        %v2777 = vunpack.c.h.b16 %v1807
        %v2778 = vunpack.c.l.b16 %v1808
        %v2779 = vunpack.c.h.b16 %v1808
        %v2780 = vunpack.c.l.b16 %v1809
        %v2781 = vunpack.c.h.b16 %v1809
        %v2782 = vunpack.c.l.b16 %v1810
        %v2783 = vunpack.c.h.b16 %v1810
        %v2784 = vpack.c.b16 %v2138, %v2136
        %v2785 = vpack.c.b16 %v2139, %v2137
        %v2786 = vpack.c.b16 %v2142, %v2140
        %v2787 = vpack.c.b16 %v2143, %v2141
        %v2788 = vpack.c.b16 %v2146, %v2144
        %v2789 = vpack.c.b16 %v2147, %v2145
        %v2790 = vpack.c.b16 %v2150, %v2148
        %v2791 = vpack.c.b16 %v2151, %v2149
        %v2792 = vpack.c.b16 %v2154, %v2152
        %v2793 = vpack.c.b16 %v2155, %v2153
        %v2794 = vpack.c.b16 %v2158, %v2156
        %v2795 = vpack.c.b16 %v2159, %v2157
        %v2796 = vpack.c.b16 %v2162, %v2160
        %v2797 = vpack.c.b16 %v2163, %v2161
        %v2798 = vpack.c.b16 %v2166, %v2164
        %v2799 = vpack.c.b16 %v2167, %v2165
        %v2800 = vpack.c.b16 %v2170, %v2168
        %v2801 = vpack.c.b16 %v2171, %v2169
        %v2802 = vpack.c.b16 %v2174, %v2172
        %v2803 = vpack.c.b16 %v2175, %v2173
        %v2804 = vpack.c.b16 %v2178, %v2176
        %v2805 = vpack.c.b16 %v2179, %v2177
        %v2806 = vpack.c.b16 %v2182, %v2180
        %v2807 = vpack.c.b16 %v2183, %v2181
        %v2808 = vpack.c.b16 %v2186, %v2184
        %v2809 = vpack.c.b16 %v2187, %v2185
        %v2810 = vpack.c.b16 %v2190, %v2188
        %v2811 = vpack.c.b16 %v2191, %v2189
        %v2812 = vpack.c.b16 %v2194, %v2192
        %v2813 = vpack.c.b16 %v2195, %v2193
        %v2814 = vpack.c.b16 %v2198, %v2196
        %v2815 = vpack.c.b16 %v2199, %v2197
        %v2816 = vpack.c.b16 %v2202, %v2200
        %v2817 = vpack.c.b16 %v2203, %v2201
        %v2818 = vpack.c.b16 %v2206, %v2204
        %v2819 = vpack.c.b16 %v2207, %v2205
        %v2820 = vpack.c.b16 %v2210, %v2208
        %v2821 = vpack.c.b16 %v2211, %v2209
        %v2822 = vpack.c.b16 %v2214, %v2212
        %v2823 = vpack.c.b16 %v2215, %v2213
        %v2824 = vpack.c.b16 %v2218, %v2216
        %v2825 = vpack.c.b16 %v2219, %v2217
        %v2826 = vpack.c.b16 %v2222, %v2220
        %v2827 = vpack.c.b16 %v2223, %v2221
        %v2828 = vpack.c.b16 %v2226, %v2224
        %v2829 = vpack.c.b16 %v2227, %v2225
        %v2830 = vpack.c.b16 %v2230, %v2228
        %v2831 = vpack.c.b16 %v2231, %v2229
        %v2832 = vpack.c.b16 %v2234, %v2232
        %v2833 = vpack.c.b16 %v2235, %v2233
        %v2834 = vpack.c.b16 %v2238, %v2236
        %v2835 = vpack.c.b16 %v2239, %v2237
        %v2836 = vpack.c.b16 %v2242, %v2240
        %v2837 = vpack.c.b16 %v2243, %v2241
        %v2838 = vpack.c.b16 %v2246, %v2244
        %v2839 = vpack.c.b16 %v2247, %v2245
        %v2840 = vpack.c.b16 %v2250, %v2248
        %v2841 = vpack.c.b16 %v2251, %v2249
        %v2842 = vpack.c.b16 %v2254, %v2252
        %v2843 = vpack.c.b16 %v2255, %v2253
        %v2844 = vpack.c.b16 %v2258, %v2256
        %v2845 = vpack.c.b16 %v2259, %v2257
        %v2846 = vpack.c.b16 %v2262, %v2260
        %v2847 = vpack.c.b16 %v2263, %v2261
        %v2848 = vpack.c.b16 %v2266, %v2264
        %v2849 = vpack.c.b16 %v2267, %v2265
        %v2850 = vpack.c.b16 %v2270, %v2268
        %v2851 = vpack.c.b16 %v2271, %v2269
        %v2852 = vpack.c.b16 %v2274, %v2272
        %v2853 = vpack.c.b16 %v2275, %v2273
        %v2854 = vpack.c.b16 %v2278, %v2276
        %v2855 = vpack.c.b16 %v2279, %v2277
        %v2856 = vpack.c.b16 %v2282, %v2280
        %v2857 = vpack.c.b16 %v2283, %v2281
        %v2858 = vpack.c.b16 %v2286, %v2284
        %v2859 = vpack.c.b16 %v2287, %v2285
        %v2860 = vpack.c.b16 %v2290, %v2288
        %v2861 = vpack.c.b16 %v2291, %v2289
        %v2862 = vpack.c.b16 %v2294, %v2292
        %v2863 = vpack.c.b16 %v2295, %v2293
        %v2864 = vpack.c.b16 %v2298, %v2296
        %v2865 = vpack.c.b16 %v2299, %v2297
        %v2866 = vpack.c.b16 %v2302, %v2300
        %v2867 = vpack.c.b16 %v2303, %v2301
        %v2868 = vpack.c.b16 %v2306, %v2304
        %v2869 = vpack.c.b16 %v2307, %v2305
        %v2870 = vpack.c.b16 %v2310, %v2308
        %v2871 = vpack.c.b16 %v2311, %v2309
        %v2872 = vpack.c.b16 %v2314, %v2312
        %v2873 = vpack.c.b16 %v2315, %v2313
        %v2874 = vpack.c.b16 %v2318, %v2316
        %v2875 = vpack.c.b16 %v2319, %v2317
        %v2876 = vpack.c.b16 %v2322, %v2320
        %v2877 = vpack.c.b16 %v2323, %v2321
        %v2878 = vpack.c.b16 %v2326, %v2324
        %v2879 = vpack.c.b16 %v2327, %v2325
        %v2880 = vpack.c.b16 %v2330, %v2328
        %v2881 = vpack.c.b16 %v2331, %v2329
        %v2882 = vpack.c.b16 %v2334, %v2332
        %v2883 = vpack.c.b16 %v2335, %v2333
        %v2884 = vpack.c.b16 %v2338, %v2336
        %v2885 = vpack.c.b16 %v2339, %v2337
        %v2886 = vpack.c.b16 %v2342, %v2340
        %v2887 = vpack.c.b16 %v2343, %v2341
        %v2888 = vpack.c.b16 %v2346, %v2344
        %v2889 = vpack.c.b16 %v2347, %v2345
        %v2890 = vpack.c.b16 %v2350, %v2348
        %v2891 = vpack.c.b16 %v2351, %v2349
        %v2892 = vpack.c.b16 %v2354, %v2352
        %v2893 = vpack.c.b16 %v2355, %v2353
        %v2894 = vpack.c.b16 %v2358, %v2356
        %v2895 = vpack.c.b16 %v2359, %v2357
        %v2896 = vpack.c.b16 %v2362, %v2360
        %v2897 = vpack.c.b16 %v2363, %v2361
        %v2898 = vpack.c.b16 %v2366, %v2364
        %v2899 = vpack.c.b16 %v2367, %v2365
        %v2900 = vpack.c.b16 %v2370, %v2368
        %v2901 = vpack.c.b16 %v2371, %v2369
        %v2902 = vpack.c.b16 %v2374, %v2372
        %v2903 = vpack.c.b16 %v2375, %v2373
        %v2904 = vpack.c.b16 %v2378, %v2376
        %v2905 = vpack.c.b16 %v2379, %v2377
        %v2906 = vpack.c.b16 %v2382, %v2380
        %v2907 = vpack.c.b16 %v2383, %v2381
        %v2908 = vpack.c.b16 %v2386, %v2384
        %v2909 = vpack.c.b16 %v2387, %v2385
        %v2910 = vpack.c.b16 %v2390, %v2388
        %v2911 = vpack.c.b16 %v2391, %v2389
        %v2912 = vpack.c.b16 %v2394, %v2392
        %v2913 = vpack.c.b16 %v2395, %v2393
        %v2914 = vpack.c.b16 %v2398, %v2396
        %v2915 = vpack.c.b16 %v2399, %v2397
        %v2916 = vpack.c.b16 %v2402, %v2400
        %v2917 = vpack.c.b16 %v2403, %v2401
        %v2918 = vpack.c.b16 %v2406, %v2404
        %v2919 = vpack.c.b16 %v2407, %v2405
        %v2920 = vpack.c.b16 %v2410, %v2408
        %v2921 = vpack.c.b16 %v2411, %v2409
        %v2922 = vpack.c.b16 %v2414, %v2412
        %v2923 = vpack.c.b16 %v2415, %v2413
        %v2924 = vpack.c.b16 %v2418, %v2416
        %v2925 = vpack.c.b16 %v2419, %v2417
        %v2926 = vpack.c.b16 %v2422, %v2420
        %v2927 = vpack.c.b16 %v2423, %v2421
        %v2928 = vpack.c.b16 %v2426, %v2424
        %v2929 = vpack.c.b16 %v2427, %v2425
        %v2930 = vpack.c.b16 %v2430, %v2428
        %v2931 = vpack.c.b16 %v2431, %v2429
        %v2932 = vpack.c.b16 %v2434, %v2432
        %v2933 = vpack.c.b16 %v2435, %v2433
        %v2934 = vpack.c.b16 %v2438, %v2436
        %v2935 = vpack.c.b16 %v2439, %v2437
        %v2936 = vpack.c.b16 %v2442, %v2440
        %v2937 = vpack.c.b16 %v2443, %v2441
        %v2938 = vpack.c.b16 %v2446, %v2444
        %v2939 = vpack.c.b16 %v2447, %v2445
        %v2940 = vpack.c.b16 %v2450, %v2448
        %v2941 = vpack.c.b16 %v2451, %v2449
        %v2942 = vpack.c.b16 %v2454, %v2452
        %v2943 = vpack.c.b16 %v2455, %v2453
        %v2944 = vpack.c.b16 %v2458, %v2456
        %v2945 = vpack.c.b16 %v2459, %v2457
        %v2946 = vpack.c.b16 %v2462, %v2460
        %v2947 = vpack.c.b16 %v2463, %v2461
        %v2948 = vpack.c.b16 %v2466, %v2464
        %v2949 = vpack.c.b16 %v2467, %v2465
        %v2950 = vpack.c.b16 %v2470, %v2468
        %v2951 = vpack.c.b16 %v2471, %v2469
        %v2952 = vpack.c.b16 %v2474, %v2472
        %v2953 = vpack.c.b16 %v2475, %v2473
        %v2954 = vpack.c.b16 %v2478, %v2476
        %v2955 = vpack.c.b16 %v2479, %v2477
        %v2956 = vpack.c.b16 %v2482, %v2480
        %v2957 = vpack.c.b16 %v2483, %v2481
        %v2958 = vpack.c.b16 %v2486, %v2484
        %v2959 = vpack.c.b16 %v2487, %v2485
        %v2960 = vpack.c.b16 %v2490, %v2488
        %v2961 = vpack.c.b16 %v2491, %v2489
        %v2962 = vpack.c.b16 %v2494, %v2492
        %v2963 = vpack.c.b16 %v2495, %v2493
        %v2964 = vpack.c.b16 %v2498, %v2496
        %v2965 = vpack.c.b16 %v2499, %v2497
        %v2966 = vpack.c.b16 %v2502, %v2500
        %v2967 = vpack.c.b16 %v2503, %v2501
        %v2968 = vpack.c.b16 %v2506, %v2504
        %v2969 = vpack.c.b16 %v2507, %v2505
        %v2970 = vpack.c.b16 %v2510, %v2508
        %v2971 = vpack.c.b16 %v2511, %v2509
        %v2972 = vpack.c.b16 %v2514, %v2512
        %v2973 = vpack.c.b16 %v2515, %v2513
        %v2974 = vpack.c.b16 %v2518, %v2516
        %v2975 = vpack.c.b16 %v2519, %v2517
        %v2976 = vpack.c.b16 %v2522, %v2520
        %v2977 = vpack.c.b16 %v2523, %v2521
        %v2978 = vpack.c.b16 %v2526, %v2524
        %v2979 = vpack.c.b16 %v2527, %v2525
        %v2980 = vpack.c.b16 %v2530, %v2528
        %v2981 = vpack.c.b16 %v2531, %v2529
        %v2982 = vpack.c.b16 %v2534, %v2532
        %v2983 = vpack.c.b16 %v2535, %v2533
        %v2984 = vpack.c.b16 %v2538, %v2536
        %v2985 = vpack.c.b16 %v2539, %v2537
        %v2986 = vpack.c.b16 %v2542, %v2540
        %v2987 = vpack.c.b16 %v2543, %v2541
        %v2988 = vpack.c.b16 %v2546, %v2544
        %v2989 = vpack.c.b16 %v2547, %v2545
        %v2990 = vpack.c.b16 %v2550, %v2548
        %v2991 = vpack.c.b16 %v2551, %v2549
        %v2992 = vpack.c.b16 %v2554, %v2552
        %v2993 = vpack.c.b16 %v2555, %v2553
        %v2994 = vpack.c.b16 %v2558, %v2556
        %v2995 = vpack.c.b16 %v2559, %v2557
        %v2996 = vpack.c.b16 %v2562, %v2560
        %v2997 = vpack.c.b16 %v2563, %v2561
        %v2998 = vpack.c.b16 %v2566, %v2564
        %v2999 = vpack.c.b16 %v2567, %v2565
        %v3000 = vpack.c.b16 %v2570, %v2568
        %v3001 = vpack.c.b16 %v2571, %v2569
        %v3002 = vpack.c.b16 %v2574, %v2572
        %v3003 = vpack.c.b16 %v2575, %v2573
        %v3004 = vpack.c.b16 %v2578, %v2576
        %v3005 = vpack.c.b16 %v2579, %v2577
        %v3006 = vpack.c.b16 %v2582, %v2580
        %v3007 = vpack.c.b16 %v2583, %v2581
        %v3008 = vpack.c.b16 %v2586, %v2584
        %v3009 = vpack.c.b16 %v2587, %v2585
        %v3010 = vpack.c.b16 %v2590, %v2588
        %v3011 = vpack.c.b16 %v2591, %v2589
        %v3012 = vpack.c.b16 %v2594, %v2592
        %v3013 = vpack.c.b16 %v2595, %v2593
        %v3014 = vpack.c.b16 %v2598, %v2596
        %v3015 = vpack.c.b16 %v2599, %v2597
        %v3016 = vpack.c.b16 %v2602, %v2600
        %v3017 = vpack.c.b16 %v2603, %v2601
        %v3018 = vpack.c.b16 %v2606, %v2604
        %v3019 = vpack.c.b16 %v2607, %v2605
        %v3020 = vpack.c.b16 %v2610, %v2608
        %v3021 = vpack.c.b16 %v2611, %v2609
        %v3022 = vpack.c.b16 %v2614, %v2612
        %v3023 = vpack.c.b16 %v2615, %v2613
        %v3024 = vpack.c.b16 %v2618, %v2616
        %v3025 = vpack.c.b16 %v2619, %v2617
        %v3026 = vpack.c.b16 %v2622, %v2620
        %v3027 = vpack.c.b16 %v2623, %v2621
        %v3028 = vpack.c.b16 %v2626, %v2624
        %v3029 = vpack.c.b16 %v2627, %v2625
        %v3030 = vpack.c.b16 %v2630, %v2628
        %v3031 = vpack.c.b16 %v2631, %v2629
        %v3032 = vpack.c.b16 %v2634, %v2632
        %v3033 = vpack.c.b16 %v2635, %v2633
        %v3034 = vpack.c.b16 %v2638, %v2636
        %v3035 = vpack.c.b16 %v2639, %v2637
        %v3036 = vpack.c.b16 %v2642, %v2640
        %v3037 = vpack.c.b16 %v2643, %v2641
        %v3038 = vpack.c.b16 %v2646, %v2644
        %v3039 = vpack.c.b16 %v2647, %v2645
        %v3040 = vpack.c.b16 %v2650, %v2648
        %v3041 = vpack.c.b16 %v2651, %v2649
        %v3042 = vpack.c.b16 %v2654, %v2652
        %v3043 = vpack.c.b16 %v2655, %v2653
        %v3044 = vpack.c.b16 %v2658, %v2656
        %v3045 = vpack.c.b16 %v2659, %v2657
        %v3046 = vpack.c.b16 %v2662, %v2660
        %v3047 = vpack.c.b16 %v2663, %v2661
        %v3048 = vpack.c.b16 %v2666, %v2664
        %v3049 = vpack.c.b16 %v2667, %v2665
        %v3050 = vpack.c.b16 %v2670, %v2668
        %v3051 = vpack.c.b16 %v2671, %v2669
        %v3052 = vpack.c.b16 %v2674, %v2672
        %v3053 = vpack.c.b16 %v2675, %v2673
        %v3054 = vpack.c.b16 %v2678, %v2676
        %v3055 = vpack.c.b16 %v2679, %v2677
        %v3056 = vpack.c.b16 %v2682, %v2680
        %v3057 = vpack.c.b16 %v2683, %v2681
        %v3058 = vpack.c.b16 %v2686, %v2684
        %v3059 = vpack.c.b16 %v2687, %v2685
        %v3060 = vpack.c.b16 %v2690, %v2688
        %v3061 = vpack.c.b16 %v2691, %v2689
        %v3062 = vpack.c.b16 %v2694, %v2692
        %v3063 = vpack.c.b16 %v2695, %v2693
        %v3064 = vpack.c.b16 %v2698, %v2696
        %v3065 = vpack.c.b16 %v2699, %v2697
        %v3066 = vpack.c.b16 %v2702, %v2700
        %v3067 = vpack.c.b16 %v2703, %v2701
        %v3068 = vpack.c.b16 %v2706, %v2704
        %v3069 = vpack.c.b16 %v2707, %v2705
        %v3070 = vpack.c.b16 %v2710, %v2708
        %v3071 = vpack.c.b16 %v2711, %v2709
        %v3072 = vpack.c.b16 %v2714, %v2712
        %v3073 = vpack.c.b16 %v2715, %v2713
        %v3074 = vpack.c.b16 %v2718, %v2716
        %v3075 = vpack.c.b16 %v2719, %v2717
        %v3076 = vpack.c.b16 %v2722, %v2720
        %v3077 = vpack.c.b16 %v2723, %v2721
        %v3078 = vpack.c.b16 %v2726, %v2724
        %v3079 = vpack.c.b16 %v2727, %v2725
        %v3080 = vpack.c.b16 %v2730, %v2728
        %v3081 = vpack.c.b16 %v2731, %v2729
        %v3082 = vpack.c.b16 %v2734, %v2732
        %v3083 = vpack.c.b16 %v2735, %v2733
        %v3084 = vpack.c.b16 %v2738, %v2736
        %v3085 = vpack.c.b16 %v2739, %v2737
        %v3086 = vpack.c.b16 %v2742, %v2740
        %v3087 = vpack.c.b16 %v2743, %v2741
        %v3088 = vpack.c.b16 %v2746, %v2744
        %v3089 = vpack.c.b16 %v2747, %v2745
        %v3090 = vpack.c.b16 %v2750, %v2748
        %v3091 = vpack.c.b16 %v2751, %v2749
        %v3092 = vpack.c.b16 %v2754, %v2752
        %v3093 = vpack.c.b16 %v2755, %v2753
        %v3094 = vpack.c.b16 %v2758, %v2756
        %v3095 = vpack.c.b16 %v2759, %v2757
        %v3096 = vpack.c.b16 %v2762, %v2760
        %v3097 = vpack.c.b16 %v2763, %v2761
        %v3098 = vpack.c.b16 %v2766, %v2764
        %v3099 = vpack.c.b16 %v2767, %v2765
        %v3100 = vpack.c.b16 %v2770, %v2768
        %v3101 = vpack.c.b16 %v2771, %v2769
        %v3102 = vpack.c.b16 %v2774, %v2772
        %v3103 = vpack.c.b16 %v2775, %v2773
        %v3104 = vpack.c.b16 %v2778, %v2776
        %v3105 = vpack.c.b16 %v2779, %v2777
        %v3106 = vpack.c.b16 %v2782, %v2780
        %v3107 = vpack.c.b16 %v2783, %v2781
        %v3433 = vlaneseq
        %v3434 = vshrl.u32 %v3433, 7
        %v3435 = vsub.s32 0, %v3434
        %v3436 = vrot.slane %v1811, %v3435
        %v3437 = vlaneseq
        %v3438 = vshrl.u32 %v3437, 7
        %v3439 = vsub.s32 1, %v3438
        %v3440 = vrot.slane %v1811, %v3439
        %vm3443 = vcmask 261120
        %v3445 = vsel %vm3443, %v1486, 0
        %3447 = vmatprep.subr.bf16.mxu0 %v2799
        %3448 = vmatpush1.bf16.msra.mxu0 %v2798
        %3449 = vmatprep.subr.bf16.mxu0 %v2797
        %3450 = vmatpush1.bf16.msra.mxu0 %v2796
        %3451 = vmatprep.subr.bf16.mxu0 %v2795
        %3452 = vmatpush1.bf16.msra.mxu0 %v2794
        %3453 = vmatprep.subr.bf16.mxu0 %v2793
        %3454 = vmatpush1.bf16.msra.mxu0 %v2792
        %3455 = vmatprep.subr.bf16.mxu0 %v2791
        %3456 = vmatpush1.bf16.msra.mxu0 %v2790
        %3457 = vmatprep.subr.bf16.mxu0 %v2789
        %3458 = vmatpush1.bf16.msra.mxu0 %v2788
        %3459 = vmatprep.subr.bf16.mxu0 %v2787
        %3460 = vmatpush1.bf16.msra.mxu0 %v2786
        %3461 = vmatprep.subr.bf16.mxu0 %v2785
        %3462 = vmatpush1.bf16.msra.mxu0 %v2784
        %3463 = vmatprep.subr.bf16.mxu0 %v2815
        %3464 = vmatpush2.bf16.msra.mxu0 %v2814
        %3465 = vmatprep.subr.bf16.mxu0 %v2813
        %3466 = vmatpush2.bf16.msra.mxu0 %v2812
        %3467 = vmatprep.subr.bf16.mxu0 %v2811
        %3468 = vmatpush2.bf16.msra.mxu0 %v2810
        %3469 = vmatprep.subr.bf16.mxu0 %v2809
        %3470 = vmatpush2.bf16.msra.mxu0 %v2808
        %3471 = vmatprep.subr.bf16.mxu0 %v2807
        %3472 = vmatpush2.bf16.msra.mxu0 %v2806
        %3473 = vmatprep.subr.bf16.mxu0 %v2805
        %3474 = vmatpush2.bf16.msra.mxu0 %v2804
        %3475 = vmatprep.subr.bf16.mxu0 %v2803
        %3476 = vmatpush2.bf16.msra.mxu0 %v2802
        %3477 = vmatprep.subr.bf16.mxu0 %v2801
        %3478 = vmatpush2.bf16.msra.mxu0 %v2800
        %3479 = vmatprep.mubr.bf16.mxu0 %v1467
        %3480 = vmatmul.mubr.bf16.gmra.mxu0 %v1466
        %v3481 = vpop.f32.mrf.mxu0
        %v3482 = vadd.f32 %v3436, %v3481
        %v3483 = vpop.f32.mrf.mxu0
        %v3484 = vadd.f32 %v3440, %v3483
        %v3485 = vpop.f32.mrf.mxu0
        %v3486 = vpop.f32.mrf.mxu0
        %3487 = vdwg.mxu0
        %3488 = vmatprep.subr.bf16.mxu0 %v2831
        %3489 = vmatpush1.bf16.msra.mxu0 %v2830
        %3490 = vmatprep.subr.bf16.mxu0 %v2829
        %3491 = vmatpush1.bf16.msra.mxu0 %v2828
        %3492 = vmatprep.subr.bf16.mxu0 %v2827
        %3493 = vmatpush1.bf16.msra.mxu0 %v2826
        %3494 = vmatprep.subr.bf16.mxu0 %v2825
        %3495 = vmatpush1.bf16.msra.mxu0 %v2824
        %3496 = vmatprep.subr.bf16.mxu0 %v2823
        %3497 = vmatpush1.bf16.msra.mxu0 %v2822
        %3498 = vmatprep.subr.bf16.mxu0 %v2821
        %3499 = vmatpush1.bf16.msra.mxu0 %v2820
        %3500 = vmatprep.subr.bf16.mxu0 %v2819
        %3501 = vmatpush1.bf16.msra.mxu0 %v2818
        %3502 = vmatprep.subr.bf16.mxu0 %v2817
        %3503 = vmatpush1.bf16.msra.mxu0 %v2816
        %3504 = vmatprep.subr.bf16.mxu0 %v2847
        %3505 = vmatpush2.bf16.msra.mxu0 %v2846
        %3506 = vmatprep.subr.bf16.mxu0 %v2845
        %3507 = vmatpush2.bf16.msra.mxu0 %v2844
        %3508 = vmatprep.subr.bf16.mxu0 %v2843
        %3509 = vmatpush2.bf16.msra.mxu0 %v2842
        %3510 = vmatprep.subr.bf16.mxu0 %v2841
        %3511 = vmatpush2.bf16.msra.mxu0 %v2840
        %3512 = vmatprep.subr.bf16.mxu0 %v2839
        %3513 = vmatpush2.bf16.msra.mxu0 %v2838
        %3514 = vmatprep.subr.bf16.mxu0 %v2837
        %3515 = vmatpush2.bf16.msra.mxu0 %v2836
        %3516 = vmatprep.subr.bf16.mxu0 %v2835
        %3517 = vmatpush2.bf16.msra.mxu0 %v2834
        %3518 = vmatprep.subr.bf16.mxu0 %v2833
        %3519 = vmatpush2.bf16.msra.mxu0 %v2832
        %3520 = vmatprep.mubr.bf16.mxu0 %v1469
        %3521 = vmatmul.mubr.bf16.gmra.mxu0 %v1468
        %v3522 = vpop.f32.mrf.mxu0
        %v3523 = vadd.f32 %v3482, %v3522
        %v3524 = vpop.f32.mrf.mxu0
        %v3525 = vadd.f32 %v3484, %v3524
        %v3526 = vpop.f32.mrf.mxu0
        %v3527 = vpop.f32.mrf.mxu0
        %3528 = vdwg.mxu0
        %3529 = vmatprep.subr.bf16.mxu0 %v2863
        %3530 = vmatpush1.bf16.msra.mxu0 %v2862
        %3531 = vmatprep.subr.bf16.mxu0 %v2861
        %3532 = vmatpush1.bf16.msra.mxu0 %v2860
        %3533 = vmatprep.subr.bf16.mxu0 %v2859
        %3534 = vmatpush1.bf16.msra.mxu0 %v2858
        %3535 = vmatprep.subr.bf16.mxu0 %v2857
        %3536 = vmatpush1.bf16.msra.mxu0 %v2856
        %3537 = vmatprep.subr.bf16.mxu0 %v2855
        %3538 = vmatpush1.bf16.msra.mxu0 %v2854
        %3539 = vmatprep.subr.bf16.mxu0 %v2853
        %3540 = vmatpush1.bf16.msra.mxu0 %v2852
        %3541 = vmatprep.subr.bf16.mxu0 %v2851
        %3542 = vmatpush1.bf16.msra.mxu0 %v2850
        %3543 = vmatprep.subr.bf16.mxu0 %v2849
        %3544 = vmatpush1.bf16.msra.mxu0 %v2848
        %3545 = vmatprep.subr.bf16.mxu0 %v2879
        %3546 = vmatpush2.bf16.msra.mxu0 %v2878
        %3547 = vmatprep.subr.bf16.mxu0 %v2877
        %3548 = vmatpush2.bf16.msra.mxu0 %v2876
        %3549 = vmatprep.subr.bf16.mxu0 %v2875
        %3550 = vmatpush2.bf16.msra.mxu0 %v2874
        %3551 = vmatprep.subr.bf16.mxu0 %v2873
        %3552 = vmatpush2.bf16.msra.mxu0 %v2872
        %3553 = vmatprep.subr.bf16.mxu0 %v2871
        %3554 = vmatpush2.bf16.msra.mxu0 %v2870
        %3555 = vmatprep.subr.bf16.mxu0 %v2869
        %3556 = vmatpush2.bf16.msra.mxu0 %v2868
        %3557 = vmatprep.subr.bf16.mxu0 %v2867
        %3558 = vmatpush2.bf16.msra.mxu0 %v2866
        %3559 = vmatprep.subr.bf16.mxu0 %v2865
        %3560 = vmatpush2.bf16.msra.mxu0 %v2864
        %3561 = vmatprep.mubr.bf16.mxu0 %v1471
        %3562 = vmatmul.mubr.bf16.gmra.mxu0 %v1470
        %v3563 = vpop.f32.mrf.mxu0
        %v3564 = vadd.f32 %v3523, %v3563
        %v3565 = vpop.f32.mrf.mxu0
        %v3566 = vadd.f32 %v3525, %v3565
        %v3567 = vpop.f32.mrf.mxu0
        %v3568 = vpop.f32.mrf.mxu0
        %3569 = vdwg.mxu0
        %3570 = vmatprep.subr.bf16.mxu0 %v2895
        %3571 = vmatpush1.bf16.msra.mxu0 %v2894
        %3572 = vmatprep.subr.bf16.mxu0 %v2893
        %3573 = vmatpush1.bf16.msra.mxu0 %v2892
        %3574 = vmatprep.subr.bf16.mxu0 %v2891
        %3575 = vmatpush1.bf16.msra.mxu0 %v2890
        %3576 = vmatprep.subr.bf16.mxu0 %v2889
        %3577 = vmatpush1.bf16.msra.mxu0 %v2888
        %3578 = vmatprep.subr.bf16.mxu0 %v2887
        %3579 = vmatpush1.bf16.msra.mxu0 %v2886
        %3580 = vmatprep.subr.bf16.mxu0 %v2885
        %3581 = vmatpush1.bf16.msra.mxu0 %v2884
        %3582 = vmatprep.subr.bf16.mxu0 %v2883
        %3583 = vmatpush1.bf16.msra.mxu0 %v2882
        %3584 = vmatprep.subr.bf16.mxu0 %v2881
        %3585 = vmatpush1.bf16.msra.mxu0 %v2880
        %3586 = vmatprep.subr.bf16.mxu0 %v2911
        %3587 = vmatpush2.bf16.msra.mxu0 %v2910
        %3588 = vmatprep.subr.bf16.mxu0 %v2909
        %3589 = vmatpush2.bf16.msra.mxu0 %v2908
        %3590 = vmatprep.subr.bf16.mxu0 %v2907
        %3591 = vmatpush2.bf16.msra.mxu0 %v2906
        %3592 = vmatprep.subr.bf16.mxu0 %v2905
        %3593 = vmatpush2.bf16.msra.mxu0 %v2904
        %3594 = vmatprep.subr.bf16.mxu0 %v2903
        %3595 = vmatpush2.bf16.msra.mxu0 %v2902
        %3596 = vmatprep.subr.bf16.mxu0 %v2901
        %3597 = vmatpush2.bf16.msra.mxu0 %v2900
        %3598 = vmatprep.subr.bf16.mxu0 %v2899
        %3599 = vmatpush2.bf16.msra.mxu0 %v2898
        %3600 = vmatprep.subr.bf16.mxu0 %v2897
        %3601 = vmatpush2.bf16.msra.mxu0 %v2896
        %3602 = vmatprep.mubr.bf16.mxu0 %v1473
        %3603 = vmatmul.mubr.bf16.gmra.mxu0 %v1472
        %v3604 = vpop.f32.mrf.mxu0
        %v3605 = vadd.f32 %v3564, %v3604
        %v3606 = vpop.f32.mrf.mxu0
        %v3607 = vadd.f32 %v3566, %v3606
        %v3608 = vpop.f32.mrf.mxu0
        %v3609 = vpop.f32.mrf.mxu0
        %3610 = vdwg.mxu0
        %3611 = vmatprep.subr.bf16.mxu0 %v2927
        %3612 = vmatpush1.bf16.msra.mxu0 %v2926
        %3613 = vmatprep.subr.bf16.mxu0 %v2925
        %3614 = vmatpush1.bf16.msra.mxu0 %v2924
        %3615 = vmatprep.subr.bf16.mxu0 %v2923
        %3616 = vmatpush1.bf16.msra.mxu0 %v2922
        %3617 = vmatprep.subr.bf16.mxu0 %v2921
        %3618 = vmatpush1.bf16.msra.mxu0 %v2920
        %3619 = vmatprep.subr.bf16.mxu0 %v2919
        %3620 = vmatpush1.bf16.msra.mxu0 %v2918
        %3621 = vmatprep.subr.bf16.mxu0 %v2917
        %3622 = vmatpush1.bf16.msra.mxu0 %v2916
        %3623 = vmatprep.subr.bf16.mxu0 %v2915
        %3624 = vmatpush1.bf16.msra.mxu0 %v2914
        %3625 = vmatprep.subr.bf16.mxu0 %v2913
        %3626 = vmatpush1.bf16.msra.mxu0 %v2912
        %3627 = vmatprep.subr.bf16.mxu0 %v2943
        %3628 = vmatpush2.bf16.msra.mxu0 %v2942
        %3629 = vmatprep.subr.bf16.mxu0 %v2941
        %3630 = vmatpush2.bf16.msra.mxu0 %v2940
        %3631 = vmatprep.subr.bf16.mxu0 %v2939
        %3632 = vmatpush2.bf16.msra.mxu0 %v2938
        %3633 = vmatprep.subr.bf16.mxu0 %v2937
        %3634 = vmatpush2.bf16.msra.mxu0 %v2936
        %3635 = vmatprep.subr.bf16.mxu0 %v2935
        %3636 = vmatpush2.bf16.msra.mxu0 %v2934
        %3637 = vmatprep.subr.bf16.mxu0 %v2933
        %3638 = vmatpush2.bf16.msra.mxu0 %v2932
        %3639 = vmatprep.subr.bf16.mxu0 %v2931
        %3640 = vmatpush2.bf16.msra.mxu0 %v2930
        %3641 = vmatprep.subr.bf16.mxu0 %v2929
        %3642 = vmatpush2.bf16.msra.mxu0 %v2928
        %3643 = vmatprep.mubr.bf16.mxu0 %v1475
        %3644 = vmatmul.mubr.bf16.gmra.mxu0 %v1474
        %v3645 = vpop.f32.mrf.mxu0
        %v3646 = vadd.f32 %v3605, %v3645
        %v3647 = vpop.f32.mrf.mxu0
        %v3648 = vadd.f32 %v3607, %v3647
        %v3649 = vpop.f32.mrf.mxu0
        %v3650 = vpop.f32.mrf.mxu0
        %3651 = vdwg.mxu0
        %3652 = vmatprep.subr.bf16.mxu0 %v2959
        %3653 = vmatpush1.bf16.msra.mxu0 %v2958
        %3654 = vmatprep.subr.bf16.mxu0 %v2957
        %3655 = vmatpush1.bf16.msra.mxu0 %v2956
        %3656 = vmatprep.subr.bf16.mxu0 %v2955
        %3657 = vmatpush1.bf16.msra.mxu0 %v2954
        %3658 = vmatprep.subr.bf16.mxu0 %v2953
        %3659 = vmatpush1.bf16.msra.mxu0 %v2952
        %3660 = vmatprep.subr.bf16.mxu0 %v2951
        %3661 = vmatpush1.bf16.msra.mxu0 %v2950
        %3662 = vmatprep.subr.bf16.mxu0 %v2949
        %3663 = vmatpush1.bf16.msra.mxu0 %v2948
        %3664 = vmatprep.subr.bf16.mxu0 %v2947
        %3665 = vmatpush1.bf16.msra.mxu0 %v2946
        %3666 = vmatprep.subr.bf16.mxu0 %v2945
        %3667 = vmatpush1.bf16.msra.mxu0 %v2944
        %3668 = vmatprep.subr.bf16.mxu0 %v2975
        %3669 = vmatpush2.bf16.msra.mxu0 %v2974
        %3670 = vmatprep.subr.bf16.mxu0 %v2973
        %3671 = vmatpush2.bf16.msra.mxu0 %v2972
        %3672 = vmatprep.subr.bf16.mxu0 %v2971
        %3673 = vmatpush2.bf16.msra.mxu0 %v2970
        %3674 = vmatprep.subr.bf16.mxu0 %v2969
        %3675 = vmatpush2.bf16.msra.mxu0 %v2968
        %3676 = vmatprep.subr.bf16.mxu0 %v2967
        %3677 = vmatpush2.bf16.msra.mxu0 %v2966
        %3678 = vmatprep.subr.bf16.mxu0 %v2965
        %3679 = vmatpush2.bf16.msra.mxu0 %v2964
        %3680 = vmatprep.subr.bf16.mxu0 %v2963
        %3681 = vmatpush2.bf16.msra.mxu0 %v2962
        %3682 = vmatprep.subr.bf16.mxu0 %v2961
        %3683 = vmatpush2.bf16.msra.mxu0 %v2960
        %3684 = vmatprep.mubr.bf16.mxu0 %v1477
        %3685 = vmatmul.mubr.bf16.gmra.mxu0 %v1476
        %v3686 = vpop.f32.mrf.mxu0
        %v3687 = vadd.f32 %v3646, %v3686
        %v3688 = vpop.f32.mrf.mxu0
        %v3689 = vadd.f32 %v3648, %v3688
        %v3690 = vpop.f32.mrf.mxu0
        %v3691 = vpop.f32.mrf.mxu0
        %3692 = vdwg.mxu0
        %3693 = vmatprep.subr.bf16.mxu0 %v2991
        %3694 = vmatpush1.bf16.msra.mxu0 %v2990
        %3695 = vmatprep.subr.bf16.mxu0 %v2989
        %3696 = vmatpush1.bf16.msra.mxu0 %v2988
        %3697 = vmatprep.subr.bf16.mxu0 %v2987
        %3698 = vmatpush1.bf16.msra.mxu0 %v2986
        %3699 = vmatprep.subr.bf16.mxu0 %v2985
        %3700 = vmatpush1.bf16.msra.mxu0 %v2984
        %3701 = vmatprep.subr.bf16.mxu0 %v2983
        %3702 = vmatpush1.bf16.msra.mxu0 %v2982
        %3703 = vmatprep.subr.bf16.mxu0 %v2981
        %3704 = vmatpush1.bf16.msra.mxu0 %v2980
        %3705 = vmatprep.subr.bf16.mxu0 %v2979
        %3706 = vmatpush1.bf16.msra.mxu0 %v2978
        %3707 = vmatprep.subr.bf16.mxu0 %v2977
        %3708 = vmatpush1.bf16.msra.mxu0 %v2976
        %3709 = vmatprep.subr.bf16.mxu0 %v3007
        %3710 = vmatpush2.bf16.msra.mxu0 %v3006
        %3711 = vmatprep.subr.bf16.mxu0 %v3005
        %3712 = vmatpush2.bf16.msra.mxu0 %v3004
        %3713 = vmatprep.subr.bf16.mxu0 %v3003
        %3714 = vmatpush2.bf16.msra.mxu0 %v3002
        %3715 = vmatprep.subr.bf16.mxu0 %v3001
        %3716 = vmatpush2.bf16.msra.mxu0 %v3000
        %3717 = vmatprep.subr.bf16.mxu0 %v2999
        %3718 = vmatpush2.bf16.msra.mxu0 %v2998
        %3719 = vmatprep.subr.bf16.mxu0 %v2997
        %3720 = vmatpush2.bf16.msra.mxu0 %v2996
        %3721 = vmatprep.subr.bf16.mxu0 %v2995
        %3722 = vmatpush2.bf16.msra.mxu0 %v2994
        %3723 = vmatprep.subr.bf16.mxu0 %v2993
        %3724 = vmatpush2.bf16.msra.mxu0 %v2992
        %3725 = vmatprep.mubr.bf16.mxu0 %v1479
        %3726 = vmatmul.mubr.bf16.gmra.mxu0 %v1478
        %v3727 = vpop.f32.mrf.mxu0
        %v3728 = vadd.f32 %v3687, %v3727
        %v3729 = vpop.f32.mrf.mxu0
        %v3730 = vadd.f32 %v3689, %v3729
        %v3731 = vpop.f32.mrf.mxu0
        %v3732 = vpop.f32.mrf.mxu0
        %3733 = vdwg.mxu0
        %3734 = vmatprep.subr.bf16.mxu0 %v3023
        %3735 = vmatpush1.bf16.msra.mxu0 %v3022
        %3736 = vmatprep.subr.bf16.mxu0 %v3021
        %3737 = vmatpush1.bf16.msra.mxu0 %v3020
        %3738 = vmatprep.subr.bf16.mxu0 %v3019
        %3739 = vmatpush1.bf16.msra.mxu0 %v3018
        %3740 = vmatprep.subr.bf16.mxu0 %v3017
        %3741 = vmatpush1.bf16.msra.mxu0 %v3016
        %3742 = vmatprep.subr.bf16.mxu0 %v3015
        %3743 = vmatpush1.bf16.msra.mxu0 %v3014
        %3744 = vmatprep.subr.bf16.mxu0 %v3013
        %3745 = vmatpush1.bf16.msra.mxu0 %v3012
        %3746 = vmatprep.subr.bf16.mxu0 %v3011
        %3747 = vmatpush1.bf16.msra.mxu0 %v3010
        %3748 = vmatprep.subr.bf16.mxu0 %v3009
        %3749 = vmatpush1.bf16.msra.mxu0 %v3008
        %3750 = vmatprep.subr.bf16.mxu0 %v3039
        %3751 = vmatpush2.bf16.msra.mxu0 %v3038
        %3752 = vmatprep.subr.bf16.mxu0 %v3037
        %3753 = vmatpush2.bf16.msra.mxu0 %v3036
        %3754 = vmatprep.subr.bf16.mxu0 %v3035
        %3755 = vmatpush2.bf16.msra.mxu0 %v3034
        %3756 = vmatprep.subr.bf16.mxu0 %v3033
        %3757 = vmatpush2.bf16.msra.mxu0 %v3032
        %3758 = vmatprep.subr.bf16.mxu0 %v3031
        %3759 = vmatpush2.bf16.msra.mxu0 %v3030
        %3760 = vmatprep.subr.bf16.mxu0 %v3029
        %3761 = vmatpush2.bf16.msra.mxu0 %v3028
        %3762 = vmatprep.subr.bf16.mxu0 %v3027
        %3763 = vmatpush2.bf16.msra.mxu0 %v3026
        %3764 = vmatprep.subr.bf16.mxu0 %v3025
        %3765 = vmatpush2.bf16.msra.mxu0 %v3024
        %3766 = vmatprep.mubr.bf16.mxu0 %v1481
        %3767 = vmatmul.mubr.bf16.gmra.mxu0 %v1480
        %v3768 = vpop.f32.mrf.mxu0
        %v3769 = vadd.f32 %v3728, %v3768
        %v3770 = vpop.f32.mrf.mxu0
        %v3771 = vadd.f32 %v3730, %v3770
        %v3772 = vpop.f32.mrf.mxu0
        %v3773 = vpop.f32.mrf.mxu0
        %3774 = vdwg.mxu0
        %3775 = vmatprep.subr.bf16.mxu0 %v3055
        %3776 = vmatpush1.bf16.msra.mxu0 %v3054
        %3777 = vmatprep.subr.bf16.mxu0 %v3053
        %3778 = vmatpush1.bf16.msra.mxu0 %v3052
        %3779 = vmatprep.subr.bf16.mxu0 %v3051
        %3780 = vmatpush1.bf16.msra.mxu0 %v3050
        %3781 = vmatprep.subr.bf16.mxu0 %v3049
        %3782 = vmatpush1.bf16.msra.mxu0 %v3048
        %3783 = vmatprep.subr.bf16.mxu0 %v3047
        %3784 = vmatpush1.bf16.msra.mxu0 %v3046
        %3785 = vmatprep.subr.bf16.mxu0 %v3045
        %3786 = vmatpush1.bf16.msra.mxu0 %v3044
        %3787 = vmatprep.subr.bf16.mxu0 %v3043
        %3788 = vmatpush1.bf16.msra.mxu0 %v3042
        %3789 = vmatprep.subr.bf16.mxu0 %v3041
        %3790 = vmatpush1.bf16.msra.mxu0 %v3040
        %3791 = vmatprep.subr.bf16.mxu0 %v3071
        %3792 = vmatpush2.bf16.msra.mxu0 %v3070
        %3793 = vmatprep.subr.bf16.mxu0 %v3069
        %3794 = vmatpush2.bf16.msra.mxu0 %v3068
        %3795 = vmatprep.subr.bf16.mxu0 %v3067
        %3796 = vmatpush2.bf16.msra.mxu0 %v3066
        %3797 = vmatprep.subr.bf16.mxu0 %v3065
        %3798 = vmatpush2.bf16.msra.mxu0 %v3064
        %3799 = vmatprep.subr.bf16.mxu0 %v3063
        %3800 = vmatpush2.bf16.msra.mxu0 %v3062
        %3801 = vmatprep.subr.bf16.mxu0 %v3061
        %3802 = vmatpush2.bf16.msra.mxu0 %v3060
        %3803 = vmatprep.subr.bf16.mxu0 %v3059
        %3804 = vmatpush2.bf16.msra.mxu0 %v3058
        %3805 = vmatprep.subr.bf16.mxu0 %v3057
        %3806 = vmatpush2.bf16.msra.mxu0 %v3056
        %3807 = vmatprep.mubr.bf16.mxu0 %v1483
        %3808 = vmatmul.mubr.bf16.gmra.mxu0 %v1482
        %v3809 = vpop.f32.mrf.mxu0
        %v3810 = vadd.f32 %v3769, %v3809
        %v3811 = vpop.f32.mrf.mxu0
        %v3812 = vadd.f32 %v3771, %v3811
        %v3813 = vpop.f32.mrf.mxu0
        %v3814 = vpop.f32.mrf.mxu0
        %3815 = vdwg.mxu0
        %3816 = vmatprep.subr.bf16.mxu0 %v3087
        %3817 = vmatpush1.bf16.msra.mxu0 %v3086
        %3818 = vmatprep.subr.bf16.mxu0 %v3085
        %3819 = vmatpush1.bf16.msra.mxu0 %v3084
        %3820 = vmatprep.subr.bf16.mxu0 %v3083
        %3821 = vmatpush1.bf16.msra.mxu0 %v3082
        %3822 = vmatprep.subr.bf16.mxu0 %v3081
        %3823 = vmatpush1.bf16.msra.mxu0 %v3080
        %3824 = vmatprep.subr.bf16.mxu0 %v3079
        %3825 = vmatpush1.bf16.msra.mxu0 %v3078
        %3826 = vmatprep.subr.bf16.mxu0 %v3077
        %3827 = vmatpush1.bf16.msra.mxu0 %v3076
        %3828 = vmatprep.subr.bf16.mxu0 %v3075
        %3829 = vmatpush1.bf16.msra.mxu0 %v3074
        %3830 = vmatprep.subr.bf16.mxu0 %v3073
        %3831 = vmatpush1.bf16.msra.mxu0 %v3072
        %3832 = vmatprep.subr.bf16.mxu0 %v3103
        %3833 = vmatpush2.bf16.msra.mxu0 %v3102
        %3834 = vmatprep.subr.bf16.mxu0 %v3101
        %3835 = vmatpush2.bf16.msra.mxu0 %v3100
        %3836 = vmatprep.subr.bf16.mxu0 %v3099
        %3837 = vmatpush2.bf16.msra.mxu0 %v3098
        %3838 = vmatprep.subr.bf16.mxu0 %v3097
        %3839 = vmatpush2.bf16.msra.mxu0 %v3096
        %3840 = vmatprep.subr.bf16.mxu0 %v3095
        %3841 = vmatpush2.bf16.msra.mxu0 %v3094
        %3842 = vmatprep.subr.bf16.mxu0 %v3093
        %3843 = vmatpush2.bf16.msra.mxu0 %v3092
        %3844 = vmatprep.subr.bf16.mxu0 %v3091
        %3845 = vmatpush2.bf16.msra.mxu0 %v3090
        %3846 = vmatprep.subr.bf16.mxu0 %v3089
        %3847 = vmatpush2.bf16.msra.mxu0 %v3088
        %3848 = vmatprep.mubr.bf16.mxu0 %v1485
        %3849 = vmatmul.mubr.bf16.gmra.mxu0 %v1484
        %v3850 = vpop.f32.mrf.mxu0
        %v3851 = vadd.f32 %v3810, %v3850
        %v3852 = vpop.f32.mrf.mxu0
        %v3853 = vadd.f32 %v3812, %v3852
        %v3854 = vpop.f32.mrf.mxu0
        %v3855 = vpop.f32.mrf.mxu0
        %3856 = vdwg.mxu0
        %3857 = vmatprep.subr.bf16.mxu0 0
        %3858 = vmatpush1.bf16.msra.mxu0 0
        %3859 = vmatprep.subr.bf16.mxu0 0
        %3860 = vmatpush1.bf16.msra.mxu0 0
        %3861 = vmatprep.subr.bf16.mxu0 0
        %3862 = vmatpush1.bf16.msra.mxu0 0
        %3863 = vmatprep.subr.bf16.mxu0 0
        %3864 = vmatpush1.bf16.msra.mxu0 0
        %3865 = vmatprep.subr.bf16.mxu0 0
        %3866 = vmatpush1.bf16.msra.mxu0 0
        %3867 = vmatprep.subr.bf16.mxu0 0
        %3868 = vmatpush1.bf16.msra.mxu0 0
        %3869 = vmatprep.subr.bf16.mxu0 %v3107
        %3870 = vmatpush1.bf16.msra.mxu0 %v3106
        %3871 = vmatprep.subr.bf16.mxu0 %v3105
        %3872 = vmatpush1.bf16.msra.mxu0 %v3104
        %3873 = vmatprep.subr.bf16.mxu0 0
        %3874 = vmatpush2.bf16.msra.mxu0 0
        %3875 = vmatprep.subr.bf16.mxu0 0
        %3876 = vmatpush2.bf16.msra.mxu0 0
        %3877 = vmatprep.subr.bf16.mxu0 0
        %3878 = vmatpush2.bf16.msra.mxu0 0
        %3879 = vmatprep.subr.bf16.mxu0 0
        %3880 = vmatpush2.bf16.msra.mxu0 0
        %3881 = vmatprep.subr.bf16.mxu0 0
        %3882 = vmatpush2.bf16.msra.mxu0 0
        %3883 = vmatprep.subr.bf16.mxu0 0
        %3884 = vmatpush2.bf16.msra.mxu0 0
        %3885 = vmatprep.subr.bf16.mxu0 0
        %3886 = vmatpush2.bf16.msra.mxu0 0
        %3887 = vmatprep.subr.bf16.mxu0 0
        %3888 = vmatpush2.bf16.msra.mxu0 0
        %3889 = vmatprep.mubr.bf16.mxu0 0
        %3890 = vmatmul.mubr.bf16.gmra.mxu0 %v3445
        %v3891 = vpop.f32.mrf.mxu0
        %v3892 = vadd.f32 %v3851, %v3891
        %v3893 = vpop.f32.mrf.mxu0
        %v3894 = vadd.f32 %v3853, %v3893
        %v3895 = vpop.f32.mrf.mxu0
        %v3896 = vpop.f32.mrf.mxu0
        %3897 = vdwg.mxu0
        %v3898 = vmax.f32 %v3892, 0.0
        %v3899 = vmax.f32 %v3894, 0.0
        %v3900 = vpack.c.bf16 %v3898, %v3898
        %v3901 = vpack.c.bf16 %v3899, %v3899
        %v3902 = vld [vmem:[%s5] sm:$0xf]
        %v3903 = vld [vmem:[%s5 + $0x4] sm:$0xf]
        %v3904 = vld [vmem:[%s5 + $0x8] sm:$0xf]
        %v3905 = vld [vmem:[%s5 + $0xc] sm:$0xf]
        %v3906 = vld [vmem:[%s5 + $0x10] sm:$0xf]
        %v3907 = vld [vmem:[%s5 + $0x14] sm:$0xf]
        %v3908 = vld [vmem:[%s5 + $0x18] sm:$0xf]
        %v3909 = vld [vmem:[%s5 + $0x1c] sm:$0xf]
        %v3910 = vld [vmem:[%s5 + $0x20] sm:$0xf]
        %v3911 = vld [vmem:[%s5 + $0x24] sm:$0xf]
        %v3912 = vld [vmem:[%s5 + $0x28] sm:$0xf]
        %v3913 = vld [vmem:[%s5 + $0x2c] sm:$0xf]
        %v3914 = vld [vmem:[%s5 + $0x30] sm:$0xf]
        %v3915 = vld [vmem:[%s5 + $0x34] sm:$0xf]
        %v3916 = vld [vmem:[%s5 + $0x38] sm:$0xf]
        %v3917 = vld [vmem:[%s5 + $0x3c] sm:$0xf]
        %v3918 = vld [vmem:[%s5 + $0x40] sm:$0xf]
        %v3919 = vld [vmem:[%s5 + $0x44] sm:$0xf]
        %v3920 = vld [vmem:[%s5 + $0x48] sm:$0xf]
        %v3921 = vld [vmem:[%s5 + $0x4c] sm:$0xf]
        %v3922 = vld [vmem:[%s5 + $0x50] sm:$0xf]
        %v3923 = vld [vmem:[%s5 + $0x54] sm:$0xf]
        %v3924 = vld [vmem:[%s5 + $0x58] sm:$0xf]
        %v3925 = vld [vmem:[%s5 + $0x5c] sm:$0xf]
        %v3926 = vld [vmem:[%s5 + $0x60] sm:$0xf]
        %v3927 = vld [vmem:[%s5 + $0x64] sm:$0xf]
        %v3928 = vld [vmem:[%s5 + $0x68] sm:$0xf]
        %v3929 = vld [vmem:[%s5 + $0x6c] sm:$0xf]
        %v3930 = vld [vmem:[%s5 + $0x70] sm:$0xf]
        %v3931 = vld [vmem:[%s5 + $0x74] sm:$0xf]
        %v3932 = vld [vmem:[%s5 + $0x78] sm:$0xf]
        %v3933 = vld [vmem:[%s5 + $0x7c] sm:$0xf]
        %v3934 = vld [vmem:[%s6] sm:$0x1]
        %v3967 = vunpack.c.l.b16 %v3902
        %v3968 = vunpack.c.l.b16 %v3903
        %v3969 = vunpack.c.l.b16 %v3904
        %v3970 = vunpack.c.l.b16 %v3905
        %v3971 = vunpack.c.l.b16 %v3906
        %v3972 = vunpack.c.l.b16 %v3907
        %v3973 = vunpack.c.l.b16 %v3908
        %v3974 = vunpack.c.l.b16 %v3909
        %v3975 = vunpack.c.l.b16 %v3910
        %v3976 = vunpack.c.l.b16 %v3911
        %v3977 = vunpack.c.l.b16 %v3912
        %v3978 = vunpack.c.l.b16 %v3913
        %v3979 = vunpack.c.l.b16 %v3914
        %v3980 = vunpack.c.l.b16 %v3915
        %v3981 = vunpack.c.l.b16 %v3916
        %v3982 = vunpack.c.l.b16 %v3917
        %v3983 = vunpack.c.l.b16 %v3918
        %v3984 = vunpack.c.l.b16 %v3919
        %v3985 = vunpack.c.l.b16 %v3920
        %v3986 = vunpack.c.l.b16 %v3921
        %v3987 = vunpack.c.l.b16 %v3922
        %v3988 = vunpack.c.l.b16 %v3923
        %v3989 = vunpack.c.l.b16 %v3924
        %v3990 = vunpack.c.l.b16 %v3925
        %v3991 = vunpack.c.l.b16 %v3926
        %v3992 = vunpack.c.l.b16 %v3927
        %v3993 = vunpack.c.l.b16 %v3928
        %v3994 = vunpack.c.l.b16 %v3929
        %v3995 = vunpack.c.l.b16 %v3930
        %v3996 = vunpack.c.l.b16 %v3931
        %v3997 = vunpack.c.l.b16 %v3932
        %v3998 = vunpack.c.l.b16 %v3933
        %v3999 = vpack.c.b16 %v3968, %v3967
        %v4000 = vpack.c.b16 %v3970, %v3969
        %v4001 = vpack.c.b16 %v3972, %v3971
        %v4002 = vpack.c.b16 %v3974, %v3973
        %v4003 = vpack.c.b16 %v3976, %v3975
        %v4004 = vpack.c.b16 %v3978, %v3977
        %v4005 = vpack.c.b16 %v3980, %v3979
        %v4006 = vpack.c.b16 %v3982, %v3981
        %v4007 = vpack.c.b16 %v3984, %v3983
        %v4008 = vpack.c.b16 %v3986, %v3985
        %v4009 = vpack.c.b16 %v3988, %v3987
        %v4010 = vpack.c.b16 %v3990, %v3989
        %v4011 = vpack.c.b16 %v3992, %v3991
        %v4012 = vpack.c.b16 %v3994, %v3993
        %v4013 = vpack.c.b16 %v3996, %v3995
        %v4014 = vpack.c.b16 %v3998, %v3997
        %4031 = vmatprep.subr.bf16.mxu0 0
        %4032 = vmatpush1.bf16.msra.mxu0 %v4006
        %4033 = vmatprep.subr.bf16.mxu0 0
        %4034 = vmatpush1.bf16.msra.mxu0 %v4005
        %4035 = vmatprep.subr.bf16.mxu0 0
        %4036 = vmatpush1.bf16.msra.mxu0 %v4004
        %4037 = vmatprep.subr.bf16.mxu0 0
        %4038 = vmatpush1.bf16.msra.mxu0 %v4003
        %4039 = vmatprep.subr.bf16.mxu0 0
        %4040 = vmatpush1.bf16.msra.mxu0 %v4002
        %4041 = vmatprep.subr.bf16.mxu0 0
        %4042 = vmatpush1.bf16.msra.mxu0 %v4001
        %4043 = vmatprep.subr.bf16.mxu0 0
        %4044 = vmatpush1.bf16.msra.mxu0 %v4000
        %4045 = vmatprep.subr.bf16.mxu0 0
        %4046 = vmatpush1.bf16.msra.mxu0 %v3999
        %4047 = vmatprep.subr.bf16.mxu0 0
        %4048 = vmatpush2.bf16.msra.mxu0 %v4014
        %4049 = vmatprep.subr.bf16.mxu0 0
        %4050 = vmatpush2.bf16.msra.mxu0 %v4013
        %4051 = vmatprep.subr.bf16.mxu0 0
        %4052 = vmatpush2.bf16.msra.mxu0 %v4012
        %4053 = vmatprep.subr.bf16.mxu0 0
        %4054 = vmatpush2.bf16.msra.mxu0 %v4011
        %4055 = vmatprep.subr.bf16.mxu0 0
        %4056 = vmatpush2.bf16.msra.mxu0 %v4010
        %4057 = vmatprep.subr.bf16.mxu0 0
        %4058 = vmatpush2.bf16.msra.mxu0 %v4009
        %4059 = vmatprep.subr.bf16.mxu0 0
        %4060 = vmatpush2.bf16.msra.mxu0 %v4008
        %4061 = vmatprep.subr.bf16.mxu0 0
        %4062 = vmatpush2.bf16.msra.mxu0 %v4007
        %4063 = vmatprep.mubr.bf16.mxu0 %v3901
        %4064 = vmatmul.mubr.bf16.gmra.mxu0 %v3900
        %v4065 = vpop.f32.mrf.mxu0
        %v4066 = vadd.f32 %v3934, %v4065
        %v4067 = vpop.f32.mrf.mxu0
        %v4068 = vpop.f32.mrf.mxu0
        %v4069 = vpop.f32.mrf.mxu0
        %4070 = vdwg.mxu0
        %4071 = vst [vmem:[%s270] sm:$0x1] %v4066
        %s4072 = sand.u32 %s181, 1
        %s4073 = scalar_lea.sflag [#allocation4], %s4072
        %s4074 = sand.u32 %s181, 1
        %s4075 = scalar_lea.vmem [#allocation3], %s4074
        // Predicated region
        $region49: #{dqn_forward.3} parent=47 // pred_check
          %p4076 = pneg %p191
        $region50: #{dqn_forward.3} parent=47 // pred_check_branch
          %4078 = sbr.rel (%p4076) target = $region52
        $region51: #{dqn_forward.3} parent=47 // pred_region
          %s4080 = ssub.s32 16, 16
          %4081 = vsyncadd %s4073, %s4080
          %s4082 = smul.addr %s21, 16
          %s4083 = scalar_lea.hbm %s7, %s4082
          %s4085 = sshll.u32 %s4075, 4
          %s4086 = int_to_ptr.vmem [resolvable:$true] %s4085
          %4088 = dma.vmem_to_hbm [thread:$0]  %s4086, 16, %s4083, %s4073
        $region52: #{dqn_forward.3} parent=47 // pred_fallthru
          _
      $region48: #{dqn_forward.3} parent=5 // pred_fallthru
        _
      %p4089 = scmp.le.s32.totalorder 2, %s16
      // Predicated region
      $region53: #{dqn_forward.3} parent=5 // pred_check
        %p4090 = pneg %p4089
      $region54: #{dqn_forward.3} parent=5 // pred_check_branch
        %4092 = sbr.rel (%p4090) target = $region56
      $region55: #{dqn_forward.3} parent=5 // pred_region
        %s4093 = ssub.s32 %s16, 2
        // Predicated region
        $region57: #{dqn_forward.3} parent=55 // pred_check
          %p4094 = pneg %p197
        $region58: #{dqn_forward.3} parent=55 // pred_check_branch
          %4096 = sbr.rel (%p4094) target = $region60
        $region59: #{dqn_forward.3} parent=55 // pred_region
          %s4097 = sand.u32 %s182, 1
          %s4098 = scalar_lea.sflag [#allocation4], %s4097
          %s4099 = sand.u32 %s182, 1
          %s4100 = scalar_lea.vmem [#allocation3], %s4099
          %4101 = dma.done %s4098, 16
        $region60: #{dqn_forward.3} parent=55 // pred_fallthru
          _
      $region56: #{dqn_forward.3} parent=5 // pred_fallthru
        _
    $region6: #{dqn_forward.3} parent=1 // loop_footer
      %s20 = sadd.s32 1, %s16
    $region7: #{dqn_forward.3} parent=1 // loop_footer_branch
      %15 = sbr.rel target = $region3
    $region8: #{dqn_forward.3} parent=1 // loop_exit
      _
    %4102 = vsyncpa [#allocation4], 1
    %s4103 = scalar_lea.sflag [#allocation4], 1
    %4104 = vsyncpa %s4103, 1

</llo_original>
